<compile_context>
chip_gen: v5e
topology: v5e:2x2
jax: 0.10.0
libtpu: 0.0.40
codegen_flags: <defaults>
</compile_context>

<pallas_src>
import math
import functools

import jax
import jax.numpy as jnp
from jax.experimental import pallas as pl
from jax.experimental.pallas import tpu as pltpu


# ---------------------------------------------------------------- helpers ---
def _layernorm_f32(x, gamma, beta, eps=1e-5):
    # torch LayerNorm subclass: fp32 compute, biased variance.
    mu = jnp.mean(x, axis=-1, keepdims=True)
    xc = x - mu
    var = jnp.mean(xc * xc, axis=-1, keepdims=True)
    return xc * jax.lax.rsqrt(var + eps) * gamma + beta


def _gelu_tanh(x):
    # TODO(synk): torch nn.GELU is exact erf-GELU; tanh approximation (EUP
    # tanh) deviates ~3e-3 per element, below this kernel's bf16 matmul noise.
    c = 0.7978845608028654  # sqrt(2/pi)
    return 0.5 * x * (1.0 + jnp.tanh(c * (x + 0.044715 * (x * x * x))))


def _matmul_bf16(a_f32, w_ref):
    # y = a @ W.T with bf16 MXU operands, fp32 accumulation.  W is (out, in).
    return jax.lax.dot_general(
        a_f32.astype(jnp.bfloat16), w_ref[...],
        dimension_numbers=(((1,), (1,)), ((), ())),
        preferred_element_type=jnp.float32)


# ----------------------------------------------------------------- kernel ---
def transform_layer_kernel(x_ref,
                           ln1_g, ln1_b,
                           wq, bq, wk, bk, wv, bv, w_out, b_out,
                           ln2_g, ln2_b,
                           w_fc, b_fc, w_proj, b_proj,
                           o_ref,
                           k_cache, v_cache,
                           *, n_heads, q_tile):
    f32, bf16 = jnp.float32, jnp.bfloat16
    E = x_ref.shape[-1]
    hd = E // n_heads
    q_idx = pl.program_id(1)

    # ---- K/V path: LayerNorm + projections computed ONCE per batch element
    # (first query tile) and cached head-split in VMEM for all other tiles.
    @pl.when(q_idx == 0)
    def _():
        x_full = x_ref[0].astype(f32)                              # (L, E)
        hf = _layernorm_f32(x_full, ln1_g[...], ln1_b[...])
        k2 = _matmul_bf16(hf, wk) + bk[...]                        # (L, E) f32
        v2 = _matmul_bf16(hf, wv) + bv[...]
        # one-time head split, amortized over all nq query tiles of this batch
        # element (MXU-dense (L,E)x(E,E) projection, then H static copies).
        k_cache[...] = jnp.stack(
            [k2[:, i * hd:(i + 1) * hd] for i in range(n_heads)], 0).astype(bf16)
        v_cache[...] = jnp.stack(
            [v2[:, i * hd:(i + 1) * hd] for i in range(n_heads)], 0).astype(bf16)

    # ---- query tile (steady-state path: no per-head lane slicing) ----------
    row0 = pl.multiple_of(q_idx * q_tile, q_tile)
    x_q = x_ref[0, pl.ds(row0, q_tile), :].astype(f32)             # (TQ, E)
    h_q = _layernorm_f32(x_q, ln1_g[...], ln1_b[...]).astype(bf16)

    # Head-batched Q projection.  wq is (H, hd, E) with 1/sqrt(hd) pre-folded
    # (bq likewise); leading batch dim + minor contraction -> single batched
    # MXU dot, no head split of the activations.
    hq_b = jnp.broadcast_to(h_q, (n_heads, q_tile, E))             # bf16
    qh = jnp.einsum('hqe,hde->hqd', hq_b, wq[...],
                    preferred_element_type=jnp.float32) + bq[...]  # (H, TQ, hd)

    s = jnp.einsum('hqd,hkd->hqk', qh.astype(bf16), k_cache[...],
                   preferred_element_type=jnp.float32)             # (H, TQ, L)
    # TODO(synk): attn_mask=None path only; an additive mask would be added to
    # `s` here.  For very long L, switch to key-tile streaming + online
    # softmax so (H, TQ, L) never materializes (v7x 64 MiB VMEM).
    s = s - jnp.max(s, axis=-1, keepdims=True)
    p = jnp.exp(s)
    denom = jnp.sum(p, axis=-1, keepdims=True)                     # (H, TQ, 1)
    o = jnp.einsum('hqk,hkd->hqd', p.astype(bf16), v_cache[...],
                   preferred_element_type=jnp.float32)             # (H, TQ, hd)
    o = o * pl.reciprocal(denom, approx=True)   # deferred softmax normalization

    # Output projection with the head merge folded in: per-head matmul against
    # w_out laid out (H, E, hd), then sum over heads -- no (TQ, E) concat.
    attn = jnp.sum(
        jnp.einsum('hqd,hed->hqe', o.astype(bf16), w_out[...],
                   preferred_element_type=jnp.float32), axis=0) + b_out[...]
    x1 = x_q + attn                                                # residual 1

    # ---- MLP branch: mlp(norm_2(x)) -----------------------------------------
    h2 = _layernorm_f32(x1, ln2_g[...], ln2_b[...])
    # fp32 elementwise GELU keeps v5e (no bf16 VPU/EUP) happy.
    y = _gelu_tanh(_matmul_bf16(h2, w_fc) + b_fc[...])             # (TQ, 3E)
    z = _matmul_bf16(y, w_proj) + b_proj[...]                      # (TQ, E)

    o_ref[0] = (x1 + z).astype(o_ref.dtype)                        # residual 2


# ---------------------------------------------------------------- wrapper ---
def transform_layer(x_nle, params, n_heads, *, q_tile=128,
                    single_buffer_weights=True):
    """Pre-norm transformer block.  x_nle: (batch N, seq L, d_model E)."""
    (ln1_g, ln1_b, w_in, b_in, w_out, b_out,
     ln2_g, ln2_b, w_fc, b_fc, w_proj, b_proj) = params
    N, L, E = x_nle.shape
    assert E % n_heads == 0
    hd = E // n_heads

    # query tiling: one (TQ, E) output slab per grid step
    tq = L if L <= q_tile else q_tile
    assert L % tq == 0, "sequence length must be a multiple of the query tile"
    nq = L // tq

    bf16, f32 = jnp.bfloat16, jnp.float32
    scale = 1.0 / math.sqrt(hd)

    # Split the fused in_proj; fold the 1/sqrt(hd) query scale into Wq AND bq,
    # then cast MXU weights to bf16 once (halves weight DMA + resident VMEM).
    w_in3 = w_in.reshape(3, E, E)
    b_in3 = b_in.reshape(3, E).astype(f32)
    wq_w = (w_in3[0] * scale).reshape(n_heads, hd, E).astype(bf16)   # (H, hd, E)
    bq_b = (b_in3[0] * scale).reshape(n_heads, 1, hd)                # (H, 1, hd)
    wk_w = w_in3[1].astype(bf16)                                     # (E, E)
    wv_w = w_in3[2].astype(bf16)
    bk_b = b_in3[1].reshape(1, E)
    bv_b = b_in3[2].reshape(1, E)
    # out_proj laid out (H, E, hd) so the head merge folds into the matmul.
    w_out_w = w_out.reshape(E, n_heads, hd).transpose(1, 0, 2).astype(bf16)
    w_fc_w = w_fc.astype(bf16)
    w_proj_w = w_proj.astype(bf16)

    weight_kwargs = (dict(pipeline_mode=pl.Buffered(1))
                     if single_buffer_weights else {})

    def fixed(shape):          # whole-array block, constant across the grid
        nd = len(shape)
        return pl.BlockSpec(shape, lambda b, q: (0,) * nd, **weight_kwargs)

    in_specs = [
        # full sequence, fetched once per batch element (index map constant
        # along the inner q axis); query tile is sliced in-kernel with pl.ds.
        pl.BlockSpec((1, L, E), lambda b, q: (b, 0, 0)),
        fixed((1, E)), fixed((1, E)),                       # norm_1 g/b
        fixed((n_heads, hd, E)), fixed((n_heads, 1, hd)),   # Wq, bq (scaled)
        fixed((E, E)), fixed((1, E)),                       # Wk, bk
        fixed((E, E)), fixed((1, E)),                       # Wv, bv
        fixed((n_heads, E, hd)), fixed((1, E)),             # out_proj W/b
        fixed((1, E)), fixed((1, E)),                       # norm_2 g/b
        fixed((3 * E, E)), fixed((1, 3 * E)),               # mlp c_fc W/b
        fixed((E, 3 * E)), fixed((1, E)),                   # mlp c_proj W/b
    ]

    # VMEM budget: double-buffered streamed blocks, (single|double)-buffered
    # constants, bf16 K/V caches, live activations incl. bf16 copies; x2
    # margin; capped at 56 MiB (v7x headroom; v5e/v6e have 128 MiB physical).
    wbuf = 1 if single_buffer_weights else 2
    weight_bytes = wbuf * (2 * 10 * E * E + 4 * 12 * E)
    stream_bytes = 2 * 4 * (L * E + tq * E)
    kv_bytes = 2 * 2 * L * E
    act_bytes = int(4 * (3 * L * E + 9 * tq * E + 4.5 * tq * 3 * E
                         + 2.5 * n_heads * tq * L + n_heads * tq * E)
                    + 2 * (n_heads + 2) * tq * E)
    vmem_limit = int(min(56 * 2 ** 20,
                         max(32 * 2 ** 20,
                             2 * (weight_bytes + stream_bytes
                                  + kv_bytes + act_bytes))))

    return pl.pallas_call(
        functools.partial(transform_layer_kernel, n_heads=n_heads, q_tile=tq),
        out_shape=jax.ShapeDtypeStruct((N, L, E), x_nle.dtype),
        grid_spec=pltpu.PrefetchScalarGridSpec(
            num_scalar_prefetch=0,
            grid=(N, nq),
            in_specs=in_specs,
            out_specs=pl.BlockSpec((1, tq, E), lambda b, q: (b, q, 0)),
            scratch_shapes=[pltpu.VMEM((n_heads, L, hd), bf16),   # K cache
                            pltpu.VMEM((n_heads, L, hd), bf16)],  # V cache
        ),
        compiler_params=pltpu.CompilerParams(
            # batch axis "parallel" (megacore / v7x dual-TC split over batch);
            # query-tile axis "arbitrary" so the per-batch K/V cache is legal.
            dimension_semantics=("parallel", "arbitrary"),
            vmem_limit_bytes=vmem_limit),
    )(x_nle,
      ln1_g, ln1_b,
      wq_w, bq_b, wk_w, bk_b, wv_w, bv_b, w_out_w, b_out,
      ln2_g, ln2_b,
      w_fc_w, b_fc, w_proj_w, b_proj)


# --------------------------------------------------------- pure-JAX check ---
def _reference(x, params, n_heads):
    (ln1_g, ln1_b, w_in, b_in, w_out, b_out,
     ln2_g, ln2_b, w_fc, b_fc, w_proj, b_proj) = params
    N, L, E = x.shape
    hd = E // n_heads

    def ln(t, g, b):
        mu = t.mean(-1, keepdims=True)
        var = ((t - mu) ** 2).mean(-1, keepdims=True)
        return (t - mu) * jax.lax.rsqrt(var + 1e-5) * g + b

    h = ln(x, ln1_g, ln1_b)
    qkv = h @ w_in.T + b_in
    q, k, v = qkv[..., :E], qkv[..., E:2 * E], qkv[..., 2 * E:]
    q = q / math.sqrt(hd)

    def heads(t):
        return t.reshape(N, L, n_heads, hd).transpose(0, 2, 1, 3)

    qh, kh, vh = heads(q), heads(k), heads(v)
    p = jax.nn.softmax(jnp.einsum('nhqd,nhkd->nhqk', qh, kh), axis=-1)
    o = jnp.einsum('nhqk,nhkd->nhqd', p, vh)
    o = o.transpose(0, 2, 1, 3).reshape(N, L, E)
    x1 = x + (o @ w_out.T + b_out)
    h2 = ln(x1, ln2_g, ln2_b)
    y = jax.nn.gelu(h2 @ w_fc.T + b_fc, approximate=False)
    return x1 + (y @ w_proj.T + b_proj)


# ------------------------------------------------------------------- main ---
if __name__ == "__main__":
    N, L, E, H = 2, 8, 128, 4          # batch, seq, d_model, heads (batch-first)
    key = jax.random.PRNGKey(0)
    ks = jax.random.split(key, 9)

    def nrm(k, shape, scale=0.05):
        return (scale * jax.random.normal(k, shape)).astype(jnp.float32)

    x = nrm(ks[0], (N, L, E), scale=1.0)

    params = [
        jnp.ones((1, E), jnp.float32), jnp.zeros((1, E), jnp.float32),  # norm_1
        nrm(ks[1], (3 * E, E)), nrm(ks[2], (1, 3 * E)),                 # in_proj
        nrm(ks[3], (E, E)), nrm(ks[4], (1, E)),                         # out_proj
        jnp.ones((1, E), jnp.float32), jnp.zeros((1, E), jnp.float32),  # norm_2
        nrm(ks[5], (3 * E, E)), nrm(ks[6], (1, 3 * E)),                 # mlp c_fc
        nrm(ks[7], (E, 3 * E)), nrm(ks[8], (1, E)),                     # mlp c_proj
    ]

    def _check(out):
        assert out.shape == (N, L, E) and out.dtype == jnp.float32
        ref = _reference(x, params, H)
        err = float(jnp.max(jnp.abs(out - ref)))
        assert err < 5e-2, f"kernel deviates from reference: max abs err {err}"

    try:
        out = transform_layer(x, params, H, single_buffer_weights=True)
        jax.block_until_ready(out)
        _check(out)
    except Exception:
        # TODO(synk): pl.Buffered(1) single-buffering unavailable on this jax
        # version; fall back to default double-buffered constant blocks.
        out = transform_layer(x, params, H, single_buffer_weights=False)
        jax.block_until_ready(out)
        _check(out)

    print("KERNEL_OK")
</pallas_src>

<mosaic_0001>
module attributes {stable_mosaic.version = 11 : i64} {
  func.func @transform_layer_kernel(%arg0: i32, %arg1: i32, %arg2: memref<1x8x128xf32, #tpu.memory_space<vmem>>, %arg3: memref<1x128xf32, #tpu.memory_space<vmem>>, %arg4: memref<1x128xf32, #tpu.memory_space<vmem>>, %arg5: memref<4x32x128xbf16, #tpu.memory_space<vmem>>, %arg6: memref<4x1x32xf32, #tpu.memory_space<vmem>>, %arg7: memref<128x128xbf16, #tpu.memory_space<vmem>>, %arg8: memref<1x128xf32, #tpu.memory_space<vmem>>, %arg9: memref<128x128xbf16, #tpu.memory_space<vmem>>, %arg10: memref<1x128xf32, #tpu.memory_space<vmem>>, %arg11: memref<4x128x32xbf16, #tpu.memory_space<vmem>>, %arg12: memref<1x128xf32, #tpu.memory_space<vmem>>, %arg13: memref<1x128xf32, #tpu.memory_space<vmem>>, %arg14: memref<1x128xf32, #tpu.memory_space<vmem>>, %arg15: memref<384x128xbf16, #tpu.memory_space<vmem>>, %arg16: memref<1x384xf32, #tpu.memory_space<vmem>>, %arg17: memref<128x384xbf16, #tpu.memory_space<vmem>>, %arg18: memref<1x128xf32, #tpu.memory_space<vmem>>, %arg19: memref<1x8x128xf32, #tpu.memory_space<vmem>>, %arg20: memref<4x8x32xbf16, #tpu.memory_space<vmem>>, %arg21: memref<4x8x32xbf16, #tpu.memory_space<vmem>>) attributes {dimension_semantics = [#tpu.dimension_semantics<parallel>, #tpu.dimension_semantics<arbitrary>], iteration_bounds = array<i64: 2, 1>, scalar_prefetch = 0 : i64, scratch_operands = 2 : i64, tpu.core_type = #tpu.core_type<tc>, window_params = [{transform_indices = @transform_0, window_bounds = array<i64: 1, 8, 128>}, {pipeline_mode = #tpu.pipeline_mode<synchronous>, transform_indices = @transform_1, window_bounds = array<i64: 1, 128>}, {pipeline_mode = #tpu.pipeline_mode<synchronous>, transform_indices = @transform_2, window_bounds = array<i64: 1, 128>}, {pipeline_mode = #tpu.pipeline_mode<synchronous>, transform_indices = @transform_3, window_bounds = array<i64: 4, 32, 128>}, {pipeline_mode = #tpu.pipeline_mode<synchronous>, transform_indices = @transform_4, window_bounds = array<i64: 4, 1, 32>}, {pipeline_mode = #tpu.pipeline_mode<synchronous>, transform_indices = @transform_5, window_bounds = array<i64: 128, 128>}, {pipeline_mode = #tpu.pipeline_mode<synchronous>, transform_indices = @transform_6, window_bounds = array<i64: 1, 128>}, {pipeline_mode = #tpu.pipeline_mode<synchronous>, transform_indices = @transform_7, window_bounds = array<i64: 128, 128>}, {pipeline_mode = #tpu.pipeline_mode<synchronous>, transform_indices = @transform_8, window_bounds = array<i64: 1, 128>}, {pipeline_mode = #tpu.pipeline_mode<synchronous>, transform_indices = @transform_9, window_bounds = array<i64: 4, 128, 32>}, {pipeline_mode = #tpu.pipeline_mode<synchronous>, transform_indices = @transform_10, window_bounds = array<i64: 1, 128>}, {pipeline_mode = #tpu.pipeline_mode<synchronous>, transform_indices = @transform_11, window_bounds = array<i64: 1, 128>}, {pipeline_mode = #tpu.pipeline_mode<synchronous>, transform_indices = @transform_12, window_bounds = array<i64: 1, 128>}, {pipeline_mode = #tpu.pipeline_mode<synchronous>, transform_indices = @transform_13, window_bounds = array<i64: 384, 128>}, {pipeline_mode = #tpu.pipeline_mode<synchronous>, transform_indices = @transform_14, window_bounds = array<i64: 1, 384>}, {pipeline_mode = #tpu.pipeline_mode<synchronous>, transform_indices = @transform_15, window_bounds = array<i64: 128, 384>}, {pipeline_mode = #tpu.pipeline_mode<synchronous>, transform_indices = @transform_16, window_bounds = array<i64: 1, 128>}, {transform_indices = @transform_17, window_bounds = array<i64: 1, 8, 128>}]} {
    %c0_i32 = arith.constant 0 : i32
    %0 = arith.cmpi eq, %arg1, %c0_i32 : i32
    %1 = arith.extui %0 : i1 to i32
    %c0_i32_0 = arith.constant 0 : i32
    %2 = arith.cmpi ne, %1, %c0_i32_0 : i32
    scf.if %2 {
      %c0_60 = arith.constant 0 : index
      %c0_61 = arith.constant 0 : index
      %c0_62 = arith.constant 0 : index
      %113 = vector.load %arg2[%c0_60, %c0_61, %c0_62] : memref<1x8x128xf32, #tpu.memory_space<vmem>>, vector<1x8x128xf32>
      %114 = vector.shape_cast %113 : vector<1x8x128xf32> to vector<8x128xf32>
      %c0_63 = arith.constant 0 : index
      %c0_64 = arith.constant 0 : index
      %115 = vector.load %arg3[%c0_63, %c0_64] : memref<1x128xf32, #tpu.memory_space<vmem>>, vector<1x128xf32>
      %c0_65 = arith.constant 0 : index
      %c0_66 = arith.constant 0 : index
      %116 = vector.load %arg4[%c0_65, %c0_66] : memref<1x128xf32, #tpu.memory_space<vmem>>, vector<1x128xf32>
      %cst_67 = arith.constant dense<0.000000e+00> : vector<8xf32>
      %117 = vector.multi_reduction <add>, %114, %cst_67 [1] : vector<8x128xf32> to vector<8xf32>
      %118 = vector.shape_cast %117 : vector<8xf32> to vector<8x1xf32>
      %cst_68 = arith.constant 1.280000e+02 : f32
      %119 = vector.broadcast %cst_68 : f32 to vector<8x1xf32>
      %120 = arith.divf %118, %119 : vector<8x1xf32>
      %121 = vector.broadcast %120 : vector<8x1xf32> to vector<8x128xf32>
      %122 = arith.subf %114, %121 : vector<8x128xf32>
      %123 = arith.mulf %122, %122 : vector<8x128xf32>
      %cst_69 = arith.constant dense<0.000000e+00> : vector<8xf32>
      %124 = vector.multi_reduction <add>, %123, %cst_69 [1] : vector<8x128xf32> to vector<8xf32>
      %125 = vector.shape_cast %124 : vector<8xf32> to vector<8x1xf32>
      %cst_70 = arith.constant 1.280000e+02 : f32
      %126 = vector.broadcast %cst_70 : f32 to vector<8x1xf32>
      %127 = arith.divf %125, %126 : vector<8x1xf32>
      %cst_71 = arith.constant 9.99999974E-6 : f32
      %128 = vector.broadcast %cst_71 : f32 to vector<8x1xf32>
      %129 = arith.addf %127, %128 : vector<8x1xf32>
      %130 = math.rsqrt %129 : vector<8x1xf32>
      %131 = vector.broadcast %130 : vector<8x1xf32> to vector<8x128xf32>
      %132 = arith.mulf %122, %131 : vector<8x128xf32>
      %133 = vector.broadcast %115 : vector<1x128xf32> to vector<8x128xf32>
      %134 = arith.mulf %132, %133 : vector<8x128xf32>
      %135 = vector.broadcast %116 : vector<1x128xf32> to vector<8x128xf32>
      %136 = arith.addf %134, %135 : vector<8x128xf32>
      %137 = arith.truncf %136 : vector<8x128xf32> to vector<8x128xbf16>
      %c0_72 = arith.constant 0 : index
      %c0_73 = arith.constant 0 : index
      %138 = vector.load %arg7[%c0_72, %c0_73] : memref<128x128xbf16, #tpu.memory_space<vmem>>, vector<128x128xbf16>
      %cst_74 = arith.constant dense<0.000000e+00> : vector<8x128xf32>
      %139 = tpu.matmul %137, %138, %cst_74 {dimension_numbers = #tpu.dot_dimension_numbers<[1], [1], [0], [0], [0, 0, 1, 0], [], []>} : vector<8x128xbf16>, vector<128x128xbf16>, vector<8x128xf32> -> vector<8x128xf32>
      %c0_75 = arith.constant 0 : index
      %c0_76 = arith.constant 0 : index
      %140 = vector.load %arg8[%c0_75, %c0_76] : memref<1x128xf32, #tpu.memory_space<vmem>>, vector<1x128xf32>
      %141 = vector.broadcast %140 : vector<1x128xf32> to vector<8x128xf32>
      %142 = arith.addf %139, %141 : vector<8x128xf32>
      %143 = arith.truncf %136 : vector<8x128xf32> to vector<8x128xbf16>
      %c0_77 = arith.constant 0 : index
      %c0_78 = arith.constant 0 : index
      %144 = vector.load %arg9[%c0_77, %c0_78] : memref<128x128xbf16, #tpu.memory_space<vmem>>, vector<128x128xbf16>
      %cst_79 = arith.constant dense<0.000000e+00> : vector<8x128xf32>
      %145 = tpu.matmul %143, %144, %cst_79 {dimension_numbers = #tpu.dot_dimension_numbers<[1], [1], [0], [0], [0, 0, 1, 0], [], []>} : vector<8x128xbf16>, vector<128x128xbf16>, vector<8x128xf32> -> vector<8x128xf32>
      %c0_80 = arith.constant 0 : index
      %c0_81 = arith.constant 0 : index
      %146 = vector.load %arg10[%c0_80, %c0_81] : memref<1x128xf32, #tpu.memory_space<vmem>>, vector<1x128xf32>
      %147 = vector.broadcast %146 : vector<1x128xf32> to vector<8x128xf32>
      %148 = arith.addf %145, %147 : vector<8x128xf32>
      %149 = vector.extract_strided_slice %142 {offsets = [0, 0], sizes = [8, 32], strides = [1, 1]} : vector<8x128xf32> to vector<8x32xf32>
      %150 = vector.extract_strided_slice %142 {offsets = [0, 32], sizes = [8, 32], strides = [1, 1]} : vector<8x128xf32> to vector<8x32xf32>
      %151 = vector.extract_strided_slice %142 {offsets = [0, 64], sizes = [8, 32], strides = [1, 1]} : vector<8x128xf32> to vector<8x32xf32>
      %152 = vector.extract_strided_slice %142 {offsets = [0, 96], sizes = [8, 32], strides = [1, 1]} : vector<8x128xf32> to vector<8x32xf32>
      %153 = vector.shape_cast %149 : vector<8x32xf32> to vector<1x8x32xf32>
      %154 = vector.shape_cast %150 : vector<8x32xf32> to vector<1x8x32xf32>
      %155 = vector.shape_cast %151 : vector<8x32xf32> to vector<1x8x32xf32>
      %156 = vector.shape_cast %152 : vector<8x32xf32> to vector<1x8x32xf32>
      %157 = tpu.concatenate %153, %154, %155, %156 in 0 : vector<1x8x32xf32>, vector<1x8x32xf32>, vector<1x8x32xf32>, vector<1x8x32xf32> -> vector<4x8x32xf32>
      %158 = arith.truncf %157 : vector<4x8x32xf32> to vector<4x8x32xbf16>
      %c0_82 = arith.constant 0 : index
      %c0_83 = arith.constant 0 : index
      %c0_84 = arith.constant 0 : index
      %159 = vector.load %arg20[%c0_82, %c0_83, %c0_84] : memref<4x8x32xbf16, #tpu.memory_space<vmem>>, vector<4x8x32xbf16>
      tpu.vector_store %arg20[%c0_82, %c0_83, %c0_84], %158 {strides = array<i32>} : memref<4x8x32xbf16, #tpu.memory_space<vmem>>, vector<4x8x32xbf16>,
      %160 = vector.extract_strided_slice %148 {offsets = [0, 0], sizes = [8, 32], strides = [1, 1]} : vector<8x128xf32> to vector<8x32xf32>
      %161 = vector.extract_strided_slice %148 {offsets = [0, 32], sizes = [8, 32], strides = [1, 1]} : vector<8x128xf32> to vector<8x32xf32>
      %162 = vector.extract_strided_slice %148 {offsets = [0, 64], sizes = [8, 32], strides = [1, 1]} : vector<8x128xf32> to vector<8x32xf32>
      %163 = vector.extract_strided_slice %148 {offsets = [0, 96], sizes = [8, 32], strides = [1, 1]} : vector<8x128xf32> to vector<8x32xf32>
      %164 = vector.shape_cast %160 : vector<8x32xf32> to vector<1x8x32xf32>
      %165 = vector.shape_cast %161 : vector<8x32xf32> to vector<1x8x32xf32>
      %166 = vector.shape_cast %162 : vector<8x32xf32> to vector<1x8x32xf32>
      %167 = vector.shape_cast %163 : vector<8x32xf32> to vector<1x8x32xf32>
      %168 = tpu.concatenate %164, %165, %166, %167 in 0 : vector<1x8x32xf32>, vector<1x8x32xf32>, vector<1x8x32xf32>, vector<1x8x32xf32> -> vector<4x8x32xf32>
      %169 = arith.truncf %168 : vector<4x8x32xf32> to vector<4x8x32xbf16>
      %c0_85 = arith.constant 0 : index
      %c0_86 = arith.constant 0 : index
      %c0_87 = arith.constant 0 : index
      %170 = vector.load %arg21[%c0_85, %c0_86, %c0_87] : memref<4x8x32xbf16, #tpu.memory_space<vmem>>, vector<4x8x32xbf16>
      tpu.vector_store %arg21[%c0_85, %c0_86, %c0_87], %169 {strides = array<i32>} : memref<4x8x32xbf16, #tpu.memory_space<vmem>>, vector<4x8x32xbf16>,
    } else {
    }
    %c8_i32 = arith.constant 8 : i32
    %3 = arith.muli %arg1, %c8_i32 : i32
    %4 = tpu.assume_multiple %3, 8 : i32
    %c0 = arith.constant 0 : index
    %5 = arith.index_cast %4 : i32 to index
    %c0_1 = arith.constant 0 : index
    %6 = vector.load %arg2[%c0, %5, %c0_1] : memref<1x8x128xf32, #tpu.memory_space<vmem>>, vector<1x8x128xf32>
    %7 = vector.shape_cast %6 : vector<1x8x128xf32> to vector<8x128xf32>
    %c0_2 = arith.constant 0 : index
    %c0_3 = arith.constant 0 : index
    %8 = vector.load %arg3[%c0_2, %c0_3] : memref<1x128xf32, #tpu.memory_space<vmem>>, vector<1x128xf32>
    %c0_4 = arith.constant 0 : index
    %c0_5 = arith.constant 0 : index
    %9 = vector.load %arg4[%c0_4, %c0_5] : memref<1x128xf32, #tpu.memory_space<vmem>>, vector<1x128xf32>
    %cst = arith.constant dense<0.000000e+00> : vector<8xf32>
    %10 = vector.multi_reduction <add>, %7, %cst [1] : vector<8x128xf32> to vector<8xf32>
    %11 = vector.shape_cast %10 : vector<8xf32> to vector<8x1xf32>
    %cst_6 = arith.constant 1.280000e+02 : f32
    %12 = vector.broadcast %cst_6 : f32 to vector<8x1xf32>
    %13 = arith.divf %11, %12 : vector<8x1xf32>
    %14 = vector.broadcast %13 : vector<8x1xf32> to vector<8x128xf32>
    %15 = arith.subf %7, %14 : vector<8x128xf32>
    %16 = arith.mulf %15, %15 : vector<8x128xf32>
    %cst_7 = arith.constant dense<0.000000e+00> : vector<8xf32>
    %17 = vector.multi_reduction <add>, %16, %cst_7 [1] : vector<8x128xf32> to vector<8xf32>
    %18 = vector.shape_cast %17 : vector<8xf32> to vector<8x1xf32>
    %cst_8 = arith.constant 1.280000e+02 : f32
    %19 = vector.broadcast %cst_8 : f32 to vector<8x1xf32>
    %20 = arith.divf %18, %19 : vector<8x1xf32>
    %cst_9 = arith.constant 9.99999974E-6 : f32
    %21 = vector.broadcast %cst_9 : f32 to vector<8x1xf32>
    %22 = arith.addf %20, %21 : vector<8x1xf32>
    %23 = math.rsqrt %22 : vector<8x1xf32>
    %24 = vector.broadcast %23 : vector<8x1xf32> to vector<8x128xf32>
    %25 = arith.mulf %15, %24 : vector<8x128xf32>
    %26 = vector.broadcast %8 : vector<1x128xf32> to vector<8x128xf32>
    %27 = arith.mulf %25, %26 : vector<8x128xf32>
    %28 = vector.broadcast %9 : vector<1x128xf32> to vector<8x128xf32>
    %29 = arith.addf %27, %28 : vector<8x128xf32>
    %30 = arith.truncf %29 : vector<8x128xf32> to vector<8x128xbf16>
    %31 = vector.shape_cast %30 : vector<8x128xbf16> to vector<1x8x128xbf16>
    %32 = vector.broadcast %31 : vector<1x8x128xbf16> to vector<4x8x128xbf16>
    %c0_10 = arith.constant 0 : index
    %c0_11 = arith.constant 0 : index
    %c0_12 = arith.constant 0 : index
    %33 = vector.load %arg5[%c0_10, %c0_11, %c0_12] : memref<4x32x128xbf16, #tpu.memory_space<vmem>>, vector<4x32x128xbf16>
    "tpu.trace_start"() <{level = 10 : i32, message = "hqe,hde->hqd"}> : () -> ()
    %cst_13 = arith.constant dense<0.000000e+00> : vector<4x8x32xf32>
    %34 = tpu.matmul %32, %33, %cst_13 {dimension_numbers = #tpu.dot_dimension_numbers<[2], [2], [1], [1], [0, 0, 0, 1, 1, 1], [0], [0]>} : vector<4x8x128xbf16>, vector<4x32x128xbf16>, vector<4x8x32xf32> -> vector<4x8x32xf32>
    "tpu.trace_stop"() : () -> ()
    %c0_14 = arith.constant 0 : index
    %c0_15 = arith.constant 0 : index
    %c0_16 = arith.constant 0 : index
    %35 = vector.load %arg6[%c0_14, %c0_15, %c0_16] : memref<4x1x32xf32, #tpu.memory_space<vmem>>, vector<4x1x32xf32>
    %36 = vector.broadcast %35 : vector<4x1x32xf32> to vector<4x8x32xf32>
    %37 = arith.addf %34, %36 : vector<4x8x32xf32>
    %38 = arith.truncf %37 : vector<4x8x32xf32> to vector<4x8x32xbf16>
    %c0_17 = arith.constant 0 : index
    %c0_18 = arith.constant 0 : index
    %c0_19 = arith.constant 0 : index
    %39 = vector.load %arg20[%c0_17, %c0_18, %c0_19] : memref<4x8x32xbf16, #tpu.memory_space<vmem>>, vector<4x8x32xbf16>
    "tpu.trace_start"() <{level = 10 : i32, message = "hqd,hkd->hqk"}> : () -> ()
    %cst_20 = arith.constant dense<0.000000e+00> : vector<4x8x8xf32>
    %40 = tpu.matmul %38, %39, %cst_20 {dimension_numbers = #tpu.dot_dimension_numbers<[2], [2], [1], [1], [0, 0, 0, 1, 1, 1], [0], [0]>} : vector<4x8x32xbf16>, vector<4x8x32xbf16>, vector<4x8x8xf32> -> vector<4x8x8xf32>
    "tpu.trace_stop"() : () -> ()
    %cst_21 = arith.constant dense<0xFF800000> : vector<4x8xf32>
    %41 = vector.multi_reduction <maximumf>, %40, %cst_21 [2] : vector<4x8x8xf32> to vector<4x8xf32>
    %42 = vector.shape_cast %41 : vector<4x8xf32> to vector<4x8x1xf32>
    %43 = vector.broadcast %42 : vector<4x8x1xf32> to vector<4x8x8xf32>
    %44 = arith.subf %40, %43 : vector<4x8x8xf32>
    %45 = math.exp %44 : vector<4x8x8xf32>
    %cst_22 = arith.constant dense<0.000000e+00> : vector<4x8xf32>
    %46 = vector.multi_reduction <add>, %45, %cst_22 [2] : vector<4x8x8xf32> to vector<4x8xf32>
    %47 = vector.shape_cast %46 : vector<4x8xf32> to vector<4x8x1xf32>
    %48 = arith.truncf %45 : vector<4x8x8xf32> to vector<4x8x8xbf16>
    %c0_23 = arith.constant 0 : index
    %c0_24 = arith.constant 0 : index
    %c0_25 = arith.constant 0 : index
    %49 = vector.load %arg21[%c0_23, %c0_24, %c0_25] : memref<4x8x32xbf16, #tpu.memory_space<vmem>>, vector<4x8x32xbf16>
    "tpu.trace_start"() <{level = 10 : i32, message = "hqk,hkd->hqd"}> : () -> ()
    %cst_26 = arith.constant dense<0.000000e+00> : vector<4x8x32xf32>
    %50 = tpu.matmul %48, %49, %cst_26 {dimension_numbers = #tpu.dot_dimension_numbers<[2], [1], [1], [2], [0, 0, 0, 1, 1, 2], [0], [0]>} : vector<4x8x8xbf16>, vector<4x8x32xbf16>, vector<4x8x32xf32> -> vector<4x8x32xf32>
    "tpu.trace_stop"() : () -> ()
    %51 = tpu.reciprocal %47 {approx = true} : vector<4x8x1xf32> -> vector<4x8x1xf32>
    %52 = vector.broadcast %51 : vector<4x8x1xf32> to vector<4x8x32xf32>
    %53 = arith.mulf %50, %52 : vector<4x8x32xf32>
    %54 = arith.truncf %53 : vector<4x8x32xf32> to vector<4x8x32xbf16>
    %c0_27 = arith.constant 0 : index
    %c0_28 = arith.constant 0 : index
    %c0_29 = arith.constant 0 : index
    %55 = vector.load %arg11[%c0_27, %c0_28, %c0_29] : memref<4x128x32xbf16, #tpu.memory_space<vmem>>, vector<4x128x32xbf16>
    "tpu.trace_start"() <{level = 10 : i32, message = "hqd,hed->hqe"}> : () -> ()
    %cst_30 = arith.constant dense<0.000000e+00> : vector<4x8x128xf32>
    %56 = tpu.matmul %54, %55, %cst_30 {dimension_numbers = #tpu.dot_dimension_numbers<[2], [2], [1], [1], [0, 0, 0, 1, 1, 1], [0], [0]>} : vector<4x8x32xbf16>, vector<4x128x32xbf16>, vector<4x8x128xf32> -> vector<4x8x128xf32>
    "tpu.trace_stop"() : () -> ()
    %cst_31 = arith.constant dense<0.000000e+00> : vector<8x128xf32>
    %57 = vector.multi_reduction <add>, %56, %cst_31 [0] : vector<4x8x128xf32> to vector<8x128xf32>
    %c0_32 = arith.constant 0 : index
    %c0_33 = arith.constant 0 : index
    %58 = vector.load %arg12[%c0_32, %c0_33] : memref<1x128xf32, #tpu.memory_space<vmem>>, vector<1x128xf32>
    %59 = vector.broadcast %58 : vector<1x128xf32> to vector<8x128xf32>
    %60 = arith.addf %57, %59 : vector<8x128xf32>
    %61 = arith.addf %7, %60 : vector<8x128xf32>
    %c0_34 = arith.constant 0 : index
    %c0_35 = arith.constant 0 : index
    %62 = vector.load %arg13[%c0_34, %c0_35] : memref<1x128xf32, #tpu.memory_space<vmem>>, vector<1x128xf32>
    %c0_36 = arith.constant 0 : index
    %c0_37 = arith.constant 0 : index
    %63 = vector.load %arg14[%c0_36, %c0_37] : memref<1x128xf32, #tpu.memory_space<vmem>>, vector<1x128xf32>
    %cst_38 = arith.constant dense<0.000000e+00> : vector<8xf32>
    %64 = vector.multi_reduction <add>, %61, %cst_38 [1] : vector<8x128xf32> to vector<8xf32>
    %65 = vector.shape_cast %64 : vector<8xf32> to vector<8x1xf32>
    %cst_39 = arith.constant 1.280000e+02 : f32
    %66 = vector.broadcast %cst_39 : f32 to vector<8x1xf32>
    %67 = arith.divf %65, %66 : vector<8x1xf32>
    %68 = vector.broadcast %67 : vector<8x1xf32> to vector<8x128xf32>
    %69 = arith.subf %61, %68 : vector<8x128xf32>
    %70 = arith.mulf %69, %69 : vector<8x128xf32>
    %cst_40 = arith.constant dense<0.000000e+00> : vector<8xf32>
    %71 = vector.multi_reduction <add>, %70, %cst_40 [1] : vector<8x128xf32> to vector<8xf32>
    %72 = vector.shape_cast %71 : vector<8xf32> to vector<8x1xf32>
    %cst_41 = arith.constant 1.280000e+02 : f32
    %73 = vector.broadcast %cst_41 : f32 to vector<8x1xf32>
    %74 = arith.divf %72, %73 : vector<8x1xf32>
    %cst_42 = arith.constant 9.99999974E-6 : f32
    %75 = vector.broadcast %cst_42 : f32 to vector<8x1xf32>
    %76 = arith.addf %74, %75 : vector<8x1xf32>
    %77 = math.rsqrt %76 : vector<8x1xf32>
    %78 = vector.broadcast %77 : vector<8x1xf32> to vector<8x128xf32>
    %79 = arith.mulf %69, %78 : vector<8x128xf32>
    %80 = vector.broadcast %62 : vector<1x128xf32> to vector<8x128xf32>
    %81 = arith.mulf %79, %80 : vector<8x128xf32>
    %82 = vector.broadcast %63 : vector<1x128xf32> to vector<8x128xf32>
    %83 = arith.addf %81, %82 : vector<8x128xf32>
    %84 = arith.truncf %83 : vector<8x128xf32> to vector<8x128xbf16>
    %c0_43 = arith.constant 0 : index
    %c0_44 = arith.constant 0 : index
    %85 = vector.load %arg15[%c0_43, %c0_44] : memref<384x128xbf16, #tpu.memory_space<vmem>>, vector<384x128xbf16>
    %cst_45 = arith.constant dense<0.000000e+00> : vector<8x384xf32>
    %86 = tpu.matmul %84, %85, %cst_45 {dimension_numbers = #tpu.dot_dimension_numbers<[1], [1], [0], [0], [0, 0, 1, 0], [], []>} : vector<8x128xbf16>, vector<384x128xbf16>, vector<8x384xf32> -> vector<8x384xf32>
    %c0_46 = arith.constant 0 : index
    %c0_47 = arith.constant 0 : index
    %87 = vector.load %arg16[%c0_46, %c0_47] : memref<1x384xf32, #tpu.memory_space<vmem>>, vector<1x384xf32>
    %88 = vector.broadcast %87 : vector<1x384xf32> to vector<8x384xf32>
    %89 = arith.addf %86, %88 : vector<8x384xf32>
    %cst_48 = arith.constant 5.000000e-01 : f32
    %90 = vector.broadcast %cst_48 : f32 to vector<8x384xf32>
    %91 = arith.mulf %90, %89 : vector<8x384xf32>
    %92 = arith.mulf %89, %89 : vector<8x384xf32>
    %93 = arith.mulf %92, %89 : vector<8x384xf32>
    %cst_49 = arith.constant 4.471500e-02 : f32
    %94 = vector.broadcast %cst_49 : f32 to vector<8x384xf32>
    %95 = arith.mulf %94, %93 : vector<8x384xf32>
    %96 = arith.addf %89, %95 : vector<8x384xf32>
    %cst_50 = arith.constant 0.797884583 : f32
    %97 = vector.broadcast %cst_50 : f32 to vector<8x384xf32>
    %98 = arith.mulf %97, %96 : vector<8x384xf32>
    %99 = math.tanh %98 : vector<8x384xf32>
    %cst_51 = arith.constant 1.000000e+00 : f32
    %100 = vector.broadcast %cst_51 : f32 to vector<8x384xf32>
    %101 = arith.addf %100, %99 : vector<8x384xf32>
    %102 = arith.mulf %91, %101 : vector<8x384xf32>
    %103 = arith.truncf %102 : vector<8x384xf32> to vector<8x384xbf16>
    %c0_52 = arith.constant 0 : index
    %c0_53 = arith.constant 0 : index
    %104 = vector.load %arg17[%c0_52, %c0_53] : memref<128x384xbf16, #tpu.memory_space<vmem>>, vector<128x384xbf16>
    %cst_54 = arith.constant dense<0.000000e+00> : vector<8x128xf32>
    %105 = tpu.matmul %103, %104, %cst_54 {dimension_numbers = #tpu.dot_dimension_numbers<[1], [1], [0], [0], [0, 0, 1, 0], [], []>} : vector<8x384xbf16>, vector<128x384xbf16>, vector<8x128xf32> -> vector<8x128xf32>
    %c0_55 = arith.constant 0 : index
    %c0_56 = arith.constant 0 : index
    %106 = vector.load %arg18[%c0_55, %c0_56] : memref<1x128xf32, #tpu.memory_space<vmem>>, vector<1x128xf32>
    %107 = vector.broadcast %106 : vector<1x128xf32> to vector<8x128xf32>
    %108 = arith.addf %105, %107 : vector<8x128xf32>
    %109 = arith.addf %61, %108 : vector<8x128xf32>
    %c0_57 = arith.constant 0 : index
    %c0_58 = arith.constant 0 : index
    %c0_59 = arith.constant 0 : index
    %110 = vector.load %arg19[%c0_57, %c0_58, %c0_59] : memref<1x8x128xf32, #tpu.memory_space<vmem>>, vector<1x8x128xf32>
    %111 = vector.shape_cast %110 : vector<1x8x128xf32> to vector<8x128xf32>
    %112 = vector.shape_cast %109 : vector<8x128xf32> to vector<1x8x128xf32>
    tpu.vector_store %arg19[%c0_57, %c0_58, %c0_59], %112 {strides = array<i32>} : memref<1x8x128xf32, #tpu.memory_space<vmem>>, vector<1x8x128xf32>,
    return
  }
  func.func @transform_0(%arg0: i32, %arg1: i32) -> (i32, i32, i32) {
    %c0_i32 = arith.constant 0 : i32
    %c0_i32_0 = arith.constant 0 : i32
    %c0_i32_1 = arith.constant 0 : i32
    return %arg0, %c0_i32, %c0_i32_0 : i32, i32, i32
  }
  func.func @transform_1(%arg0: i32, %arg1: i32) -> (i32, i32) {
    %c0_i32 = arith.constant 0 : i32
    %c0_i32_0 = arith.constant 0 : i32
    %c0_i32_1 = arith.constant 0 : i32
    return %c0_i32, %c0_i32_0 : i32, i32
  }
  func.func @transform_2(%arg0: i32, %arg1: i32) -> (i32, i32) {
    %c0_i32 = arith.constant 0 : i32
    %c0_i32_0 = arith.constant 0 : i32
    %c0_i32_1 = arith.constant 0 : i32
    return %c0_i32, %c0_i32_0 : i32, i32
  }
  func.func @transform_3(%arg0: i32, %arg1: i32) -> (i32, i32, i32) {
    %c0_i32 = arith.constant 0 : i32
    %c0_i32_0 = arith.constant 0 : i32
    %c0_i32_1 = arith.constant 0 : i32
    %c0_i32_2 = arith.constant 0 : i32
    return %c0_i32, %c0_i32_0, %c0_i32_1 : i32, i32, i32
  }
  func.func @transform_4(%arg0: i32, %arg1: i32) -> (i32, i32, i32) {
    %c0_i32 = arith.constant 0 : i32
    %c0_i32_0 = arith.constant 0 : i32
    %c0_i32_1 = arith.constant 0 : i32
    %c0_i32_2 = arith.constant 0 : i32
    return %c0_i32, %c0_i32_0, %c0_i32_1 : i32, i32, i32
  }
  func.func @transform_5(%arg0: i32, %arg1: i32) -> (i32, i32) {
    %c0_i32 = arith.constant 0 : i32
    %c0_i32_0 = arith.constant 0 : i32
    %c0_i32_1 = arith.constant 0 : i32
    return %c0_i32, %c0_i32_0 : i32, i32
  }
  func.func @transform_6(%arg0: i32, %arg1: i32) -> (i32, i32) {
    %c0_i32 = arith.constant 0 : i32
    %c0_i32_0 = arith.constant 0 : i32
    %c0_i32_1 = arith.constant 0 : i32
    return %c0_i32, %c0_i32_0 : i32, i32
  }
  func.func @transform_7(%arg0: i32, %arg1: i32) -> (i32, i32) {
    %c0_i32 = arith.constant 0 : i32
    %c0_i32_0 = arith.constant 0 : i32
    %c0_i32_1 = arith.constant 0 : i32
    return %c0_i32, %c0_i32_0 : i32, i32
  }
  func.func @transform_8(%arg0: i32, %arg1: i32) -> (i32, i32) {
    %c0_i32 = arith.constant 0 : i32
    %c0_i32_0 = arith.constant 0 : i32
    %c0_i32_1 = arith.constant 0 : i32
    return %c0_i32, %c0_i32_0 : i32, i32
  }
  func.func @transform_9(%arg0: i32, %arg1: i32) -> (i32, i32, i32) {
    %c0_i32 = arith.constant 0 : i32
    %c0_i32_0 = arith.constant 0 : i32
    %c0_i32_1 = arith.constant 0 : i32
    %c0_i32_2 = arith.constant 0 : i32
    return %c0_i32, %c0_i32_0, %c0_i32_1 : i32, i32, i32
  }
  func.func @transform_10(%arg0: i32, %arg1: i32) -> (i32, i32) {
    %c0_i32 = arith.constant 0 : i32
    %c0_i32_0 = arith.constant 0 : i32
    %c0_i32_1 = arith.constant 0 : i32
    return %c0_i32, %c0_i32_0 : i32, i32
  }
  func.func @transform_11(%arg0: i32, %arg1: i32) -> (i32, i32) {
    %c0_i32 = arith.constant 0 : i32
    %c0_i32_0 = arith.constant 0 : i32
    %c0_i32_1 = arith.constant 0 : i32
    return %c0_i32, %c0_i32_0 : i32, i32
  }
  func.func @transform_12(%arg0: i32, %arg1: i32) -> (i32, i32) {
    %c0_i32 = arith.constant 0 : i32
    %c0_i32_0 = arith.constant 0 : i32
    %c0_i32_1 = arith.constant 0 : i32
    return %c0_i32, %c0_i32_0 : i32, i32
  }
  func.func @transform_13(%arg0: i32, %arg1: i32) -> (i32, i32) {
    %c0_i32 = arith.constant 0 : i32
    %c0_i32_0 = arith.constant 0 : i32
    %c0_i32_1 = arith.constant 0 : i32
    return %c0_i32, %c0_i32_0 : i32, i32
  }
  func.func @transform_14(%arg0: i32, %arg1: i32) -> (i32, i32) {
    %c0_i32 = arith.constant 0 : i32
    %c0_i32_0 = arith.constant 0 : i32
    %c0_i32_1 = arith.constant 0 : i32
    return %c0_i32, %c0_i32_0 : i32, i32
  }
  func.func @transform_15(%arg0: i32, %arg1: i32) -> (i32, i32) {
    %c0_i32 = arith.constant 0 : i32
    %c0_i32_0 = arith.constant 0 : i32
    %c0_i32_1 = arith.constant 0 : i32
    return %c0_i32, %c0_i32_0 : i32, i32
  }
  func.func @transform_16(%arg0: i32, %arg1: i32) -> (i32, i32) {
    %c0_i32 = arith.constant 0 : i32
    %c0_i32_0 = arith.constant 0 : i32
    %c0_i32_1 = arith.constant 0 : i32
    return %c0_i32, %c0_i32_0 : i32, i32
  }
  func.func @transform_17(%arg0: i32, %arg1: i32) -> (i32, i32, i32) {
    %c0_i32 = arith.constant 0 : i32
    %c0_i32_0 = arith.constant 0 : i32
    return %arg0, %arg1, %c0_i32 : i32, i32, i32
  }
}

module attributes {stable_mosaic.version = 11 : i64} {
  func.func @transform_layer_kernel(%arg0: i32, %arg1: i32, %arg2: memref<1x8x128xf32, #tpu.memory_space<vmem>>, %arg3: memref<1x128xf32, #tpu.memory_space<vmem>>, %arg4: memref<1x128xf32, #tpu.memory_space<vmem>>, %arg5: memref<4x32x128xbf16, #tpu.memory_space<vmem>>, %arg6: memref<4x1x32xf32, #tpu.memory_space<vmem>>, %arg7: memref<128x128xbf16, #tpu.memory_space<vmem>>, %arg8: memref<1x128xf32, #tpu.memory_space<vmem>>, %arg9: memref<128x128xbf16, #tpu.memory_space<vmem>>, %arg10: memref<1x128xf32, #tpu.memory_space<vmem>>, %arg11: memref<4x128x32xbf16, #tpu.memory_space<vmem>>, %arg12: memref<1x128xf32, #tpu.memory_space<vmem>>, %arg13: memref<1x128xf32, #tpu.memory_space<vmem>>, %arg14: memref<1x128xf32, #tpu.memory_space<vmem>>, %arg15: memref<384x128xbf16, #tpu.memory_space<vmem>>, %arg16: memref<1x384xf32, #tpu.memory_space<vmem>>, %arg17: memref<128x384xbf16, #tpu.memory_space<vmem>>, %arg18: memref<1x128xf32, #tpu.memory_space<vmem>>, %arg19: memref<1x8x128xf32, #tpu.memory_space<vmem>>, %arg20: memref<4x8x32xbf16, #tpu.memory_space<vmem>>, %arg21: memref<4x8x32xbf16, #tpu.memory_space<vmem>>) attributes {dimension_semantics = [#tpu.dimension_semantics<parallel>, #tpu.dimension_semantics<arbitrary>], iteration_bounds = array<i64: 2, 1>, scalar_prefetch = 0 : i64, scratch_operands = 2 : i64, tpu.core_type = #tpu.core_type<tc>, window_params = [{transform_indices = @transform_0, window_bounds = array<i64: 1, 8, 128>}, {pipeline_mode = #tpu.pipeline_mode<synchronous>, transform_indices = @transform_1, window_bounds = array<i64: 1, 128>}, {pipeline_mode = #tpu.pipeline_mode<synchronous>, transform_indices = @transform_2, window_bounds = array<i64: 1, 128>}, {pipeline_mode = #tpu.pipeline_mode<synchronous>, transform_indices = @transform_3, window_bounds = array<i64: 4, 32, 128>}, {pipeline_mode = #tpu.pipeline_mode<synchronous>, transform_indices = @transform_4, window_bounds = array<i64: 4, 1, 32>}, {pipeline_mode = #tpu.pipeline_mode<synchronous>, transform_indices = @transform_5, window_bounds = array<i64: 128, 128>}, {pipeline_mode = #tpu.pipeline_mode<synchronous>, transform_indices = @transform_6, window_bounds = array<i64: 1, 128>}, {pipeline_mode = #tpu.pipeline_mode<synchronous>, transform_indices = @transform_7, window_bounds = array<i64: 128, 128>}, {pipeline_mode = #tpu.pipeline_mode<synchronous>, transform_indices = @transform_8, window_bounds = array<i64: 1, 128>}, {pipeline_mode = #tpu.pipeline_mode<synchronous>, transform_indices = @transform_9, window_bounds = array<i64: 4, 128, 32>}, {pipeline_mode = #tpu.pipeline_mode<synchronous>, transform_indices = @transform_10, window_bounds = array<i64: 1, 128>}, {pipeline_mode = #tpu.pipeline_mode<synchronous>, transform_indices = @transform_11, window_bounds = array<i64: 1, 128>}, {pipeline_mode = #tpu.pipeline_mode<synchronous>, transform_indices = @transform_12, window_bounds = array<i64: 1, 128>}, {pipeline_mode = #tpu.pipeline_mode<synchronous>, transform_indices = @transform_13, window_bounds = array<i64: 384, 128>}, {pipeline_mode = #tpu.pipeline_mode<synchronous>, transform_indices = @transform_14, window_bounds = array<i64: 1, 384>}, {pipeline_mode = #tpu.pipeline_mode<synchronous>, transform_indices = @transform_15, window_bounds = array<i64: 128, 384>}, {pipeline_mode = #tpu.pipeline_mode<synchronous>, transform_indices = @transform_16, window_bounds = array<i64: 1, 128>}, {transform_indices = @transform_17, window_bounds = array<i64: 1, 8, 128>}]} {
    %c0_i32 = arith.constant 0 : i32
    %0 = arith.cmpi eq, %arg1, %c0_i32 : i32
    %1 = arith.extui %0 : i1 to i32
    %c0_i32_0 = arith.constant 0 : i32
    %2 = arith.cmpi ne, %1, %c0_i32_0 : i32
    scf.if %2 {
      %c0_60 = arith.constant 0 : index
      %c0_61 = arith.constant 0 : index
      %c0_62 = arith.constant 0 : index
      %113 = vector.load %arg2[%c0_60, %c0_61, %c0_62] : memref<1x8x128xf32, #tpu.memory_space<vmem>>, vector<1x8x128xf32>
      %114 = vector.shape_cast %113 : vector<1x8x128xf32> to vector<8x128xf32>
      %c0_63 = arith.constant 0 : index
      %c0_64 = arith.constant 0 : index
      %115 = vector.load %arg3[%c0_63, %c0_64] : memref<1x128xf32, #tpu.memory_space<vmem>>, vector<1x128xf32>
      %c0_65 = arith.constant 0 : index
      %c0_66 = arith.constant 0 : index
      %116 = vector.load %arg4[%c0_65, %c0_66] : memref<1x128xf32, #tpu.memory_space<vmem>>, vector<1x128xf32>
      %cst_67 = arith.constant dense<0.000000e+00> : vector<8xf32>
      %117 = vector.multi_reduction <add>, %114, %cst_67 [1] : vector<8x128xf32> to vector<8xf32>
      %118 = vector.shape_cast %117 : vector<8xf32> to vector<8x1xf32>
      %cst_68 = arith.constant 1.280000e+02 : f32
      %119 = vector.broadcast %cst_68 : f32 to vector<8x1xf32>
      %120 = arith.divf %118, %119 : vector<8x1xf32>
      %121 = vector.broadcast %120 : vector<8x1xf32> to vector<8x128xf32>
      %122 = arith.subf %114, %121 : vector<8x128xf32>
      %123 = arith.mulf %122, %122 : vector<8x128xf32>
      %cst_69 = arith.constant dense<0.000000e+00> : vector<8xf32>
      %124 = vector.multi_reduction <add>, %123, %cst_69 [1] : vector<8x128xf32> to vector<8xf32>
      %125 = vector.shape_cast %124 : vector<8xf32> to vector<8x1xf32>
      %cst_70 = arith.constant 1.280000e+02 : f32
      %126 = vector.broadcast %cst_70 : f32 to vector<8x1xf32>
      %127 = arith.divf %125, %126 : vector<8x1xf32>
      %cst_71 = arith.constant 9.99999974E-6 : f32
      %128 = vector.broadcast %cst_71 : f32 to vector<8x1xf32>
      %129 = arith.addf %127, %128 : vector<8x1xf32>
      %130 = math.rsqrt %129 : vector<8x1xf32>
      %131 = vector.broadcast %130 : vector<8x1xf32> to vector<8x128xf32>
      %132 = arith.mulf %122, %131 : vector<8x128xf32>
      %133 = vector.broadcast %115 : vector<1x128xf32> to vector<8x128xf32>
      %134 = arith.mulf %132, %133 : vector<8x128xf32>
      %135 = vector.broadcast %116 : vector<1x128xf32> to vector<8x128xf32>
      %136 = arith.addf %134, %135 : vector<8x128xf32>
      %137 = arith.truncf %136 : vector<8x128xf32> to vector<8x128xbf16>
      %c0_72 = arith.constant 0 : index
      %c0_73 = arith.constant 0 : index
      %138 = vector.load %arg7[%c0_72, %c0_73] : memref<128x128xbf16, #tpu.memory_space<vmem>>, vector<128x128xbf16>
      %cst_74 = arith.constant dense<0.000000e+00> : vector<8x128xf32>
      %139 = tpu.matmul %137, %138, %cst_74 {dimension_numbers = #tpu.dot_dimension_numbers<[1], [1], [0], [0], [0, 0, 1, 0], [], []>} : vector<8x128xbf16>, vector<128x128xbf16>, vector<8x128xf32> -> vector<8x128xf32>
      %c0_75 = arith.constant 0 : index
      %c0_76 = arith.constant 0 : index
      %140 = vector.load %arg8[%c0_75, %c0_76] : memref<1x128xf32, #tpu.memory_space<vmem>>, vector<1x128xf32>
      %141 = vector.broadcast %140 : vector<1x128xf32> to vector<8x128xf32>
      %142 = arith.addf %139, %141 : vector<8x128xf32>
      %143 = arith.truncf %136 : vector<8x128xf32> to vector<8x128xbf16>
      %c0_77 = arith.constant 0 : index
      %c0_78 = arith.constant 0 : index
      %144 = vector.load %arg9[%c0_77, %c0_78] : memref<128x128xbf16, #tpu.memory_space<vmem>>, vector<128x128xbf16>
      %cst_79 = arith.constant dense<0.000000e+00> : vector<8x128xf32>
      %145 = tpu.matmul %143, %144, %cst_79 {dimension_numbers = #tpu.dot_dimension_numbers<[1], [1], [0], [0], [0, 0, 1, 0], [], []>} : vector<8x128xbf16>, vector<128x128xbf16>, vector<8x128xf32> -> vector<8x128xf32>
      %c0_80 = arith.constant 0 : index
      %c0_81 = arith.constant 0 : index
      %146 = vector.load %arg10[%c0_80, %c0_81] : memref<1x128xf32, #tpu.memory_space<vmem>>, vector<1x128xf32>
      %147 = vector.broadcast %146 : vector<1x128xf32> to vector<8x128xf32>
      %148 = arith.addf %145, %147 : vector<8x128xf32>
      %149 = vector.extract_strided_slice %142 {offsets = [0, 0], sizes = [8, 32], strides = [1, 1]} : vector<8x128xf32> to vector<8x32xf32>
      %150 = vector.extract_strided_slice %142 {offsets = [0, 32], sizes = [8, 32], strides = [1, 1]} : vector<8x128xf32> to vector<8x32xf32>
      %151 = vector.extract_strided_slice %142 {offsets = [0, 64], sizes = [8, 32], strides = [1, 1]} : vector<8x128xf32> to vector<8x32xf32>
      %152 = vector.extract_strided_slice %142 {offsets = [0, 96], sizes = [8, 32], strides = [1, 1]} : vector<8x128xf32> to vector<8x32xf32>
      %153 = vector.shape_cast %149 : vector<8x32xf32> to vector<1x8x32xf32>
      %154 = vector.shape_cast %150 : vector<8x32xf32> to vector<1x8x32xf32>
      %155 = vector.shape_cast %151 : vector<8x32xf32> to vector<1x8x32xf32>
      %156 = vector.shape_cast %152 : vector<8x32xf32> to vector<1x8x32xf32>
      %157 = tpu.concatenate %153, %154, %155, %156 in 0 : vector<1x8x32xf32>, vector<1x8x32xf32>, vector<1x8x32xf32>, vector<1x8x32xf32> -> vector<4x8x32xf32>
      %158 = arith.truncf %157 : vector<4x8x32xf32> to vector<4x8x32xbf16>
      %c0_82 = arith.constant 0 : index
      %c0_83 = arith.constant 0 : index
      %c0_84 = arith.constant 0 : index
      %159 = vector.load %arg20[%c0_82, %c0_83, %c0_84] : memref<4x8x32xbf16, #tpu.memory_space<vmem>>, vector<4x8x32xbf16>
      tpu.vector_store %arg20[%c0_82, %c0_83, %c0_84], %158 {strides = array<i32>} : memref<4x8x32xbf16, #tpu.memory_space<vmem>>, vector<4x8x32xbf16>,
      %160 = vector.extract_strided_slice %148 {offsets = [0, 0], sizes = [8, 32], strides = [1, 1]} : vector<8x128xf32> to vector<8x32xf32>
      %161 = vector.extract_strided_slice %148 {offsets = [0, 32], sizes = [8, 32], strides = [1, 1]} : vector<8x128xf32> to vector<8x32xf32>
      %162 = vector.extract_strided_slice %148 {offsets = [0, 64], sizes = [8, 32], strides = [1, 1]} : vector<8x128xf32> to vector<8x32xf32>
      %163 = vector.extract_strided_slice %148 {offsets = [0, 96], sizes = [8, 32], strides = [1, 1]} : vector<8x128xf32> to vector<8x32xf32>
      %164 = vector.shape_cast %160 : vector<8x32xf32> to vector<1x8x32xf32>
      %165 = vector.shape_cast %161 : vector<8x32xf32> to vector<1x8x32xf32>
      %166 = vector.shape_cast %162 : vector<8x32xf32> to vector<1x8x32xf32>
      %167 = vector.shape_cast %163 : vector<8x32xf32> to vector<1x8x32xf32>
      %168 = tpu.concatenate %164, %165, %166, %167 in 0 : vector<1x8x32xf32>, vector<1x8x32xf32>, vector<1x8x32xf32>, vector<1x8x32xf32> -> vector<4x8x32xf32>
      %169 = arith.truncf %168 : vector<4x8x32xf32> to vector<4x8x32xbf16>
      %c0_85 = arith.constant 0 : index
      %c0_86 = arith.constant 0 : index
      %c0_87 = arith.constant 0 : index
      %170 = vector.load %arg21[%c0_85, %c0_86, %c0_87] : memref<4x8x32xbf16, #tpu.memory_space<vmem>>, vector<4x8x32xbf16>
      tpu.vector_store %arg21[%c0_85, %c0_86, %c0_87], %169 {strides = array<i32>} : memref<4x8x32xbf16, #tpu.memory_space<vmem>>, vector<4x8x32xbf16>,
    } else {
    }
    %c8_i32 = arith.constant 8 : i32
    %3 = arith.muli %arg1, %c8_i32 : i32
    %4 = tpu.assume_multiple %3, 8 : i32
    %c0 = arith.constant 0 : index
    %5 = arith.index_cast %4 : i32 to index
    %c0_1 = arith.constant 0 : index
    %6 = vector.load %arg2[%c0, %5, %c0_1] : memref<1x8x128xf32, #tpu.memory_space<vmem>>, vector<1x8x128xf32>
    %7 = vector.shape_cast %6 : vector<1x8x128xf32> to vector<8x128xf32>
    %c0_2 = arith.constant 0 : index
    %c0_3 = arith.constant 0 : index
    %8 = vector.load %arg3[%c0_2, %c0_3] : memref<1x128xf32, #tpu.memory_space<vmem>>, vector<1x128xf32>
    %c0_4 = arith.constant 0 : index
    %c0_5 = arith.constant 0 : index
    %9 = vector.load %arg4[%c0_4, %c0_5] : memref<1x128xf32, #tpu.memory_space<vmem>>, vector<1x128xf32>
    %cst = arith.constant dense<0.000000e+00> : vector<8xf32>
    %10 = vector.multi_reduction <add>, %7, %cst [1] : vector<8x128xf32> to vector<8xf32>
    %11 = vector.shape_cast %10 : vector<8xf32> to vector<8x1xf32>
    %cst_6 = arith.constant 1.280000e+02 : f32
    %12 = vector.broadcast %cst_6 : f32 to vector<8x1xf32>
    %13 = arith.divf %11, %12 : vector<8x1xf32>
    %14 = vector.broadcast %13 : vector<8x1xf32> to vector<8x128xf32>
    %15 = arith.subf %7, %14 : vector<8x128xf32>
    %16 = arith.mulf %15, %15 : vector<8x128xf32>
    %cst_7 = arith.constant dense<0.000000e+00> : vector<8xf32>
    %17 = vector.multi_reduction <add>, %16, %cst_7 [1] : vector<8x128xf32> to vector<8xf32>
    %18 = vector.shape_cast %17 : vector<8xf32> to vector<8x1xf32>
    %cst_8 = arith.constant 1.280000e+02 : f32
    %19 = vector.broadcast %cst_8 : f32 to vector<8x1xf32>
    %20 = arith.divf %18, %19 : vector<8x1xf32>
    %cst_9 = arith.constant 9.99999974E-6 : f32
    %21 = vector.broadcast %cst_9 : f32 to vector<8x1xf32>
    %22 = arith.addf %20, %21 : vector<8x1xf32>
    %23 = math.rsqrt %22 : vector<8x1xf32>
    %24 = vector.broadcast %23 : vector<8x1xf32> to vector<8x128xf32>
    %25 = arith.mulf %15, %24 : vector<8x128xf32>
    %26 = vector.broadcast %8 : vector<1x128xf32> to vector<8x128xf32>
    %27 = arith.mulf %25, %26 : vector<8x128xf32>
    %28 = vector.broadcast %9 : vector<1x128xf32> to vector<8x128xf32>
    %29 = arith.addf %27, %28 : vector<8x128xf32>
    %30 = arith.truncf %29 : vector<8x128xf32> to vector<8x128xbf16>
    %31 = vector.shape_cast %30 : vector<8x128xbf16> to vector<1x8x128xbf16>
    %32 = vector.broadcast %31 : vector<1x8x128xbf16> to vector<4x8x128xbf16>
    %c0_10 = arith.constant 0 : index
    %c0_11 = arith.constant 0 : index
    %c0_12 = arith.constant 0 : index
    %33 = vector.load %arg5[%c0_10, %c0_11, %c0_12] : memref<4x32x128xbf16, #tpu.memory_space<vmem>>, vector<4x32x128xbf16>
    "tpu.trace_start"() <{level = 10 : i32, message = "hqe,hde->hqd"}> : () -> ()
    %cst_13 = arith.constant dense<0.000000e+00> : vector<4x8x32xf32>
    %34 = tpu.matmul %32, %33, %cst_13 {dimension_numbers = #tpu.dot_dimension_numbers<[2], [2], [1], [1], [0, 0, 0, 1, 1, 1], [0], [0]>} : vector<4x8x128xbf16>, vector<4x32x128xbf16>, vector<4x8x32xf32> -> vector<4x8x32xf32>
    "tpu.trace_stop"() : () -> ()
    %c0_14 = arith.constant 0 : index
    %c0_15 = arith.constant 0 : index
    %c0_16 = arith.constant 0 : index
    %35 = vector.load %arg6[%c0_14, %c0_15, %c0_16] : memref<4x1x32xf32, #tpu.memory_space<vmem>>, vector<4x1x32xf32>
    %36 = vector.broadcast %35 : vector<4x1x32xf32> to vector<4x8x32xf32>
    %37 = arith.addf %34, %36 : vector<4x8x32xf32>
    %38 = arith.truncf %37 : vector<4x8x32xf32> to vector<4x8x32xbf16>
    %c0_17 = arith.constant 0 : index
    %c0_18 = arith.constant 0 : index
    %c0_19 = arith.constant 0 : index
    %39 = vector.load %arg20[%c0_17, %c0_18, %c0_19] : memref<4x8x32xbf16, #tpu.memory_space<vmem>>, vector<4x8x32xbf16>
    "tpu.trace_start"() <{level = 10 : i32, message = "hqd,hkd->hqk"}> : () -> ()
    %cst_20 = arith.constant dense<0.000000e+00> : vector<4x8x8xf32>
    %40 = tpu.matmul %38, %39, %cst_20 {dimension_numbers = #tpu.dot_dimension_numbers<[2], [2], [1], [1], [0, 0, 0, 1, 1, 1], [0], [0]>} : vector<4x8x32xbf16>, vector<4x8x32xbf16>, vector<4x8x8xf32> -> vector<4x8x8xf32>
    "tpu.trace_stop"() : () -> ()
    %cst_21 = arith.constant dense<0xFF800000> : vector<4x8xf32>
    %41 = vector.multi_reduction <maximumf>, %40, %cst_21 [2] : vector<4x8x8xf32> to vector<4x8xf32>
    %42 = vector.shape_cast %41 : vector<4x8xf32> to vector<4x8x1xf32>
    %43 = vector.broadcast %42 : vector<4x8x1xf32> to vector<4x8x8xf32>
    %44 = arith.subf %40, %43 : vector<4x8x8xf32>
    %45 = math.exp %44 : vector<4x8x8xf32>
    %cst_22 = arith.constant dense<0.000000e+00> : vector<4x8xf32>
    %46 = vector.multi_reduction <add>, %45, %cst_22 [2] : vector<4x8x8xf32> to vector<4x8xf32>
    %47 = vector.shape_cast %46 : vector<4x8xf32> to vector<4x8x1xf32>
    %48 = arith.truncf %45 : vector<4x8x8xf32> to vector<4x8x8xbf16>
    %c0_23 = arith.constant 0 : index
    %c0_24 = arith.constant 0 : index
    %c0_25 = arith.constant 0 : index
    %49 = vector.load %arg21[%c0_23, %c0_24, %c0_25] : memref<4x8x32xbf16, #tpu.memory_space<vmem>>, vector<4x8x32xbf16>
    "tpu.trace_start"() <{level = 10 : i32, message = "hqk,hkd->hqd"}> : () -> ()
    %cst_26 = arith.constant dense<0.000000e+00> : vector<4x8x32xf32>
    %50 = tpu.matmul %48, %49, %cst_26 {dimension_numbers = #tpu.dot_dimension_numbers<[2], [1], [1], [2], [0, 0, 0, 1, 1, 2], [0], [0]>} : vector<4x8x8xbf16>, vector<4x8x32xbf16>, vector<4x8x32xf32> -> vector<4x8x32xf32>
    "tpu.trace_stop"() : () -> ()
    %51 = tpu.reciprocal %47 {approx = true} : vector<4x8x1xf32> -> vector<4x8x1xf32>
    %52 = vector.broadcast %51 : vector<4x8x1xf32> to vector<4x8x32xf32>
    %53 = arith.mulf %50, %52 : vector<4x8x32xf32>
    %54 = arith.truncf %53 : vector<4x8x32xf32> to vector<4x8x32xbf16>
    %c0_27 = arith.constant 0 : index
    %c0_28 = arith.constant 0 : index
    %c0_29 = arith.constant 0 : index
    %55 = vector.load %arg11[%c0_27, %c0_28, %c0_29] : memref<4x128x32xbf16, #tpu.memory_space<vmem>>, vector<4x128x32xbf16>
    "tpu.trace_start"() <{level = 10 : i32, message = "hqd,hed->hqe"}> : () -> ()
    %cst_30 = arith.constant dense<0.000000e+00> : vector<4x8x128xf32>
    %56 = tpu.matmul %54, %55, %cst_30 {dimension_numbers = #tpu.dot_dimension_numbers<[2], [2], [1], [1], [0, 0, 0, 1, 1, 1], [0], [0]>} : vector<4x8x32xbf16>, vector<4x128x32xbf16>, vector<4x8x128xf32> -> vector<4x8x128xf32>
    "tpu.trace_stop"() : () -> ()
    %cst_31 = arith.constant dense<0.000000e+00> : vector<8x128xf32>
    %57 = vector.multi_reduction <add>, %56, %cst_31 [0] : vector<4x8x128xf32> to vector<8x128xf32>
    %c0_32 = arith.constant 0 : index
    %c0_33 = arith.constant 0 : index
    %58 = vector.load %arg12[%c0_32, %c0_33] : memref<1x128xf32, #tpu.memory_space<vmem>>, vector<1x128xf32>
    %59 = vector.broadcast %58 : vector<1x128xf32> to vector<8x128xf32>
    %60 = arith.addf %57, %59 : vector<8x128xf32>
    %61 = arith.addf %7, %60 : vector<8x128xf32>
    %c0_34 = arith.constant 0 : index
    %c0_35 = arith.constant 0 : index
    %62 = vector.load %arg13[%c0_34, %c0_35] : memref<1x128xf32, #tpu.memory_space<vmem>>, vector<1x128xf32>
    %c0_36 = arith.constant 0 : index
    %c0_37 = arith.constant 0 : index
    %63 = vector.load %arg14[%c0_36, %c0_37] : memref<1x128xf32, #tpu.memory_space<vmem>>, vector<1x128xf32>
    %cst_38 = arith.constant dense<0.000000e+00> : vector<8xf32>
    %64 = vector.multi_reduction <add>, %61, %cst_38 [1] : vector<8x128xf32> to vector<8xf32>
    %65 = vector.shape_cast %64 : vector<8xf32> to vector<8x1xf32>
    %cst_39 = arith.constant 1.280000e+02 : f32
    %66 = vector.broadcast %cst_39 : f32 to vector<8x1xf32>
    %67 = arith.divf %65, %66 : vector<8x1xf32>
    %68 = vector.broadcast %67 : vector<8x1xf32> to vector<8x128xf32>
    %69 = arith.subf %61, %68 : vector<8x128xf32>
    %70 = arith.mulf %69, %69 : vector<8x128xf32>
    %cst_40 = arith.constant dense<0.000000e+00> : vector<8xf32>
    %71 = vector.multi_reduction <add>, %70, %cst_40 [1] : vector<8x128xf32> to vector<8xf32>
    %72 = vector.shape_cast %71 : vector<8xf32> to vector<8x1xf32>
    %cst_41 = arith.constant 1.280000e+02 : f32
    %73 = vector.broadcast %cst_41 : f32 to vector<8x1xf32>
    %74 = arith.divf %72, %73 : vector<8x1xf32>
    %cst_42 = arith.constant 9.99999974E-6 : f32
    %75 = vector.broadcast %cst_42 : f32 to vector<8x1xf32>
    %76 = arith.addf %74, %75 : vector<8x1xf32>
    %77 = math.rsqrt %76 : vector<8x1xf32>
    %78 = vector.broadcast %77 : vector<8x1xf32> to vector<8x128xf32>
    %79 = arith.mulf %69, %78 : vector<8x128xf32>
    %80 = vector.broadcast %62 : vector<1x128xf32> to vector<8x128xf32>
    %81 = arith.mulf %79, %80 : vector<8x128xf32>
    %82 = vector.broadcast %63 : vector<1x128xf32> to vector<8x128xf32>
    %83 = arith.addf %81, %82 : vector<8x128xf32>
    %84 = arith.truncf %83 : vector<8x128xf32> to vector<8x128xbf16>
    %c0_43 = arith.constant 0 : index
    %c0_44 = arith.constant 0 : index
    %85 = vector.load %arg15[%c0_43, %c0_44] : memref<384x128xbf16, #tpu.memory_space<vmem>>, vector<384x128xbf16>
    %cst_45 = arith.constant dense<0.000000e+00> : vector<8x384xf32>
    %86 = tpu.matmul %84, %85, %cst_45 {dimension_numbers = #tpu.dot_dimension_numbers<[1], [1], [0], [0], [0, 0, 1, 0], [], []>} : vector<8x128xbf16>, vector<384x128xbf16>, vector<8x384xf32> -> vector<8x384xf32>
    %c0_46 = arith.constant 0 : index
    %c0_47 = arith.constant 0 : index
    %87 = vector.load %arg16[%c0_46, %c0_47] : memref<1x384xf32, #tpu.memory_space<vmem>>, vector<1x384xf32>
    %88 = vector.broadcast %87 : vector<1x384xf32> to vector<8x384xf32>
    %89 = arith.addf %86, %88 : vector<8x384xf32>
    %cst_48 = arith.constant 5.000000e-01 : f32
    %90 = vector.broadcast %cst_48 : f32 to vector<8x384xf32>
    %91 = arith.mulf %90, %89 : vector<8x384xf32>
    %92 = arith.mulf %89, %89 : vector<8x384xf32>
    %93 = arith.mulf %92, %89 : vector<8x384xf32>
    %cst_49 = arith.constant 4.471500e-02 : f32
    %94 = vector.broadcast %cst_49 : f32 to vector<8x384xf32>
    %95 = arith.mulf %94, %93 : vector<8x384xf32>
    %96 = arith.addf %89, %95 : vector<8x384xf32>
    %cst_50 = arith.constant 0.797884583 : f32
    %97 = vector.broadcast %cst_50 : f32 to vector<8x384xf32>
    %98 = arith.mulf %97, %96 : vector<8x384xf32>
    %99 = math.tanh %98 : vector<8x384xf32>
    %cst_51 = arith.constant 1.000000e+00 : f32
    %100 = vector.broadcast %cst_51 : f32 to vector<8x384xf32>
    %101 = arith.addf %100, %99 : vector<8x384xf32>
    %102 = arith.mulf %91, %101 : vector<8x384xf32>
    %103 = arith.truncf %102 : vector<8x384xf32> to vector<8x384xbf16>
    %c0_52 = arith.constant 0 : index
    %c0_53 = arith.constant 0 : index
    %104 = vector.load %arg17[%c0_52, %c0_53] : memref<128x384xbf16, #tpu.memory_space<vmem>>, vector<128x384xbf16>
    %cst_54 = arith.constant dense<0.000000e+00> : vector<8x128xf32>
    %105 = tpu.matmul %103, %104, %cst_54 {dimension_numbers = #tpu.dot_dimension_numbers<[1], [1], [0], [0], [0, 0, 1, 0], [], []>} : vector<8x384xbf16>, vector<128x384xbf16>, vector<8x128xf32> -> vector<8x128xf32>
    %c0_55 = arith.constant 0 : index
    %c0_56 = arith.constant 0 : index
    %106 = vector.load %arg18[%c0_55, %c0_56] : memref<1x128xf32, #tpu.memory_space<vmem>>, vector<1x128xf32>
    %107 = vector.broadcast %106 : vector<1x128xf32> to vector<8x128xf32>
    %108 = arith.addf %105, %107 : vector<8x128xf32>
    %109 = arith.addf %61, %108 : vector<8x128xf32>
    %c0_57 = arith.constant 0 : index
    %c0_58 = arith.constant 0 : index
    %c0_59 = arith.constant 0 : index
    %110 = vector.load %arg19[%c0_57, %c0_58, %c0_59] : memref<1x8x128xf32, #tpu.memory_space<vmem>>, vector<1x8x128xf32>
    %111 = vector.shape_cast %110 : vector<1x8x128xf32> to vector<8x128xf32>
    %112 = vector.shape_cast %109 : vector<8x128xf32> to vector<1x8x128xf32>
    tpu.vector_store %arg19[%c0_57, %c0_58, %c0_59], %112 {strides = array<i32>} : memref<1x8x128xf32, #tpu.memory_space<vmem>>, vector<1x8x128xf32>,
    return
  }
  func.func @transform_0(%arg0: i32, %arg1: i32) -> (i32, i32, i32) {
    %c0_i32 = arith.constant 0 : i32
    %c0_i32_0 = arith.constant 0 : i32
    %c0_i32_1 = arith.constant 0 : i32
    return %arg0, %c0_i32, %c0_i32_0 : i32, i32, i32
  }
  func.func @transform_1(%arg0: i32, %arg1: i32) -> (i32, i32) {
    %c0_i32 = arith.constant 0 : i32
    %c0_i32_0 = arith.constant 0 : i32
    %c0_i32_1 = arith.constant 0 : i32
    return %c0_i32, %c0_i32_0 : i32, i32
  }
  func.func @transform_2(%arg0: i32, %arg1: i32) -> (i32, i32) {
    %c0_i32 = arith.constant 0 : i32
    %c0_i32_0 = arith.constant 0 : i32
    %c0_i32_1 = arith.constant 0 : i32
    return %c0_i32, %c0_i32_0 : i32, i32
  }
  func.func @transform_3(%arg0: i32, %arg1: i32) -> (i32, i32, i32) {
    %c0_i32 = arith.constant 0 : i32
    %c0_i32_0 = arith.constant 0 : i32
    %c0_i32_1 = arith.constant 0 : i32
    %c0_i32_2 = arith.constant 0 : i32
    return %c0_i32, %c0_i32_0, %c0_i32_1 : i32, i32, i32
  }
  func.func @transform_4(%arg0: i32, %arg1: i32) -> (i32, i32, i32) {
    %c0_i32 = arith.constant 0 : i32
    %c0_i32_0 = arith.constant 0 : i32
    %c0_i32_1 = arith.constant 0 : i32
    %c0_i32_2 = arith.constant 0 : i32
    return %c0_i32, %c0_i32_0, %c0_i32_1 : i32, i32, i32
  }
  func.func @transform_5(%arg0: i32, %arg1: i32) -> (i32, i32) {
    %c0_i32 = arith.constant 0 : i32
    %c0_i32_0 = arith.constant 0 : i32
    %c0_i32_1 = arith.constant 0 : i32
    return %c0_i32, %c0_i32_0 : i32, i32
  }
  func.func @transform_6(%arg0: i32, %arg1: i32) -> (i32, i32) {
    %c0_i32 = arith.constant 0 : i32
    %c0_i32_0 = arith.constant 0 : i32
    %c0_i32_1 = arith.constant 0 : i32
    return %c0_i32, %c0_i32_0 : i32, i32
  }
  func.func @transform_7(%arg0: i32, %arg1: i32) -> (i32, i32) {
    %c0_i32 = arith.constant 0 : i32
    %c0_i32_0 = arith.constant 0 : i32
    %c0_i32_1 = arith.constant 0 : i32
    return %c0_i32, %c0_i32_0 : i32, i32
  }
  func.func @transform_8(%arg0: i32, %arg1: i32) -> (i32, i32) {
    %c0_i32 = arith.constant 0 : i32
    %c0_i32_0 = arith.constant 0 : i32
    %c0_i32_1 = arith.constant 0 : i32
    return %c0_i32, %c0_i32_0 : i32, i32
  }
  func.func @transform_9(%arg0: i32, %arg1: i32) -> (i32, i32, i32) {
    %c0_i32 = arith.constant 0 : i32
    %c0_i32_0 = arith.constant 0 : i32
    %c0_i32_1 = arith.constant 0 : i32
    %c0_i32_2 = arith.constant 0 : i32
    return %c0_i32, %c0_i32_0, %c0_i32_1 : i32, i32, i32
  }
  func.func @transform_10(%arg0: i32, %arg1: i32) -> (i32, i32) {
    %c0_i32 = arith.constant 0 : i32
    %c0_i32_0 = arith.constant 0 : i32
    %c0_i32_1 = arith.constant 0 : i32
    return %c0_i32, %c0_i32_0 : i32, i32
  }
  func.func @transform_11(%arg0: i32, %arg1: i32) -> (i32, i32) {
    %c0_i32 = arith.constant 0 : i32
    %c0_i32_0 = arith.constant 0 : i32
    %c0_i32_1 = arith.constant 0 : i32
    return %c0_i32, %c0_i32_0 : i32, i32
  }
  func.func @transform_12(%arg0: i32, %arg1: i32) -> (i32, i32) {
    %c0_i32 = arith.constant 0 : i32
    %c0_i32_0 = arith.constant 0 : i32
    %c0_i32_1 = arith.constant 0 : i32
    return %c0_i32, %c0_i32_0 : i32, i32
  }
  func.func @transform_13(%arg0: i32, %arg1: i32) -> (i32, i32) {
    %c0_i32 = arith.constant 0 : i32
    %c0_i32_0 = arith.constant 0 : i32
    %c0_i32_1 = arith.constant 0 : i32
    return %c0_i32, %c0_i32_0 : i32, i32
  }
  func.func @transform_14(%arg0: i32, %arg1: i32) -> (i32, i32) {
    %c0_i32 = arith.constant 0 : i32
    %c0_i32_0 = arith.constant 0 : i32
    %c0_i32_1 = arith.constant 0 : i32
    return %c0_i32, %c0_i32_0 : i32, i32
  }
  func.func @transform_15(%arg0: i32, %arg1: i32) -> (i32, i32) {
    %c0_i32 = arith.constant 0 : i32
    %c0_i32_0 = arith.constant 0 : i32
    %c0_i32_1 = arith.constant 0 : i32
    return %c0_i32, %c0_i32_0 : i32, i32
  }
  func.func @transform_16(%arg0: i32, %arg1: i32) -> (i32, i32) {
    %c0_i32 = arith.constant 0 : i32
    %c0_i32_0 = arith.constant 0 : i32
    %c0_i32_1 = arith.constant 0 : i32
    return %c0_i32, %c0_i32_0 : i32, i32
  }
  func.func @transform_17(%arg0: i32, %arg1: i32) -> (i32, i32, i32) {
    %c0_i32 = arith.constant 0 : i32
    %c0_i32_0 = arith.constant 0 : i32
    return %arg0, %arg1, %c0_i32 : i32, i32, i32
  }
}

</mosaic_0001>

<llo_original>
// kernel: tpu_custom_call.1
$region0: #{tpu_custom_call.1}
  #allocation0 [shape = 'u32[]', space=smem, size = 0x4, offset = 0x4, fixed_abs, tag = 'smem constant byte address 0x4 - core index']
  #allocation1 [shape = 'u32[72,128]{1,0:T(1,128)}', space=vmem, size = 0x9000, scoped, tag = 'internal scratch']
  #allocation2 [shape = 'bf16[4,8,32]{2,1,0:T(8,128)(2,1)}', space=vmem, size = 0x2000, scoped, tag = 'scratch operand']
  #allocation3 [shape = 'bf16[4,8,32]{2,1,0:T(8,128)(2,1)}', space=vmem, size = 0x2000, scoped, tag = 'scratch operand']
  %s0 = inlined_call_operand.hbm [shape: f32[2,8,128], index: 0, kind: input, shape index: {}]
  %s1 = inlined_call_operand.vmem [shape: f32[1,128], index: 1, kind: input, shape index: {}]
  %s2 = inlined_call_operand.vmem [shape: f32[1,128], index: 2, kind: input, shape index: {}]
  %s3 = inlined_call_operand.vmem [shape: bf16[4,32,128], index: 3, kind: input, shape index: {}]
  %s4 = inlined_call_operand.vmem [shape: f32[4,1,32], index: 4, kind: input, shape index: {}]
  %s5 = inlined_call_operand.vmem [shape: bf16[128,128], index: 5, kind: input, shape index: {}]
  %s6 = inlined_call_operand.vmem [shape: f32[1,128], index: 6, kind: input, shape index: {}]
  %s7 = inlined_call_operand.hbm [shape: bf16[128,128], index: 7, kind: input, shape index: {}]
  %s8 = inlined_call_operand.vmem [shape: f32[1,128], index: 8, kind: input, shape index: {}]
  %s9 = inlined_call_operand.vmem [shape: bf16[4,128,32], index: 9, kind: input, shape index: {}]
  %s10 = inlined_call_operand.vmem [shape: f32[1,128], index: 10, kind: input, shape index: {}]
  %s11 = inlined_call_operand.hbm [shape: f32[1,128], index: 11, kind: input, shape index: {}]
  %s12 = inlined_call_operand.hbm [shape: f32[1,128], index: 12, kind: input, shape index: {}]
  %s13 = inlined_call_operand.vmem [shape: bf16[384,128], index: 13, kind: input, shape index: {}]
  %s14 = inlined_call_operand.vmem [shape: f32[1,384], index: 14, kind: input, shape index: {}]
  %s15 = inlined_call_operand.hbm [shape: bf16[128,384], index: 15, kind: input, shape index: {}]
  %s16 = inlined_call_operand.vmem [shape: f32[1,128], index: 16, kind: input, shape index: {}]
  %s17 = inlined_call_operand.hbm [shape: f32[2,8,128], index: 17, kind: output, shape index: {}]
  %s18 = sld [smem:[#allocation0]]
  $region125: #{tpu_custom_call.1} parent=0
    _
  %s20 = ssub.s32 1, %s18
  %s21 = scalar_select 0, %s20, %s18
  $region1: #{tpu_custom_call.1} parent=0
    #allocation4 [shape = 'u8[8192]{0}', space=vmem, size = 0x2000, scoped, tag = 'input window, operand 0']
    #allocation5 [shape = 's32[2]{0}', space=sflag, size = 0x8, scoped, tag = 'scoped memory for tpu_custom_call.1']
    #allocation6 [shape = 's32[2]{0}', space=sflag, size = 0x8, scoped, tag = 'scoped memory for tpu_custom_call.1']
    #allocation7 [shape = 'u8[32768]{0}', space=vmem, size = 0x8000, scoped, tag = 'input window, operand 7, single buffered']
    #allocation8 [shape = 's32[1]{0}', space=sflag, size = 0x4, scoped, tag = 'scoped memory for tpu_custom_call.1']
    #allocation9 [shape = 'u8[512]{0}', space=vmem, size = 0x400, scoped, tag = 'input window, operand 11, single buffered']
    #allocation10 [shape = 'u8[512]{0}', space=vmem, size = 0x400, scoped, tag = 'input window, operand 12, single buffered']
    #allocation11 [shape = 's32[1]{0}', space=sflag, size = 0x4, scoped, tag = 'scoped memory for tpu_custom_call.1']
    #allocation12 [shape = 'u8[98304]{0}', space=vmem, size = 0x18000, scoped, tag = 'input window, operand 15, single buffered']
    #allocation13 [shape = 'u8[8192]{0}', space=vmem, size = 0x2000, scoped, tag = 'output window, operand 0']
    %22 = vsyncpa [#allocation5], 0
    %s23 = scalar_lea.sflag [#allocation5], 1
    %24 = vsyncpa %s23, 0
    %25 = vsyncpa [#allocation8], 0
    %26 = vsyncpa [#allocation11], 0
    %27 = vsyncpa [#allocation6], 0
    %s28 = scalar_lea.sflag [#allocation6], 1
    %29 = vsyncpa %s28, 0
    loop: start=0, step=1, limit=4
    $region2: #{tpu_custom_call.1} parent=1 // loop_pre_header
      _
    $region3: #{tpu_custom_call.1} parent=1 // loop_header
      %s31 = sphi 0, %s35
      %p32 = scmp.ge.s32.totalorder %s31, 4
      %s38 = sphi 0, %s50
      %s39 = sphi 0, %s46
      %s40 = sphi 0, %s38
      %s41 = sphi 0, %s39
      %s42 = sphi 0, %s40
      %s43 = sphi 0, %s41
      %s53 = sphi 0, %s55
      %s56 = sphi 0, %s53
      %s57 = sphi 0, %s56
      %s73 = sphi 0, %s57
      %s77 = sphi 0, %s77
      %s79 = sphi 0, %s77
      %s80 = sphi 0, %s79
      %s94 = sphi 0, %s80
      %s98 = sphi 0, %s98
      %s100 = sphi 0, %s98
      %s101 = sphi 0, %s100
      %s115 = sphi 0, %s101
      %s119 = sphi 0, %s119
      %s121 = sphi 0, %s119
      %s122 = sphi 0, %s121
      %s136 = sphi 0, %s122
      %s140 = sphi 0, %s140
      %s142 = sphi 0, %s140
      %s143 = sphi 0, %s142
      %s157 = sphi 0, %s143
      %s161 = sphi 0, %s161
      %s163 = sphi 0, %s161
      %s164 = sphi 0, %s163
      %s178 = sphi 0, %s164
      %s182 = sphi 0, %s182
      %s184 = sphi 0, %s182
      %s185 = sphi 0, %s184
      %s199 = sphi 0, %s185
      %s203 = sphi 0, %s203
      %s205 = sphi 0, %s203
      %s206 = sphi 0, %s205
      %s220 = sphi 0, %s206
      %s224 = sphi 0, %s224
      %s226 = sphi 0, %s224
      %s227 = sphi 0, %s226
      %s241 = sphi 0, %s227
      %s245 = sphi 0, %s245
      %s247 = sphi 0, %s245
      %s248 = sphi 0, %s247
      %s262 = sphi 0, %s248
      %s266 = sphi 0, %s266
      %s268 = sphi 0, %s266
      %s269 = sphi 0, %s268
      %s283 = sphi 0, %s269
      %s287 = sphi 0, %s287
      %s289 = sphi 0, %s287
      %s290 = sphi 0, %s289
      %s304 = sphi 0, %s290
      %s308 = sphi 0, %s308
      %s310 = sphi 0, %s308
      %s311 = sphi 0, %s310
      %s325 = sphi 0, %s311
      %s329 = sphi 0, %s329
      %s331 = sphi 0, %s329
      %s332 = sphi 0, %s331
      %s346 = sphi 0, %s332
      %s350 = sphi 0, %s350
      %s352 = sphi 0, %s350
      %s353 = sphi 0, %s352
      %s367 = sphi 0, %s353
      %s371 = sphi 0, %s371
      %s373 = sphi 0, %s371
      %s374 = sphi 0, %s373
      %s388 = sphi 0, %s374
      %s392 = sphi 0, %s392
      %s394 = sphi 0, %s392
      %s395 = sphi 0, %s394
      %s409 = sphi 0, %s395
      %s417 = sphi 0, %s419
      %s420 = sphi 0, %s417
      %s421 = sphi 0, %s420
      %s437 = sphi 0, %s421
    $region4: #{tpu_custom_call.1} parent=1 // loop_header_branch
      %34 = sbr.rel (%p32) target = $region8
    $region5: #{tpu_custom_call.1} parent=1 // loop_body
      %s36 = ssub.s32 %s31, 1
      %s37 = ssub.s32 %s31, 2
      %s44 = sadd.s32 1, %s39
      %p45 = scmp.ge.s32.totalorder %s44, 1
      %s46 = scalar_select %p45, 0, %s44
      %s47 = sadd.s32 1, %s38
      %s48 = scalar_select %p45, %s47, %s38
      %p49 = scmp.ge.s32.totalorder %s48, 2
      %s50 = scalar_select %p49, 0, %s48
      %s51 = ssub.s32 %s38, %s50
      %p52 = scmp.eq.s32.totalorder %s51, 0
      %s54 = sadd.s32 %s53, 1
      %s55 = scalar_select %p52, %s53, %s54
      %p58 = pneg %p52
      %p59 = scmp.eq.s32.totalorder %s31, 1
      %p60 = por %p58, %p59
      %p61 = scmp.ne.s32.totalorder %s53, %s56
      %p62 = scmp.eq.s32.totalorder %s31, 0
      %p63 = por %p61, %p62
      %p64 = scmp.ne.s32.totalorder %s53, %s56
      %p65 = scmp.eq.s32.totalorder %s36, 1
      %p66 = por %p64, %p65
      %p67 = scmp.ne.s32.totalorder %s56, %s57
      %p68 = scmp.eq.s32.totalorder %s36, 0
      %p69 = por %p67, %p68
      %p70 = scmp.ne.s32.totalorder %s56, %s57
      %p71 = scmp.eq.s32.totalorder %s37, 1
      %p72 = por %p70, %p71
      %p74 = scmp.ne.s32.totalorder %s57, %s73
      %p75 = scmp.eq.s32.totalorder %s37, 0
      %p76 = por %p74, %p75
      %s78 = sadd.s32 %s77, 1
      %p81 = scmp.eq.s32.totalorder %s31, 1
      %p82 = scmp.ne.s32.totalorder %s77, %s79
      %p83 = scmp.eq.s32.totalorder %s31, 0
      %p84 = por %p82, %p83
      %p85 = scmp.ne.s32.totalorder %s77, %s79
      %p86 = scmp.eq.s32.totalorder %s36, 1
      %p87 = por %p85, %p86
      %p88 = scmp.ne.s32.totalorder %s79, %s80
      %p89 = scmp.eq.s32.totalorder %s36, 0
      %p90 = por %p88, %p89
      %p91 = scmp.ne.s32.totalorder %s79, %s80
      %p92 = scmp.eq.s32.totalorder %s37, 1
      %p93 = por %p91, %p92
      %p95 = scmp.ne.s32.totalorder %s80, %s94
      %p96 = scmp.eq.s32.totalorder %s37, 0
      %p97 = por %p95, %p96
      %s99 = sadd.s32 %s98, 1
      %p102 = scmp.eq.s32.totalorder %s31, 1
      %p103 = scmp.ne.s32.totalorder %s98, %s100
      %p104 = scmp.eq.s32.totalorder %s31, 0
      %p105 = por %p103, %p104
      %p106 = scmp.ne.s32.totalorder %s98, %s100
      %p107 = scmp.eq.s32.totalorder %s36, 1
      %p108 = por %p106, %p107
      %p109 = scmp.ne.s32.totalorder %s100, %s101
      %p110 = scmp.eq.s32.totalorder %s36, 0
      %p111 = por %p109, %p110
      %p112 = scmp.ne.s32.totalorder %s100, %s101
      %p113 = scmp.eq.s32.totalorder %s37, 1
      %p114 = por %p112, %p113
      %p116 = scmp.ne.s32.totalorder %s101, %s115
      %p117 = scmp.eq.s32.totalorder %s37, 0
      %p118 = por %p116, %p117
      %s120 = sadd.s32 %s119, 1
      %p123 = scmp.eq.s32.totalorder %s31, 1
      %p124 = scmp.ne.s32.totalorder %s119, %s121
      %p125 = scmp.eq.s32.totalorder %s31, 0
      %p126 = por %p124, %p125
      %p127 = scmp.ne.s32.totalorder %s119, %s121
      %p128 = scmp.eq.s32.totalorder %s36, 1
      %p129 = por %p127, %p128
      %p130 = scmp.ne.s32.totalorder %s121, %s122
      %p131 = scmp.eq.s32.totalorder %s36, 0
      %p132 = por %p130, %p131
      %p133 = scmp.ne.s32.totalorder %s121, %s122
      %p134 = scmp.eq.s32.totalorder %s37, 1
      %p135 = por %p133, %p134
      %p137 = scmp.ne.s32.totalorder %s122, %s136
      %p138 = scmp.eq.s32.totalorder %s37, 0
      %p139 = por %p137, %p138
      %s141 = sadd.s32 %s140, 1
      %p144 = scmp.eq.s32.totalorder %s31, 1
      %p145 = scmp.ne.s32.totalorder %s140, %s142
      %p146 = scmp.eq.s32.totalorder %s31, 0
      %p147 = por %p145, %p146
      %p148 = scmp.ne.s32.totalorder %s140, %s142
      %p149 = scmp.eq.s32.totalorder %s36, 1
      %p150 = por %p148, %p149
      %p151 = scmp.ne.s32.totalorder %s142, %s143
      %p152 = scmp.eq.s32.totalorder %s36, 0
      %p153 = por %p151, %p152
      %p154 = scmp.ne.s32.totalorder %s142, %s143
      %p155 = scmp.eq.s32.totalorder %s37, 1
      %p156 = por %p154, %p155
      %p158 = scmp.ne.s32.totalorder %s143, %s157
      %p159 = scmp.eq.s32.totalorder %s37, 0
      %p160 = por %p158, %p159
      %s162 = sadd.s32 %s161, 1
      %p165 = scmp.eq.s32.totalorder %s31, 1
      %p166 = scmp.ne.s32.totalorder %s161, %s163
      %p167 = scmp.eq.s32.totalorder %s31, 0
      %p168 = por %p166, %p167
      %p169 = scmp.ne.s32.totalorder %s161, %s163
      %p170 = scmp.eq.s32.totalorder %s36, 1
      %p171 = por %p169, %p170
      %p172 = scmp.ne.s32.totalorder %s163, %s164
      %p173 = scmp.eq.s32.totalorder %s36, 0
      %p174 = por %p172, %p173
      %p175 = scmp.ne.s32.totalorder %s163, %s164
      %p176 = scmp.eq.s32.totalorder %s37, 1
      %p177 = por %p175, %p176
      %p179 = scmp.ne.s32.totalorder %s164, %s178
      %p180 = scmp.eq.s32.totalorder %s37, 0
      %p181 = por %p179, %p180
      %s183 = sadd.s32 %s182, 1
      %p186 = scmp.eq.s32.totalorder %s31, 1
      %p187 = scmp.ne.s32.totalorder %s182, %s184
      %p188 = scmp.eq.s32.totalorder %s31, 0
      %p189 = por %p187, %p188
      %p190 = scmp.ne.s32.totalorder %s182, %s184
      %p191 = scmp.eq.s32.totalorder %s36, 1
      %p192 = por %p190, %p191
      %p193 = scmp.ne.s32.totalorder %s184, %s185
      %p194 = scmp.eq.s32.totalorder %s36, 0
      %p195 = por %p193, %p194
      %p196 = scmp.ne.s32.totalorder %s184, %s185
      %p197 = scmp.eq.s32.totalorder %s37, 1
      %p198 = por %p196, %p197
      %p200 = scmp.ne.s32.totalorder %s185, %s199
      %p201 = scmp.eq.s32.totalorder %s37, 0
      %p202 = por %p200, %p201
      %s204 = sadd.s32 %s203, 1
      %p207 = scmp.eq.s32.totalorder %s31, 1
      %p208 = scmp.ne.s32.totalorder %s203, %s205
      %p209 = scmp.eq.s32.totalorder %s31, 0
      %p210 = por %p208, %p209
      %p211 = scmp.ne.s32.totalorder %s203, %s205
      %p212 = scmp.eq.s32.totalorder %s36, 1
      %p213 = por %p211, %p212
      %p214 = scmp.ne.s32.totalorder %s205, %s206
      %p215 = scmp.eq.s32.totalorder %s36, 0
      %p216 = por %p214, %p215
      %p217 = scmp.ne.s32.totalorder %s205, %s206
      %p218 = scmp.eq.s32.totalorder %s37, 1
      %p219 = por %p217, %p218
      %p221 = scmp.ne.s32.totalorder %s206, %s220
      %p222 = scmp.eq.s32.totalorder %s37, 0
      %p223 = por %p221, %p222
      %s225 = sadd.s32 %s224, 1
      %p228 = scmp.eq.s32.totalorder %s31, 1
      %p229 = scmp.ne.s32.totalorder %s224, %s226
      %p230 = scmp.eq.s32.totalorder %s31, 0
      %p231 = por %p229, %p230
      %p232 = scmp.ne.s32.totalorder %s224, %s226
      %p233 = scmp.eq.s32.totalorder %s36, 1
      %p234 = por %p232, %p233
      %p235 = scmp.ne.s32.totalorder %s226, %s227
      %p236 = scmp.eq.s32.totalorder %s36, 0
      %p237 = por %p235, %p236
      %p238 = scmp.ne.s32.totalorder %s226, %s227
      %p239 = scmp.eq.s32.totalorder %s37, 1
      %p240 = por %p238, %p239
      %p242 = scmp.ne.s32.totalorder %s227, %s241
      %p243 = scmp.eq.s32.totalorder %s37, 0
      %p244 = por %p242, %p243
      %s246 = sadd.s32 %s245, 1
      %p249 = scmp.eq.s32.totalorder %s31, 1
      %p250 = scmp.ne.s32.totalorder %s245, %s247
      %p251 = scmp.eq.s32.totalorder %s31, 0
      %p252 = por %p250, %p251
      %p253 = scmp.ne.s32.totalorder %s245, %s247
      %p254 = scmp.eq.s32.totalorder %s36, 1
      %p255 = por %p253, %p254
      %p256 = scmp.ne.s32.totalorder %s247, %s248
      %p257 = scmp.eq.s32.totalorder %s36, 0
      %p258 = por %p256, %p257
      %p259 = scmp.ne.s32.totalorder %s247, %s248
      %p260 = scmp.eq.s32.totalorder %s37, 1
      %p261 = por %p259, %p260
      %p263 = scmp.ne.s32.totalorder %s248, %s262
      %p264 = scmp.eq.s32.totalorder %s37, 0
      %p265 = por %p263, %p264
      %s267 = sadd.s32 %s266, 1
      %p270 = scmp.eq.s32.totalorder %s31, 1
      %p271 = scmp.ne.s32.totalorder %s266, %s268
      %p272 = scmp.eq.s32.totalorder %s31, 0
      %p273 = por %p271, %p272
      %p274 = scmp.ne.s32.totalorder %s266, %s268
      %p275 = scmp.eq.s32.totalorder %s36, 1
      %p276 = por %p274, %p275
      %p277 = scmp.ne.s32.totalorder %s268, %s269
      %p278 = scmp.eq.s32.totalorder %s36, 0
      %p279 = por %p277, %p278
      %p280 = scmp.ne.s32.totalorder %s268, %s269
      %p281 = scmp.eq.s32.totalorder %s37, 1
      %p282 = por %p280, %p281
      %p284 = scmp.ne.s32.totalorder %s269, %s283
      %p285 = scmp.eq.s32.totalorder %s37, 0
      %p286 = por %p284, %p285
      %s288 = sadd.s32 %s287, 1
      %p291 = scmp.eq.s32.totalorder %s31, 1
      %p292 = scmp.ne.s32.totalorder %s287, %s289
      %p293 = scmp.eq.s32.totalorder %s31, 0
      %p294 = por %p292, %p293
      %p295 = scmp.ne.s32.totalorder %s287, %s289
      %p296 = scmp.eq.s32.totalorder %s36, 1
      %p297 = por %p295, %p296
      %p298 = scmp.ne.s32.totalorder %s289, %s290
      %p299 = scmp.eq.s32.totalorder %s36, 0
      %p300 = por %p298, %p299
      %p301 = scmp.ne.s32.totalorder %s289, %s290
      %p302 = scmp.eq.s32.totalorder %s37, 1
      %p303 = por %p301, %p302
      %p305 = scmp.ne.s32.totalorder %s290, %s304
      %p306 = scmp.eq.s32.totalorder %s37, 0
      %p307 = por %p305, %p306
      %s309 = sadd.s32 %s308, 1
      %p312 = scmp.eq.s32.totalorder %s31, 1
      %p313 = scmp.ne.s32.totalorder %s308, %s310
      %p314 = scmp.eq.s32.totalorder %s31, 0
      %p315 = por %p313, %p314
      %p316 = scmp.ne.s32.totalorder %s308, %s310
      %p317 = scmp.eq.s32.totalorder %s36, 1
      %p318 = por %p316, %p317
      %p319 = scmp.ne.s32.totalorder %s310, %s311
      %p320 = scmp.eq.s32.totalorder %s36, 0
      %p321 = por %p319, %p320
      %p322 = scmp.ne.s32.totalorder %s310, %s311
      %p323 = scmp.eq.s32.totalorder %s37, 1
      %p324 = por %p322, %p323
      %p326 = scmp.ne.s32.totalorder %s311, %s325
      %p327 = scmp.eq.s32.totalorder %s37, 0
      %p328 = por %p326, %p327
      %s330 = sadd.s32 %s329, 1
      %p333 = scmp.eq.s32.totalorder %s31, 1
      %p334 = scmp.ne.s32.totalorder %s329, %s331
      %p335 = scmp.eq.s32.totalorder %s31, 0
      %p336 = por %p334, %p335
      %p337 = scmp.ne.s32.totalorder %s329, %s331
      %p338 = scmp.eq.s32.totalorder %s36, 1
      %p339 = por %p337, %p338
      %p340 = scmp.ne.s32.totalorder %s331, %s332
      %p341 = scmp.eq.s32.totalorder %s36, 0
      %p342 = por %p340, %p341
      %p343 = scmp.ne.s32.totalorder %s331, %s332
      %p344 = scmp.eq.s32.totalorder %s37, 1
      %p345 = por %p343, %p344
      %p347 = scmp.ne.s32.totalorder %s332, %s346
      %p348 = scmp.eq.s32.totalorder %s37, 0
      %p349 = por %p347, %p348
      %s351 = sadd.s32 %s350, 1
      %p354 = scmp.eq.s32.totalorder %s31, 1
      %p355 = scmp.ne.s32.totalorder %s350, %s352
      %p356 = scmp.eq.s32.totalorder %s31, 0
      %p357 = por %p355, %p356
      %p358 = scmp.ne.s32.totalorder %s350, %s352
      %p359 = scmp.eq.s32.totalorder %s36, 1
      %p360 = por %p358, %p359
      %p361 = scmp.ne.s32.totalorder %s352, %s353
      %p362 = scmp.eq.s32.totalorder %s36, 0
      %p363 = por %p361, %p362
      %p364 = scmp.ne.s32.totalorder %s352, %s353
      %p365 = scmp.eq.s32.totalorder %s37, 1
      %p366 = por %p364, %p365
      %p368 = scmp.ne.s32.totalorder %s353, %s367
      %p369 = scmp.eq.s32.totalorder %s37, 0
      %p370 = por %p368, %p369
      %s372 = sadd.s32 %s371, 1
      %p375 = scmp.eq.s32.totalorder %s31, 1
      %p376 = scmp.ne.s32.totalorder %s371, %s373
      %p377 = scmp.eq.s32.totalorder %s31, 0
      %p378 = por %p376, %p377
      %p379 = scmp.ne.s32.totalorder %s371, %s373
      %p380 = scmp.eq.s32.totalorder %s36, 1
      %p381 = por %p379, %p380
      %p382 = scmp.ne.s32.totalorder %s373, %s374
      %p383 = scmp.eq.s32.totalorder %s36, 0
      %p384 = por %p382, %p383
      %p385 = scmp.ne.s32.totalorder %s373, %s374
      %p386 = scmp.eq.s32.totalorder %s37, 1
      %p387 = por %p385, %p386
      %p389 = scmp.ne.s32.totalorder %s374, %s388
      %p390 = scmp.eq.s32.totalorder %s37, 0
      %p391 = por %p389, %p390
      %s393 = sadd.s32 %s392, 1
      %p396 = scmp.eq.s32.totalorder %s31, 1
      %p397 = scmp.ne.s32.totalorder %s392, %s394
      %p398 = scmp.eq.s32.totalorder %s31, 0
      %p399 = por %p397, %p398
      %p400 = scmp.ne.s32.totalorder %s392, %s394
      %p401 = scmp.eq.s32.totalorder %s36, 1
      %p402 = por %p400, %p401
      %p403 = scmp.ne.s32.totalorder %s394, %s395
      %p404 = scmp.eq.s32.totalorder %s36, 0
      %p405 = por %p403, %p404
      %p406 = scmp.ne.s32.totalorder %s394, %s395
      %p407 = scmp.eq.s32.totalorder %s37, 1
      %p408 = por %p406, %p407
      %p410 = scmp.ne.s32.totalorder %s395, %s409
      %p411 = scmp.eq.s32.totalorder %s37, 0
      %p412 = por %p410, %p411
      %s413 = ssub.s32 %s38, %s50
      %s414 = ssub.s32 %s39, %s46
      %s415 = sor.u32 %s413, %s414
      %p416 = scmp.eq.s32.totalorder %s415, 0
      %s418 = sadd.s32 %s417, 1
      %s419 = scalar_select %p416, %s417, %s418
      %p422 = pneg %p416
      %p423 = scmp.eq.s32.totalorder %s31, 1
      %p424 = por %p422, %p423
      %p425 = scmp.ne.s32.totalorder %s417, %s420
      %p426 = scmp.eq.s32.totalorder %s31, 0
      %p427 = por %p425, %p426
      %p428 = scmp.ne.s32.totalorder %s417, %s420
      %p429 = scmp.eq.s32.totalorder %s36, 1
      %p430 = por %p428, %p429
      %p431 = scmp.ne.s32.totalorder %s420, %s421
      %p432 = scmp.eq.s32.totalorder %s36, 0
      %p433 = por %p431, %p432
      %p434 = scmp.ne.s32.totalorder %s420, %s421
      %p435 = scmp.eq.s32.totalorder %s37, 1
      %p436 = por %p434, %p435
      %p438 = scmp.ne.s32.totalorder %s421, %s437
      %p439 = scmp.eq.s32.totalorder %s37, 0
      %p440 = por %p438, %p439
      %p441 = scmp.le.s32.totalorder 1, %s31
      %p442 = scmp.lt.s32.totalorder %s31, 3
      %p443 = pnand %p441, %p442
      %p444 = pneg %p443
      // Predicated region
      $region9: #{tpu_custom_call.1} parent=5 // pred_check
        _
      $region10: #{tpu_custom_call.1} parent=5 // pred_check_branch
        %446 = sbr.rel (%p443) target = $region12
      $region11: #{tpu_custom_call.1} parent=5 // pred_region
        %s447 = ssub.s32 %s31, 1
        // Predicated region
        $region13: #{tpu_custom_call.1} parent=11 // pred_check
          %p448 = pneg %p90
        $region14: #{tpu_custom_call.1} parent=11 // pred_check_branch
          %450 = sbr.rel (%p448) target = $region16
        $region15: #{tpu_custom_call.1} parent=11 // pred_region
          _
        $region16: #{tpu_custom_call.1} parent=11 // pred_fallthru
          _
        // Predicated region
        $region17: #{tpu_custom_call.1} parent=11 // pred_check
          %p451 = pneg %p111
        $region18: #{tpu_custom_call.1} parent=11 // pred_check_branch
          %453 = sbr.rel (%p451) target = $region20
        $region19: #{tpu_custom_call.1} parent=11 // pred_region
          _
        $region20: #{tpu_custom_call.1} parent=11 // pred_fallthru
          _
        // Predicated region
        $region21: #{tpu_custom_call.1} parent=11 // pred_check
          %p454 = pneg %p132
        $region22: #{tpu_custom_call.1} parent=11 // pred_check_branch
          %456 = sbr.rel (%p454) target = $region24
        $region23: #{tpu_custom_call.1} parent=11 // pred_region
          _
        $region24: #{tpu_custom_call.1} parent=11 // pred_fallthru
          _
        // Predicated region
        $region25: #{tpu_custom_call.1} parent=11 // pred_check
          %p457 = pneg %p153
        $region26: #{tpu_custom_call.1} parent=11 // pred_check_branch
          %459 = sbr.rel (%p457) target = $region28
        $region27: #{tpu_custom_call.1} parent=11 // pred_region
          _
        $region28: #{tpu_custom_call.1} parent=11 // pred_fallthru
          _
        // Predicated region
        $region29: #{tpu_custom_call.1} parent=11 // pred_check
          %p460 = pneg %p174
        $region30: #{tpu_custom_call.1} parent=11 // pred_check_branch
          %462 = sbr.rel (%p460) target = $region32
        $region31: #{tpu_custom_call.1} parent=11 // pred_region
          _
        $region32: #{tpu_custom_call.1} parent=11 // pred_fallthru
          _
        // Predicated region
        $region33: #{tpu_custom_call.1} parent=11 // pred_check
          %p463 = pneg %p195
        $region34: #{tpu_custom_call.1} parent=11 // pred_check_branch
          %465 = sbr.rel (%p463) target = $region36
        $region35: #{tpu_custom_call.1} parent=11 // pred_region
          _
        $region36: #{tpu_custom_call.1} parent=11 // pred_fallthru
          _
        // Predicated region
        $region37: #{tpu_custom_call.1} parent=11 // pred_check
          %p466 = pneg %p216
        $region38: #{tpu_custom_call.1} parent=11 // pred_check_branch
          %468 = sbr.rel (%p466) target = $region40
        $region39: #{tpu_custom_call.1} parent=11 // pred_region
          %470 = vsyncadd [#allocation8], 0
          %s471 = sshll.u32 %s7, 4
          %s472 = int_to_ptr.hbm [resolvable:$true] %s471
          %s473 = sshll.u32 [#allocation7], 4
          %s474 = int_to_ptr.vmem [resolvable:$true] %s473
          %479 = dma.hbm_to_vmem [thread:$0]  %s472, 1024, %s474, [#allocation8], 64, 64, 4
        $region40: #{tpu_custom_call.1} parent=11 // pred_fallthru
          _
        // Predicated region
        $region41: #{tpu_custom_call.1} parent=11 // pred_check
          %p480 = pneg %p237
        $region42: #{tpu_custom_call.1} parent=11 // pred_check_branch
          %482 = sbr.rel (%p480) target = $region44
        $region43: #{tpu_custom_call.1} parent=11 // pred_region
          _
        $region44: #{tpu_custom_call.1} parent=11 // pred_fallthru
          _
        // Predicated region
        $region45: #{tpu_custom_call.1} parent=11 // pred_check
          %p483 = pneg %p258
        $region46: #{tpu_custom_call.1} parent=11 // pred_check_branch
          %485 = sbr.rel (%p483) target = $region48
        $region47: #{tpu_custom_call.1} parent=11 // pred_region
          _
        $region48: #{tpu_custom_call.1} parent=11 // pred_fallthru
          _
        // Predicated region
        $region49: #{tpu_custom_call.1} parent=11 // pred_check
          %p486 = pneg %p279
        $region50: #{tpu_custom_call.1} parent=11 // pred_check_branch
          %488 = sbr.rel (%p486) target = $region52
        $region51: #{tpu_custom_call.1} parent=11 // pred_region
          _
        $region52: #{tpu_custom_call.1} parent=11 // pred_fallthru
          _
        // Predicated region
        $region53: #{tpu_custom_call.1} parent=11 // pred_check
          %p489 = pneg %p300
        $region54: #{tpu_custom_call.1} parent=11 // pred_check_branch
          %491 = sbr.rel (%p489) target = $region56
        $region55: #{tpu_custom_call.1} parent=11 // pred_region
          %493 = vsyncadd [#allocation8], 0
          %s495 = sshll.u32 %s11, 4
          %s496 = int_to_ptr.hbm [resolvable:$true] %s495
          %s497 = sshll.u32 [#allocation9], 4
          %s498 = int_to_ptr.vmem [resolvable:$true] %s497
          %500 = dma.hbm_to_vmem [thread:$0]  %s496, 16, %s498, [#allocation8]
        $region56: #{tpu_custom_call.1} parent=11 // pred_fallthru
          _
        // Predicated region
        $region57: #{tpu_custom_call.1} parent=11 // pred_check
          %p501 = pneg %p321
        $region58: #{tpu_custom_call.1} parent=11 // pred_check_branch
          %503 = sbr.rel (%p501) target = $region60
        $region59: #{tpu_custom_call.1} parent=11 // pred_region
          %505 = vsyncadd [#allocation11], 0
          %s507 = sshll.u32 %s12, 4
          %s508 = int_to_ptr.hbm [resolvable:$true] %s507
          %s509 = sshll.u32 [#allocation10], 4
          %s510 = int_to_ptr.vmem [resolvable:$true] %s509
          %512 = dma.hbm_to_vmem [thread:$0]  %s508, 16, %s510, [#allocation11]
        $region60: #{tpu_custom_call.1} parent=11 // pred_fallthru
          _
        // Predicated region
        $region61: #{tpu_custom_call.1} parent=11 // pred_check
          %p513 = pneg %p342
        $region62: #{tpu_custom_call.1} parent=11 // pred_check_branch
          %515 = sbr.rel (%p513) target = $region64
        $region63: #{tpu_custom_call.1} parent=11 // pred_region
          _
        $region64: #{tpu_custom_call.1} parent=11 // pred_fallthru
          _
        // Predicated region
        $region65: #{tpu_custom_call.1} parent=11 // pred_check
          %p516 = pneg %p363
        $region66: #{tpu_custom_call.1} parent=11 // pred_check_branch
          %518 = sbr.rel (%p516) target = $region68
        $region67: #{tpu_custom_call.1} parent=11 // pred_region
          _
        $region68: #{tpu_custom_call.1} parent=11 // pred_fallthru
          _
        // Predicated region
        $region69: #{tpu_custom_call.1} parent=11 // pred_check
          %p519 = pneg %p384
        $region70: #{tpu_custom_call.1} parent=11 // pred_check_branch
          %521 = sbr.rel (%p519) target = $region72
        $region71: #{tpu_custom_call.1} parent=11 // pred_region
          %523 = vsyncadd [#allocation11], 0
          %s524 = sshll.u32 %s15, 4
          %s525 = int_to_ptr.hbm [resolvable:$true] %s524
          %s526 = sshll.u32 [#allocation12], 4
          %s527 = int_to_ptr.vmem [resolvable:$true] %s526
          %532 = dma.hbm_to_vmem [thread:$0]  %s525, 3072, %s527, [#allocation11], 192, 192, 12
        $region72: #{tpu_custom_call.1} parent=11 // pred_fallthru
          _
        // Predicated region
        $region73: #{tpu_custom_call.1} parent=11 // pred_check
          %p533 = pneg %p405
        $region74: #{tpu_custom_call.1} parent=11 // pred_check_branch
          %535 = sbr.rel (%p533) target = $region76
        $region75: #{tpu_custom_call.1} parent=11 // pred_region
          _
        $region76: #{tpu_custom_call.1} parent=11 // pred_fallthru
          _
      $region12: #{tpu_custom_call.1} parent=5 // pred_fallthru
        _
      %p536 = scmp.lt.s32.totalorder %s31, 2
      // Predicated region
      $region77: #{tpu_custom_call.1} parent=5 // pred_check
        %p537 = pneg %p536
      $region78: #{tpu_custom_call.1} parent=5 // pred_check_branch
        %539 = sbr.rel (%p537) target = $region80
      $region79: #{tpu_custom_call.1} parent=5 // pred_region
        // Predicated region
        $region81: #{tpu_custom_call.1} parent=79 // pred_check
          %p540 = pneg %p63
        $region82: #{tpu_custom_call.1} parent=79 // pred_check_branch
          %542 = sbr.rel (%p540) target = $region84
        $region83: #{tpu_custom_call.1} parent=79 // pred_region
          %s543 = sand.u32 %s53, 1
          %s544 = scalar_lea.sflag [#allocation5], %s543
          %s545 = sand.u32 %s53, 1
          %s546 = smul.addr %s545, 8
          %s547 = scalar_lea.vmem [#allocation4], %s546
          %549 = vsyncadd %s544, 0
          %s550 = smul.addr %s38, 8
          %s551 = scalar_lea.hbm %s0, %s550
          %s553 = sshll.u32 %s551, 4
          %s554 = int_to_ptr.hbm [resolvable:$true] %s553
          %s555 = sshll.u32 %s547, 4
          %s556 = int_to_ptr.vmem [resolvable:$true] %s555
          %558 = dma.hbm_to_vmem [thread:$0]  %s554, 128, %s556, %s544
        $region84: #{tpu_custom_call.1} parent=79 // pred_fallthru
          _
      $region80: #{tpu_custom_call.1} parent=5 // pred_fallthru
        _
      %p559 = scmp.le.s32.totalorder 1, %s31
      %p560 = scmp.lt.s32.totalorder %s31, 3
      %p561 = pnand %p559, %p560
      %p562 = pneg %p561
      // Predicated region
      $region85: #{tpu_custom_call.1} parent=5 // pred_check
        _
      $region86: #{tpu_custom_call.1} parent=5 // pred_check_branch
        %564 = sbr.rel (%p561) target = $region88
      $region87: #{tpu_custom_call.1} parent=5 // pred_region
        %s565 = ssub.s32 %s31, 1
        %s566 = sand.u32 %s56, 1
        %s567 = scalar_lea.sflag [#allocation5], %s566
        %s568 = sand.u32 %s56, 1
        %s569 = smul.addr %s568, 8
        %s570 = scalar_lea.vmem [#allocation4], %s569
        // Predicated region
        $region89: #{tpu_custom_call.1} parent=87 // pred_check
          %p571 = pneg %p69
        $region90: #{tpu_custom_call.1} parent=87 // pred_check_branch
          %573 = sbr.rel (%p571) target = $region92
        $region91: #{tpu_custom_call.1} parent=87 // pred_region
          %575 = dma.done %s567, 128
        $region92: #{tpu_custom_call.1} parent=87 // pred_fallthru
          _
        // Predicated region
        $region93: #{tpu_custom_call.1} parent=87 // pred_check
          %p576 = pneg %p216
        $region94: #{tpu_custom_call.1} parent=87 // pred_check_branch
          %578 = sbr.rel (%p576) target = $region96
        $region95: #{tpu_custom_call.1} parent=87 // pred_region
          %580 = dma.done [#allocation8], 1024
        $region96: #{tpu_custom_call.1} parent=87 // pred_fallthru
          _
        // Predicated region
        $region97: #{tpu_custom_call.1} parent=87 // pred_check
          %p581 = pneg %p300
        $region98: #{tpu_custom_call.1} parent=87 // pred_check_branch
          %583 = sbr.rel (%p581) target = $region100
        $region99: #{tpu_custom_call.1} parent=87 // pred_region
          %585 = dma.done [#allocation8], 16
        $region100: #{tpu_custom_call.1} parent=87 // pred_fallthru
          _
        // Predicated region
        $region101: #{tpu_custom_call.1} parent=87 // pred_check
          %p586 = pneg %p321
        $region102: #{tpu_custom_call.1} parent=87 // pred_check_branch
          %588 = sbr.rel (%p586) target = $region104
        $region103: #{tpu_custom_call.1} parent=87 // pred_region
          %590 = dma.done [#allocation11], 16
        $region104: #{tpu_custom_call.1} parent=87 // pred_fallthru
          _
        // Predicated region
        $region105: #{tpu_custom_call.1} parent=87 // pred_check
          %p591 = pneg %p384
        $region106: #{tpu_custom_call.1} parent=87 // pred_check_branch
          %593 = sbr.rel (%p591) target = $region108
        $region107: #{tpu_custom_call.1} parent=87 // pred_region
          %595 = dma.done [#allocation11], 3072
        $region108: #{tpu_custom_call.1} parent=87 // pred_fallthru
          _
        %s596 = sand.u32 %s56, 1
        %s597 = scalar_lea.sflag [#allocation5], %s596
        %s598 = sand.u32 %s56, 1
        %s599 = smul.addr %s598, 8
        %s600 = scalar_lea.vmem [#allocation4], %s599
        %p601 = pneg %p69
        %p602 = pneg %p66
        %p603 = pneg %p90
        %p604 = pneg %p87
        %p605 = pneg %p111
        %p606 = pneg %p108
        %p607 = pneg %p132
        %p608 = pneg %p129
        %p609 = pneg %p153
        %p610 = pneg %p150
        %p611 = pneg %p174
        %p612 = pneg %p171
        %p613 = pneg %p195
        %p614 = pneg %p192
        %p615 = pneg %p216
        %p616 = pneg %p213
        %p617 = pneg %p237
        %p618 = pneg %p234
        %p619 = pneg %p258
        %p620 = pneg %p255
        %p621 = pneg %p279
        %p622 = pneg %p276
        %p623 = pneg %p300
        %p624 = pneg %p297
        %p625 = pneg %p321
        %p626 = pneg %p318
        %p627 = pneg %p342
        %p628 = pneg %p339
        %p629 = pneg %p363
        %p630 = pneg %p360
        %p631 = pneg %p384
        %p632 = pneg %p381
        %p633 = pneg %p405
        %p634 = pneg %p402
        %p635 = pneg %p433
        %p636 = pneg %p430
        %s637 = sand.u32 %s420, 1
        %s638 = scalar_lea.sflag [#allocation6], %s637
        %s639 = sand.u32 %s420, 1
        %s640 = smul.addr %s639, 8
        %s641 = scalar_lea.vmem [#allocation13], %s640
        %p643 = scmp.eq.s32.totalorder %s41, 0
        // Predicated region
        $region109: #{tpu_custom_call.1} parent=87 // pred_check
          %p644 = pneg %p643
        $region110: #{tpu_custom_call.1} parent=87 // pred_check_branch
          %646 = sbr.rel (%p644) target = $region112
        $region111: #{tpu_custom_call.1} parent=87 // pred_region
          %v647 = vld [vmem:[%s570] sm:$0xff]
          %v648 = vld [vmem:[%s1] sm:$0x1]
          %v649 = vld [vmem:[%s2] sm:$0x1]
          %650 = vadd.xlane.f32.xlu0 %v647
          %v651 = vpop.xlane.xlu0 %650
          %v652 = vrcp.pop 128.0
          %v653 = vmul.f32 128.0, %v652
          %v654 = vsub.f32 1.0, %v653
          %v655 = vmul.f32 %v652, %v654
          %v656 = vadd.f32 %v652, %v655
          %vm657 = vweird.f32 %v652
          %v658 = vsel %vm657, %v652, %v656
          %v659 = vmul.f32 %v651, %v658
          %v660 = vsub.f32 %v647, %v659
          %v661 = vmul.f32 %v660, %v660
          %662 = vadd.xlane.f32.xlu0 %v661
          %v663 = vpop.xlane.xlu0 %662
          %v664 = vmul.f32 %v663, %v658
          %v665 = vadd.f32 %v664, 1e-05
          %v666 = vrsqrt.pop %v665
          %v667 = vmul.f32 %v666, %v665
          %v668 = vmul.f32 %v667, %v666
          %v669 = vmul.f32 0.5, %v668
          %v670 = vsub.f32 1.5, %v669
          %v671 = vmul.f32 %v666, %v670
          %vm672 = vweird.f32 %v665
          %vm673 = vweird.f32 %v666
          %vm674 = vmor %vm672, %vm673
          %v675 = vsel %vm674, %v666, %v671
          %v676 = vmul.f32 %v660, %v675
          %v678 = vperm.slane %v648, 0
          %v680 = vmul.f32 %v676, %v678
          %v682 = vperm.slane %v649, 0
          %v684 = vadd.f32 %v680, %v682
          %v685 = vpack.c.bf16 %v684, %v684
          %v686 = vld [vmem:[%s5] sm:$0xf]
          %v687 = vld [vmem:[%s5 + $0x4] sm:$0xf]
          %v688 = vld [vmem:[%s5 + $0x8] sm:$0xf]
          %v689 = vld [vmem:[%s5 + $0xc] sm:$0xf]
          %v690 = vld [vmem:[%s5 + $0x10] sm:$0xf]
          %v691 = vld [vmem:[%s5 + $0x14] sm:$0xf]
          %v692 = vld [vmem:[%s5 + $0x18] sm:$0xf]
          %v693 = vld [vmem:[%s5 + $0x1c] sm:$0xf]
          %v694 = vld [vmem:[%s5 + $0x20] sm:$0xf]
          %v695 = vld [vmem:[%s5 + $0x24] sm:$0xf]
          %v696 = vld [vmem:[%s5 + $0x28] sm:$0xf]
          %v697 = vld [vmem:[%s5 + $0x2c] sm:$0xf]
          %v698 = vld [vmem:[%s5 + $0x30] sm:$0xf]
          %v699 = vld [vmem:[%s5 + $0x34] sm:$0xf]
          %v700 = vld [vmem:[%s5 + $0x38] sm:$0xf]
          %v701 = vld [vmem:[%s5 + $0x3c] sm:$0xf]
          %v702 = vld [vmem:[%s6] sm:$0x1]
          %v704 = vperm.slane %v702, 0
          %v722 = vunpack.c.l.b16 %v686
          %v723 = vunpack.c.l.b16 %v687
          %v724 = vunpack.c.l.b16 %v688
          %v725 = vunpack.c.l.b16 %v689
          %v726 = vunpack.c.l.b16 %v690
          %v727 = vunpack.c.l.b16 %v691
          %v728 = vunpack.c.l.b16 %v692
          %v729 = vunpack.c.l.b16 %v693
          %v730 = vunpack.c.l.b16 %v694
          %v731 = vunpack.c.l.b16 %v695
          %v732 = vunpack.c.l.b16 %v696
          %v733 = vunpack.c.l.b16 %v697
          %v734 = vunpack.c.l.b16 %v698
          %v735 = vunpack.c.l.b16 %v699
          %v736 = vunpack.c.l.b16 %v700
          %v737 = vunpack.c.l.b16 %v701
          %v738 = vpack.c.b16 %v723, %v722
          %v739 = vpack.c.b16 %v725, %v724
          %v740 = vpack.c.b16 %v727, %v726
          %v741 = vpack.c.b16 %v729, %v728
          %v742 = vpack.c.b16 %v731, %v730
          %v743 = vpack.c.b16 %v733, %v732
          %v744 = vpack.c.b16 %v735, %v734
          %v745 = vpack.c.b16 %v737, %v736
          %754 = vmatpush.bf16.xpose.msra.mxu0 %v745
          %755 = vmatpush.bf16.xpose.msra.mxu0 %v744
          %756 = vmatpush.bf16.xpose.msra.mxu0 %v743
          %757 = vmatpush.bf16.xpose.msra.mxu0 %v742
          %758 = vmatpush.bf16.xpose.msra.mxu0 %v741
          %759 = vmatpush.bf16.xpose.msra.mxu0 %v740
          %760 = vmatpush.bf16.xpose.msra.mxu0 %v739
          %761 = vmatpush.bf16.xpose.msra.mxu0 %v738
          %762 = vmatmul.bf16.gmra.mxu0 %v685
          %v763 = vpop.f32.mrf.mxu0
          %v764 = vadd.f32 %v704, %v763
          %v765 = vpop.f32.mrf.mxu0
          %766 = vdwg.mxu0
          %v767 = vld [vmem:[#allocation7] sm:$0xf]
          %v768 = vld [vmem:[#allocation7 + $0x4] sm:$0xf]
          %v769 = vld [vmem:[#allocation7 + $0x8] sm:$0xf]
          %v770 = vld [vmem:[#allocation7 + $0xc] sm:$0xf]
          %v771 = vld [vmem:[#allocation7 + $0x10] sm:$0xf]
          %v772 = vld [vmem:[#allocation7 + $0x14] sm:$0xf]
          %v773 = vld [vmem:[#allocation7 + $0x18] sm:$0xf]
          %v774 = vld [vmem:[#allocation7 + $0x1c] sm:$0xf]
          %v775 = vld [vmem:[#allocation7 + $0x20] sm:$0xf]
          %v776 = vld [vmem:[#allocation7 + $0x24] sm:$0xf]
          %v777 = vld [vmem:[#allocation7 + $0x28] sm:$0xf]
          %v778 = vld [vmem:[#allocation7 + $0x2c] sm:$0xf]
          %v779 = vld [vmem:[#allocation7 + $0x30] sm:$0xf]
          %v780 = vld [vmem:[#allocation7 + $0x34] sm:$0xf]
          %v781 = vld [vmem:[#allocation7 + $0x38] sm:$0xf]
          %v782 = vld [vmem:[#allocation7 + $0x3c] sm:$0xf]
          %v783 = vld [vmem:[%s8] sm:$0x1]
          %v785 = vperm.slane %v783, 0
          %v803 = vunpack.c.l.b16 %v767
          %v804 = vunpack.c.l.b16 %v768
          %v805 = vunpack.c.l.b16 %v769
          %v806 = vunpack.c.l.b16 %v770
          %v807 = vunpack.c.l.b16 %v771
          %v808 = vunpack.c.l.b16 %v772
          %v809 = vunpack.c.l.b16 %v773
          %v810 = vunpack.c.l.b16 %v774
          %v811 = vunpack.c.l.b16 %v775
          %v812 = vunpack.c.l.b16 %v776
          %v813 = vunpack.c.l.b16 %v777
          %v814 = vunpack.c.l.b16 %v778
          %v815 = vunpack.c.l.b16 %v779
          %v816 = vunpack.c.l.b16 %v780
          %v817 = vunpack.c.l.b16 %v781
          %v818 = vunpack.c.l.b16 %v782
          %v819 = vpack.c.b16 %v804, %v803
          %v820 = vpack.c.b16 %v806, %v805
          %v821 = vpack.c.b16 %v808, %v807
          %v822 = vpack.c.b16 %v810, %v809
          %v823 = vpack.c.b16 %v812, %v811
          %v824 = vpack.c.b16 %v814, %v813
          %v825 = vpack.c.b16 %v816, %v815
          %v826 = vpack.c.b16 %v818, %v817
          %835 = vmatpush.bf16.xpose.msra.mxu0 %v826
          %836 = vmatpush.bf16.xpose.msra.mxu0 %v825
          %837 = vmatpush.bf16.xpose.msra.mxu0 %v824
          %838 = vmatpush.bf16.xpose.msra.mxu0 %v823
          %839 = vmatpush.bf16.xpose.msra.mxu0 %v822
          %840 = vmatpush.bf16.xpose.msra.mxu0 %v821
          %841 = vmatpush.bf16.xpose.msra.mxu0 %v820
          %842 = vmatpush.bf16.xpose.msra.mxu0 %v819
          %843 = vmatmul.bf16.gmra.mxu0 %v685
          %v844 = vpop.f32.mrf.mxu0
          %v845 = vadd.f32 %v785, %v844
          %v846 = vpop.f32.mrf.mxu0
          %847 = vdwg.mxu0
          %849 = vrot.lane.b32.xlu0 %v764, 96
          %v850 = vpop.permute.xlu0 %849
          %852 = vrot.lane.b32.xlu0 %v764, 64
          %v853 = vpop.permute.xlu0 %852
          %855 = vrot.lane.b32.xlu0 %v764, 32
          %v856 = vpop.permute.xlu0 %855
          %v858 = vpack.c.bf16 %v764, %v764
          %v859 = vpack.c.bf16 %v850, %v850
          %v860 = vpack.c.bf16 %v853, %v853
          %v861 = vpack.c.bf16 %v856, %v856
          %vm862 = vcmask 257024
          %863 = vst.msk [vmem:[#allocation2] sm:$0xf] %vm862, %v858
          %864 = vst.msk [vmem:[#allocation2 + $0x4] sm:$0xf] %vm862, %v859
          %865 = vst.msk [vmem:[#allocation2 + $0x8] sm:$0xf] %vm862, %v860
          %866 = vst.msk [vmem:[#allocation2 + $0xc] sm:$0xf] %vm862, %v861
          %868 = vrot.lane.b32.xlu0 %v845, 96
          %v869 = vpop.permute.xlu0 %868
          %871 = vrot.lane.b32.xlu0 %v845, 64
          %v872 = vpop.permute.xlu0 %871
          %874 = vrot.lane.b32.xlu0 %v845, 32
          %v875 = vpop.permute.xlu0 %874
          %v877 = vpack.c.bf16 %v845, %v845
          %v878 = vpack.c.bf16 %v869, %v869
          %v879 = vpack.c.bf16 %v872, %v872
          %v880 = vpack.c.bf16 %v875, %v875
          %881 = vst.msk [vmem:[#allocation3] sm:$0xf] %vm862, %v877
          %882 = vst.msk [vmem:[#allocation3 + $0x4] sm:$0xf] %vm862, %v878
          %883 = vst.msk [vmem:[#allocation3 + $0x8] sm:$0xf] %vm862, %v879
          %884 = vst.msk [vmem:[#allocation3 + $0xc] sm:$0xf] %vm862, %v880
        $region112: #{tpu_custom_call.1} parent=87 // pred_fallthru
          _
        %s885 = smul.u32 %s41, 8
        %s886 = scalar_lea.vmem %s570, %s885 [#allocation4]
        %v887 = vld [vmem:[%s886] sm:$0xff]
        %v888 = vld [vmem:[%s1] sm:$0x1]
        %v889 = vld [vmem:[%s2] sm:$0x1]
        %890 = vadd.xlane.f32.xlu0 %v887
        %v891 = vpop.xlane.xlu0 %890
        %v892 = vrcp.pop 128.0
        %v893 = vmul.f32 128.0, %v892
        %v894 = vsub.f32 1.0, %v893
        %v895 = vmul.f32 %v892, %v894
        %v896 = vadd.f32 %v892, %v895
        %vm897 = vweird.f32 %v892
        %v898 = vsel %vm897, %v892, %v896
        %v899 = vmul.f32 %v891, %v898
        %v900 = vsub.f32 %v887, %v899
        %v901 = vmul.f32 %v900, %v900
        %902 = vadd.xlane.f32.xlu0 %v901
        %v903 = vpop.xlane.xlu0 %902
        %v904 = vmul.f32 %v903, %v898
        %v905 = vadd.f32 %v904, 1e-05
        %v906 = vrsqrt.pop %v905
        %v907 = vmul.f32 %v906, %v905
        %v908 = vmul.f32 %v907, %v906
        %v909 = vmul.f32 0.5, %v908
        %v910 = vsub.f32 1.5, %v909
        %v911 = vmul.f32 %v906, %v910
        %vm912 = vweird.f32 %v905
        %vm913 = vweird.f32 %v906
        %vm914 = vmor %vm912, %vm913
        %v915 = vsel %vm914, %v906, %v911
        %v916 = vmul.f32 %v900, %v915
        %v918 = vperm.slane %v888, 0
        %v920 = vmul.f32 %v916, %v918
        %v922 = vperm.slane %v889, 0
        %v924 = vadd.f32 %v920, %v922
        %v925 = vpack.c.bf16 %v924, %v924
        %v926 = vld [vmem:[%s3] sm:$0xf]
        %v927 = vld [vmem:[%s3 + $0x4] sm:$0xf]
        %v928 = vld [vmem:[%s3 + $0x8] sm:$0xf]
        %v929 = vld [vmem:[%s3 + $0xc] sm:$0xf]
        %v930 = vld [vmem:[%s3 + $0x10] sm:$0xf]
        %v931 = vld [vmem:[%s3 + $0x14] sm:$0xf]
        %v932 = vld [vmem:[%s3 + $0x18] sm:$0xf]
        %v933 = vld [vmem:[%s3 + $0x1c] sm:$0xf]
        %v934 = vld [vmem:[%s3 + $0x20] sm:$0xf]
        %v935 = vld [vmem:[%s3 + $0x24] sm:$0xf]
        %v936 = vld [vmem:[%s3 + $0x28] sm:$0xf]
        %v937 = vld [vmem:[%s3 + $0x2c] sm:$0xf]
        %v938 = vld [vmem:[%s3 + $0x30] sm:$0xf]
        %v939 = vld [vmem:[%s3 + $0x34] sm:$0xf]
        %v940 = vld [vmem:[%s3 + $0x38] sm:$0xf]
        %v941 = vld [vmem:[%s3 + $0x3c] sm:$0xf]
        %v942 = vld [vmem:[%s4] sm:$0x1]
        %v943 = vld [vmem:[%s4 + $0x1] sm:$0x1]
        %v944 = vld [vmem:[%s4 + $0x2] sm:$0x1]
        %v945 = vld [vmem:[%s4 + $0x3] sm:$0x1]
        %v950 = vperm.slane %v942, 0
        %v951 = vperm.slane %v943, 0
        %v952 = vperm.slane %v944, 0
        %v953 = vperm.slane %v945, 0
        %v962 = vunpack.c.l.b16 %v926
        %v963 = vunpack.c.l.b16 %v927
        %v964 = vunpack.c.l.b16 %v928
        %v965 = vunpack.c.l.b16 %v929
        %v966 = vpack.c.b16 %v963, %v962
        %v967 = vpack.c.b16 %v965, %v964
        %970 = vmatpush.bf16.xpose.msra.mxu0 0
        %971 = vmatpush.bf16.xpose.msra.mxu0 0
        %972 = vmatpush.bf16.xpose.msra.mxu0 0
        %973 = vmatpush.bf16.xpose.msra.mxu0 0
        %974 = vmatpush.bf16.xpose.msra.mxu0 0
        %975 = vmatpush.bf16.xpose.msra.mxu0 0
        %976 = vmatpush.bf16.xpose.msra.mxu0 %v967
        %977 = vmatpush.bf16.xpose.msra.mxu0 %v966
        %978 = vmatmul.bf16.gmra.mxu0 %v925
        %v979 = vpop.f32.mrf.mxu0
        %v980 = vadd.f32 %v950, %v979
        %v981 = vpop.f32.mrf.mxu0
        %982 = vdwg.mxu0
        %v987 = vunpack.c.l.b16 %v930
        %v988 = vunpack.c.l.b16 %v931
        %v989 = vunpack.c.l.b16 %v932
        %v990 = vunpack.c.l.b16 %v933
        %v991 = vpack.c.b16 %v988, %v987
        %v992 = vpack.c.b16 %v990, %v989
        %995 = vmatpush.bf16.xpose.msra.mxu0 0
        %996 = vmatpush.bf16.xpose.msra.mxu0 0
        %997 = vmatpush.bf16.xpose.msra.mxu0 0
        %998 = vmatpush.bf16.xpose.msra.mxu0 0
        %999 = vmatpush.bf16.xpose.msra.mxu0 0
        %1000 = vmatpush.bf16.xpose.msra.mxu0 0
        %1001 = vmatpush.bf16.xpose.msra.mxu0 %v992
        %1002 = vmatpush.bf16.xpose.msra.mxu0 %v991
        %1003 = vmatmul.bf16.gmra.mxu0 %v925
        %v1004 = vpop.f32.mrf.mxu0
        %v1005 = vadd.f32 %v951, %v1004
        %v1006 = vpop.f32.mrf.mxu0
        %1007 = vdwg.mxu0
        %v1012 = vunpack.c.l.b16 %v934
        %v1013 = vunpack.c.l.b16 %v935
        %v1014 = vunpack.c.l.b16 %v936
        %v1015 = vunpack.c.l.b16 %v937
        %v1016 = vpack.c.b16 %v1013, %v1012
        %v1017 = vpack.c.b16 %v1015, %v1014
        %1020 = vmatpush.bf16.xpose.msra.mxu0 0
        %1021 = vmatpush.bf16.xpose.msra.mxu0 0
        %1022 = vmatpush.bf16.xpose.msra.mxu0 0
        %1023 = vmatpush.bf16.xpose.msra.mxu0 0
        %1024 = vmatpush.bf16.xpose.msra.mxu0 0
        %1025 = vmatpush.bf16.xpose.msra.mxu0 0
        %1026 = vmatpush.bf16.xpose.msra.mxu0 %v1017
        %1027 = vmatpush.bf16.xpose.msra.mxu0 %v1016
        %1028 = vmatmul.bf16.gmra.mxu0 %v925
        %v1029 = vpop.f32.mrf.mxu0
        %v1030 = vadd.f32 %v952, %v1029
        %v1031 = vpop.f32.mrf.mxu0
        %1032 = vdwg.mxu0
        %v1037 = vunpack.c.l.b16 %v938
        %v1038 = vunpack.c.l.b16 %v939
        %v1039 = vunpack.c.l.b16 %v940
        %v1040 = vunpack.c.l.b16 %v941
        %v1041 = vpack.c.b16 %v1038, %v1037
        %v1042 = vpack.c.b16 %v1040, %v1039
        %1045 = vmatpush.bf16.xpose.msra.mxu0 0
        %1046 = vmatpush.bf16.xpose.msra.mxu0 0
        %1047 = vmatpush.bf16.xpose.msra.mxu0 0
        %1048 = vmatpush.bf16.xpose.msra.mxu0 0
        %1049 = vmatpush.bf16.xpose.msra.mxu0 0
        %1050 = vmatpush.bf16.xpose.msra.mxu0 0
        %1051 = vmatpush.bf16.xpose.msra.mxu0 %v1042
        %1052 = vmatpush.bf16.xpose.msra.mxu0 %v1041
        %1053 = vmatmul.bf16.gmra.mxu0 %v925
        %v1054 = vpop.f32.mrf.mxu0
        %v1055 = vadd.f32 %v953, %v1054
        %v1056 = vpop.f32.mrf.mxu0
        %1057 = vdwg.mxu0
        %v1058 = vpack.c.bf16 %v980, %v980
        %v1059 = vpack.c.bf16 %v1005, %v1005
        %v1060 = vpack.c.bf16 %v1030, %v1030
        %v1061 = vpack.c.bf16 %v1055, %v1055
        %v1062 = vld [vmem:[#allocation2] sm:$0xf]
        %v1063 = vld [vmem:[#allocation2 + $0x4] sm:$0xf]
        %v1064 = vld [vmem:[#allocation2 + $0x8] sm:$0xf]
        %v1065 = vld [vmem:[#allocation2 + $0xc] sm:$0xf]
        %vm1066 = vcmask 261120
        %v1068 = vsel %vm1066, %v1058, 0
        %v1071 = vsel %vm1066, %v1062, 0
        %1073 = vmatpush.bf16.xpose.msra.mxu0 0
        %1074 = vmatpush.bf16.xpose.msra.mxu0 0
        %1075 = vmatpush.bf16.xpose.msra.mxu0 0
        %1076 = vmatpush.bf16.xpose.msra.mxu0 0
        %1077 = vmatpush.bf16.xpose.msra.mxu0 0
        %1078 = vmatpush.bf16.xpose.msra.mxu0 0
        %1079 = vmatpush.bf16.xpose.msra.mxu0 0
        %1080 = vmatpush.bf16.xpose.msra.mxu0 %v1071
        %1081 = vmatmul.bf16.gmra.mxu0 %v1068
        %v1082 = vpop.f32.mrf.mxu0
        %v1083 = vadd.f32 0.0, %v1082
        %v1084 = vpop.f32.mrf.mxu0
        %1085 = vdwg.mxu0
        %v1087 = vsel %vm1066, %v1059, 0
        %v1090 = vsel %vm1066, %v1063, 0
        %1092 = vmatpush.bf16.xpose.msra.mxu0 0
        %1093 = vmatpush.bf16.xpose.msra.mxu0 0
        %1094 = vmatpush.bf16.xpose.msra.mxu0 0
        %1095 = vmatpush.bf16.xpose.msra.mxu0 0
        %1096 = vmatpush.bf16.xpose.msra.mxu0 0
        %1097 = vmatpush.bf16.xpose.msra.mxu0 0
        %1098 = vmatpush.bf16.xpose.msra.mxu0 0
        %1099 = vmatpush.bf16.xpose.msra.mxu0 %v1090
        %1100 = vmatmul.bf16.gmra.mxu0 %v1087
        %v1101 = vpop.f32.mrf.mxu0
        %v1102 = vadd.f32 0.0, %v1101
        %v1103 = vpop.f32.mrf.mxu0
        %1104 = vdwg.mxu0
        %v1106 = vsel %vm1066, %v1060, 0
        %v1109 = vsel %vm1066, %v1064, 0
        %1111 = vmatpush.bf16.xpose.msra.mxu0 0
        %1112 = vmatpush.bf16.xpose.msra.mxu0 0
        %1113 = vmatpush.bf16.xpose.msra.mxu0 0
        %1114 = vmatpush.bf16.xpose.msra.mxu0 0
        %1115 = vmatpush.bf16.xpose.msra.mxu0 0
        %1116 = vmatpush.bf16.xpose.msra.mxu0 0
        %1117 = vmatpush.bf16.xpose.msra.mxu0 0
        %1118 = vmatpush.bf16.xpose.msra.mxu0 %v1109
        %1119 = vmatmul.bf16.gmra.mxu0 %v1106
        %v1120 = vpop.f32.mrf.mxu0
        %v1121 = vadd.f32 0.0, %v1120
        %v1122 = vpop.f32.mrf.mxu0
        %1123 = vdwg.mxu0
        %v1125 = vsel %vm1066, %v1061, 0
        %v1128 = vsel %vm1066, %v1065, 0
        %1130 = vmatpush.bf16.xpose.msra.mxu0 0
        %1131 = vmatpush.bf16.xpose.msra.mxu0 0
        %1132 = vmatpush.bf16.xpose.msra.mxu0 0
        %1133 = vmatpush.bf16.xpose.msra.mxu0 0
        %1134 = vmatpush.bf16.xpose.msra.mxu0 0
        %1135 = vmatpush.bf16.xpose.msra.mxu0 0
        %1136 = vmatpush.bf16.xpose.msra.mxu0 0
        %1137 = vmatpush.bf16.xpose.msra.mxu0 %v1128
        %1138 = vmatmul.bf16.gmra.mxu0 %v1125
        %v1139 = vpop.f32.mrf.mxu0
        %v1140 = vadd.f32 0.0, %v1139
        %v1141 = vpop.f32.mrf.mxu0
        %1142 = vdwg.mxu0
        %vm1143 = vcmask 64512
        %v1144 = vsel %vm1143, %v1083, -inf
        %1145 = vmax.xlane.f32.xlu0 %v1144
        %v1146 = vpop.xlane.xlu0 %1145
        %v1147 = vsel %vm1143, %v1102, -inf
        %1148 = vmax.xlane.f32.xlu0 %v1147
        %v1149 = vpop.xlane.xlu0 %1148
        %v1150 = vsel %vm1143, %v1121, -inf
        %1151 = vmax.xlane.f32.xlu0 %v1150
        %v1152 = vpop.xlane.xlu0 %1151
        %v1153 = vsel %vm1143, %v1140, -inf
        %1154 = vmax.xlane.f32.xlu0 %v1153
        %v1155 = vpop.xlane.xlu0 %1154
        %v1156 = vsub.f32 %v1083, %v1146
        %v1157 = vsub.f32 %v1102, %v1149
        %v1158 = vsub.f32 %v1121, %v1152
        %v1159 = vsub.f32 %v1140, %v1155
        %v1160 = vmul.f32 %v1156, 1.442695
        %v1161 = vpow.pop %v1160
        %v1162 = vmul.f32 %v1157, 1.442695
        %v1163 = vpow.pop %v1162
        %v1164 = vmul.f32 %v1158, 1.442695
        %v1165 = vpow.pop %v1164
        %v1166 = vmul.f32 %v1159, 1.442695
        %v1167 = vpow.pop %v1166
        %v1168 = vsel %vm1143, %v1161, 0.0
        %1169 = vadd.xlane.f32.xlu0 %v1168
        %v1170 = vpop.xlane.xlu0 %1169
        %v1171 = vsel %vm1143, %v1163, 0.0
        %1172 = vadd.xlane.f32.xlu0 %v1171
        %v1173 = vpop.xlane.xlu0 %1172
        %v1174 = vsel %vm1143, %v1165, 0.0
        %1175 = vadd.xlane.f32.xlu0 %v1174
        %v1176 = vpop.xlane.xlu0 %1175
        %v1177 = vsel %vm1143, %v1167, 0.0
        %1178 = vadd.xlane.f32.xlu0 %v1177
        %v1179 = vpop.xlane.xlu0 %1178
        %v1180 = vpack.c.bf16 %v1161, %v1161
        %v1181 = vpack.c.bf16 %v1163, %v1163
        %v1182 = vpack.c.bf16 %v1165, %v1165
        %v1183 = vpack.c.bf16 %v1167, %v1167
        %v1184 = vld [vmem:[#allocation3] sm:$0xf]
        %v1185 = vld [vmem:[#allocation3 + $0x4] sm:$0xf]
        %v1186 = vld [vmem:[#allocation3 + $0x8] sm:$0xf]
        %v1187 = vld [vmem:[#allocation3 + $0xc] sm:$0xf]
        %v1189 = vsel %vm1143, %v1180, 0
        %vm1191 = vcmask 1043456
        %v1193 = vsel %vm1191, %v1184, 0
        %1195 = vmatpush.bf16.msra.mxu0 0
        %1196 = vmatpush.bf16.msra.mxu0 0
        %1197 = vmatpush.bf16.msra.mxu0 0
        %1198 = vmatpush.bf16.msra.mxu0 0
        %1199 = vmatpush.bf16.msra.mxu0 0
        %1200 = vmatpush.bf16.msra.mxu0 0
        %1201 = vmatpush.bf16.msra.mxu0 0
        %1202 = vmatpush.bf16.msra.mxu0 %v1193
        %1203 = vmatmul.bf16.gmra.mxu0 %v1189
        %v1204 = vpop.f32.mrf.mxu0
        %v1205 = vadd.f32 0.0, %v1204
        %v1206 = vpop.f32.mrf.mxu0
        %1207 = vdwg.mxu0
        %v1209 = vsel %vm1143, %v1181, 0
        %v1212 = vsel %vm1191, %v1185, 0
        %1214 = vmatpush.bf16.msra.mxu0 0
        %1215 = vmatpush.bf16.msra.mxu0 0
        %1216 = vmatpush.bf16.msra.mxu0 0
        %1217 = vmatpush.bf16.msra.mxu0 0
        %1218 = vmatpush.bf16.msra.mxu0 0
        %1219 = vmatpush.bf16.msra.mxu0 0
        %1220 = vmatpush.bf16.msra.mxu0 0
        %1221 = vmatpush.bf16.msra.mxu0 %v1212
        %1222 = vmatmul.bf16.gmra.mxu0 %v1209
        %v1223 = vpop.f32.mrf.mxu0
        %v1224 = vadd.f32 0.0, %v1223
        %v1225 = vpop.f32.mrf.mxu0
        %1226 = vdwg.mxu0
        %v1228 = vsel %vm1143, %v1182, 0
        %v1231 = vsel %vm1191, %v1186, 0
        %1233 = vmatpush.bf16.msra.mxu0 0
        %1234 = vmatpush.bf16.msra.mxu0 0
        %1235 = vmatpush.bf16.msra.mxu0 0
        %1236 = vmatpush.bf16.msra.mxu0 0
        %1237 = vmatpush.bf16.msra.mxu0 0
        %1238 = vmatpush.bf16.msra.mxu0 0
        %1239 = vmatpush.bf16.msra.mxu0 0
        %1240 = vmatpush.bf16.msra.mxu0 %v1231
        %1241 = vmatmul.bf16.gmra.mxu0 %v1228
        %v1242 = vpop.f32.mrf.mxu0
        %v1243 = vadd.f32 0.0, %v1242
        %v1244 = vpop.f32.mrf.mxu0
        %1245 = vdwg.mxu0
        %v1247 = vsel %vm1143, %v1183, 0
        %v1250 = vsel %vm1191, %v1187, 0
        %1252 = vmatpush.bf16.msra.mxu0 0
        %1253 = vmatpush.bf16.msra.mxu0 0
        %1254 = vmatpush.bf16.msra.mxu0 0
        %1255 = vmatpush.bf16.msra.mxu0 0
        %1256 = vmatpush.bf16.msra.mxu0 0
        %1257 = vmatpush.bf16.msra.mxu0 0
        %1258 = vmatpush.bf16.msra.mxu0 0
        %1259 = vmatpush.bf16.msra.mxu0 %v1250
        %1260 = vmatmul.bf16.gmra.mxu0 %v1247
        %v1261 = vpop.f32.mrf.mxu0
        %v1262 = vadd.f32 0.0, %v1261
        %v1263 = vpop.f32.mrf.mxu0
        %1264 = vdwg.mxu0
        %v1265 = vrcp.pop %v1170
        %v1266 = vrcp.pop %v1173
        %v1267 = vrcp.pop %v1176
        %v1268 = vrcp.pop %v1179
        %v1269 = vmul.f32 %v1205, %v1265
        %v1270 = vmul.f32 %v1224, %v1266
        %v1271 = vmul.f32 %v1243, %v1267
        %v1272 = vmul.f32 %v1262, %v1268
        %v1273 = vpack.c.bf16 %v1269, %v1269
        %v1274 = vpack.c.bf16 %v1270, %v1270
        %v1275 = vpack.c.bf16 %v1271, %v1271
        %v1276 = vpack.c.bf16 %v1272, %v1272
        %v1277 = vld [vmem:[%s9] sm:$0xf]
        %v1278 = vld [vmem:[%s9 + $0x4] sm:$0xf]
        %v1279 = vld [vmem:[%s9 + $0x8] sm:$0xf]
        %v1280 = vld [vmem:[%s9 + $0xc] sm:$0xf]
        %v1281 = vld [vmem:[%s9 + $0x10] sm:$0xf]
        %v1282 = vld [vmem:[%s9 + $0x14] sm:$0xf]
        %v1283 = vld [vmem:[%s9 + $0x18] sm:$0xf]
        %v1284 = vld [vmem:[%s9 + $0x1c] sm:$0xf]
        %v1285 = vld [vmem:[%s9 + $0x20] sm:$0xf]
        %v1286 = vld [vmem:[%s9 + $0x24] sm:$0xf]
        %v1287 = vld [vmem:[%s9 + $0x28] sm:$0xf]
        %v1288 = vld [vmem:[%s9 + $0x2c] sm:$0xf]
        %v1289 = vld [vmem:[%s9 + $0x30] sm:$0xf]
        %v1290 = vld [vmem:[%s9 + $0x34] sm:$0xf]
        %v1291 = vld [vmem:[%s9 + $0x38] sm:$0xf]
        %v1292 = vld [vmem:[%s9 + $0x3c] sm:$0xf]
        %v1293 = vld [vmem:[%s9 + $0x40] sm:$0xf]
        %v1294 = vld [vmem:[%s9 + $0x44] sm:$0xf]
        %v1295 = vld [vmem:[%s9 + $0x48] sm:$0xf]
        %v1296 = vld [vmem:[%s9 + $0x4c] sm:$0xf]
        %v1297 = vld [vmem:[%s9 + $0x50] sm:$0xf]
        %v1298 = vld [vmem:[%s9 + $0x54] sm:$0xf]
        %v1299 = vld [vmem:[%s9 + $0x58] sm:$0xf]
        %v1300 = vld [vmem:[%s9 + $0x5c] sm:$0xf]
        %v1301 = vld [vmem:[%s9 + $0x60] sm:$0xf]
        %v1302 = vld [vmem:[%s9 + $0x64] sm:$0xf]
        %v1303 = vld [vmem:[%s9 + $0x68] sm:$0xf]
        %v1304 = vld [vmem:[%s9 + $0x6c] sm:$0xf]
        %v1305 = vld [vmem:[%s9 + $0x70] sm:$0xf]
        %v1306 = vld [vmem:[%s9 + $0x74] sm:$0xf]
        %v1307 = vld [vmem:[%s9 + $0x78] sm:$0xf]
        %v1308 = vld [vmem:[%s9 + $0x7c] sm:$0xf]
        %v1309 = vld [vmem:[%s9 + $0x80] sm:$0xf]
        %v1310 = vld [vmem:[%s9 + $0x84] sm:$0xf]
        %v1311 = vld [vmem:[%s9 + $0x88] sm:$0xf]
        %v1312 = vld [vmem:[%s9 + $0x8c] sm:$0xf]
        %v1313 = vld [vmem:[%s9 + $0x90] sm:$0xf]
        %v1314 = vld [vmem:[%s9 + $0x94] sm:$0xf]
        %v1315 = vld [vmem:[%s9 + $0x98] sm:$0xf]
        %v1316 = vld [vmem:[%s9 + $0x9c] sm:$0xf]
        %v1317 = vld [vmem:[%s9 + $0xa0] sm:$0xf]
        %v1318 = vld [vmem:[%s9 + $0xa4] sm:$0xf]
        %v1319 = vld [vmem:[%s9 + $0xa8] sm:$0xf]
        %v1320 = vld [vmem:[%s9 + $0xac] sm:$0xf]
        %v1321 = vld [vmem:[%s9 + $0xb0] sm:$0xf]
        %v1322 = vld [vmem:[%s9 + $0xb4] sm:$0xf]
        %v1323 = vld [vmem:[%s9 + $0xb8] sm:$0xf]
        %v1324 = vld [vmem:[%s9 + $0xbc] sm:$0xf]
        %v1325 = vld [vmem:[%s9 + $0xc0] sm:$0xf]
        %v1326 = vld [vmem:[%s9 + $0xc4] sm:$0xf]
        %v1327 = vld [vmem:[%s9 + $0xc8] sm:$0xf]
        %v1328 = vld [vmem:[%s9 + $0xcc] sm:$0xf]
        %v1329 = vld [vmem:[%s9 + $0xd0] sm:$0xf]
        %v1330 = vld [vmem:[%s9 + $0xd4] sm:$0xf]
        %v1331 = vld [vmem:[%s9 + $0xd8] sm:$0xf]
        %v1332 = vld [vmem:[%s9 + $0xdc] sm:$0xf]
        %v1333 = vld [vmem:[%s9 + $0xe0] sm:$0xf]
        %v1334 = vld [vmem:[%s9 + $0xe4] sm:$0xf]
        %v1335 = vld [vmem:[%s9 + $0xe8] sm:$0xf]
        %v1336 = vld [vmem:[%s9 + $0xec] sm:$0xf]
        %v1337 = vld [vmem:[%s9 + $0xf0] sm:$0xf]
        %v1338 = vld [vmem:[%s9 + $0xf4] sm:$0xf]
        %v1339 = vld [vmem:[%s9 + $0xf8] sm:$0xf]
        %v1340 = vld [vmem:[%s9 + $0xfc] sm:$0xf]
        %v1357 = vunpack.c.l.b16 %v1277
        %v1358 = vunpack.c.l.b16 %v1278
        %v1359 = vunpack.c.l.b16 %v1279
        %v1360 = vunpack.c.l.b16 %v1280
        %v1361 = vunpack.c.l.b16 %v1281
        %v1362 = vunpack.c.l.b16 %v1282
        %v1363 = vunpack.c.l.b16 %v1283
        %v1364 = vunpack.c.l.b16 %v1284
        %v1365 = vunpack.c.l.b16 %v1285
        %v1366 = vunpack.c.l.b16 %v1286
        %v1367 = vunpack.c.l.b16 %v1287
        %v1368 = vunpack.c.l.b16 %v1288
        %v1369 = vunpack.c.l.b16 %v1289
        %v1370 = vunpack.c.l.b16 %v1290
        %v1371 = vunpack.c.l.b16 %v1291
        %v1372 = vunpack.c.l.b16 %v1292
        %v1373 = vpack.c.b16 %v1358, %v1357
        %v1374 = vpack.c.b16 %v1360, %v1359
        %v1375 = vpack.c.b16 %v1362, %v1361
        %v1376 = vpack.c.b16 %v1364, %v1363
        %v1377 = vpack.c.b16 %v1366, %v1365
        %v1378 = vpack.c.b16 %v1368, %v1367
        %v1379 = vpack.c.b16 %v1370, %v1369
        %v1380 = vpack.c.b16 %v1372, %v1371
        %v1382 = vsel %vm1066, %v1273, 0
        %v1385 = vsel %vm1066, %v1373, 0
        %v1388 = vsel %vm1066, %v1374, 0
        %v1391 = vsel %vm1066, %v1375, 0
        %v1394 = vsel %vm1066, %v1376, 0
        %v1397 = vsel %vm1066, %v1377, 0
        %v1400 = vsel %vm1066, %v1378, 0
        %v1403 = vsel %vm1066, %v1379, 0
        %v1406 = vsel %vm1066, %v1380, 0
        %1408 = vmatpush.bf16.xpose.msra.mxu0 %v1406
        %1409 = vmatpush.bf16.xpose.msra.mxu0 %v1403
        %1410 = vmatpush.bf16.xpose.msra.mxu0 %v1400
        %1411 = vmatpush.bf16.xpose.msra.mxu0 %v1397
        %1412 = vmatpush.bf16.xpose.msra.mxu0 %v1394
        %1413 = vmatpush.bf16.xpose.msra.mxu0 %v1391
        %1414 = vmatpush.bf16.xpose.msra.mxu0 %v1388
        %1415 = vmatpush.bf16.xpose.msra.mxu0 %v1385
        %1416 = vmatmul.bf16.gmra.mxu0 %v1382
        %v1417 = vpop.f32.mrf.mxu0
        %v1418 = vadd.f32 0.0, %v1417
        %v1419 = vpop.f32.mrf.mxu0
        %1420 = vdwg.mxu0
        %v1437 = vunpack.c.l.b16 %v1293
        %v1438 = vunpack.c.l.b16 %v1294
        %v1439 = vunpack.c.l.b16 %v1295
        %v1440 = vunpack.c.l.b16 %v1296
        %v1441 = vunpack.c.l.b16 %v1297
        %v1442 = vunpack.c.l.b16 %v1298
        %v1443 = vunpack.c.l.b16 %v1299
        %v1444 = vunpack.c.l.b16 %v1300
        %v1445 = vunpack.c.l.b16 %v1301
        %v1446 = vunpack.c.l.b16 %v1302
        %v1447 = vunpack.c.l.b16 %v1303
        %v1448 = vunpack.c.l.b16 %v1304
        %v1449 = vunpack.c.l.b16 %v1305
        %v1450 = vunpack.c.l.b16 %v1306
        %v1451 = vunpack.c.l.b16 %v1307
        %v1452 = vunpack.c.l.b16 %v1308
        %v1453 = vpack.c.b16 %v1438, %v1437
        %v1454 = vpack.c.b16 %v1440, %v1439
        %v1455 = vpack.c.b16 %v1442, %v1441
        %v1456 = vpack.c.b16 %v1444, %v1443
        %v1457 = vpack.c.b16 %v1446, %v1445
        %v1458 = vpack.c.b16 %v1448, %v1447
        %v1459 = vpack.c.b16 %v1450, %v1449
        %v1460 = vpack.c.b16 %v1452, %v1451
        %v1462 = vsel %vm1066, %v1274, 0
        %v1465 = vsel %vm1066, %v1453, 0
        %v1468 = vsel %vm1066, %v1454, 0
        %v1471 = vsel %vm1066, %v1455, 0
        %v1474 = vsel %vm1066, %v1456, 0
        %v1477 = vsel %vm1066, %v1457, 0
        %v1480 = vsel %vm1066, %v1458, 0
        %v1483 = vsel %vm1066, %v1459, 0
        %v1486 = vsel %vm1066, %v1460, 0
        %1488 = vmatpush.bf16.xpose.msra.mxu0 %v1486
        %1489 = vmatpush.bf16.xpose.msra.mxu0 %v1483
        %1490 = vmatpush.bf16.xpose.msra.mxu0 %v1480
        %1491 = vmatpush.bf16.xpose.msra.mxu0 %v1477
        %1492 = vmatpush.bf16.xpose.msra.mxu0 %v1474
        %1493 = vmatpush.bf16.xpose.msra.mxu0 %v1471
        %1494 = vmatpush.bf16.xpose.msra.mxu0 %v1468
        %1495 = vmatpush.bf16.xpose.msra.mxu0 %v1465
        %1496 = vmatmul.bf16.gmra.mxu0 %v1462
        %v1497 = vpop.f32.mrf.mxu0
        %v1498 = vadd.f32 0.0, %v1497
        %v1499 = vpop.f32.mrf.mxu0
        %1500 = vdwg.mxu0
        %v1517 = vunpack.c.l.b16 %v1309
        %v1518 = vunpack.c.l.b16 %v1310
        %v1519 = vunpack.c.l.b16 %v1311
        %v1520 = vunpack.c.l.b16 %v1312
        %v1521 = vunpack.c.l.b16 %v1313
        %v1522 = vunpack.c.l.b16 %v1314
        %v1523 = vunpack.c.l.b16 %v1315
        %v1524 = vunpack.c.l.b16 %v1316
        %v1525 = vunpack.c.l.b16 %v1317
        %v1526 = vunpack.c.l.b16 %v1318
        %v1527 = vunpack.c.l.b16 %v1319
        %v1528 = vunpack.c.l.b16 %v1320
        %v1529 = vunpack.c.l.b16 %v1321
        %v1530 = vunpack.c.l.b16 %v1322
        %v1531 = vunpack.c.l.b16 %v1323
        %v1532 = vunpack.c.l.b16 %v1324
        %v1533 = vpack.c.b16 %v1518, %v1517
        %v1534 = vpack.c.b16 %v1520, %v1519
        %v1535 = vpack.c.b16 %v1522, %v1521
        %v1536 = vpack.c.b16 %v1524, %v1523
        %v1537 = vpack.c.b16 %v1526, %v1525
        %v1538 = vpack.c.b16 %v1528, %v1527
        %v1539 = vpack.c.b16 %v1530, %v1529
        %v1540 = vpack.c.b16 %v1532, %v1531
        %v1542 = vsel %vm1066, %v1275, 0
        %v1545 = vsel %vm1066, %v1533, 0
        %v1548 = vsel %vm1066, %v1534, 0
        %v1551 = vsel %vm1066, %v1535, 0
        %v1554 = vsel %vm1066, %v1536, 0
        %v1557 = vsel %vm1066, %v1537, 0
        %v1560 = vsel %vm1066, %v1538, 0
        %v1563 = vsel %vm1066, %v1539, 0
        %v1566 = vsel %vm1066, %v1540, 0
        %1568 = vmatpush.bf16.xpose.msra.mxu0 %v1566
        %1569 = vmatpush.bf16.xpose.msra.mxu0 %v1563
        %1570 = vmatpush.bf16.xpose.msra.mxu0 %v1560
        %1571 = vmatpush.bf16.xpose.msra.mxu0 %v1557
        %1572 = vmatpush.bf16.xpose.msra.mxu0 %v1554
        %1573 = vmatpush.bf16.xpose.msra.mxu0 %v1551
        %1574 = vmatpush.bf16.xpose.msra.mxu0 %v1548
        %1575 = vmatpush.bf16.xpose.msra.mxu0 %v1545
        %1576 = vmatmul.bf16.gmra.mxu0 %v1542
        %v1577 = vpop.f32.mrf.mxu0
        %v1578 = vadd.f32 0.0, %v1577
        %v1579 = vpop.f32.mrf.mxu0
        %1580 = vdwg.mxu0
        %v1597 = vunpack.c.l.b16 %v1325
        %v1598 = vunpack.c.l.b16 %v1326
        %v1599 = vunpack.c.l.b16 %v1327
        %v1600 = vunpack.c.l.b16 %v1328
        %v1601 = vunpack.c.l.b16 %v1329
        %v1602 = vunpack.c.l.b16 %v1330
        %v1603 = vunpack.c.l.b16 %v1331
        %v1604 = vunpack.c.l.b16 %v1332
        %v1605 = vunpack.c.l.b16 %v1333
        %v1606 = vunpack.c.l.b16 %v1334
        %v1607 = vunpack.c.l.b16 %v1335
        %v1608 = vunpack.c.l.b16 %v1336
        %v1609 = vunpack.c.l.b16 %v1337
        %v1610 = vunpack.c.l.b16 %v1338
        %v1611 = vunpack.c.l.b16 %v1339
        %v1612 = vunpack.c.l.b16 %v1340
        %v1613 = vpack.c.b16 %v1598, %v1597
        %v1614 = vpack.c.b16 %v1600, %v1599
        %v1615 = vpack.c.b16 %v1602, %v1601
        %v1616 = vpack.c.b16 %v1604, %v1603
        %v1617 = vpack.c.b16 %v1606, %v1605
        %v1618 = vpack.c.b16 %v1608, %v1607
        %v1619 = vpack.c.b16 %v1610, %v1609
        %v1620 = vpack.c.b16 %v1612, %v1611
        %v1622 = vsel %vm1066, %v1276, 0
        %v1625 = vsel %vm1066, %v1613, 0
        %v1628 = vsel %vm1066, %v1614, 0
        %v1631 = vsel %vm1066, %v1615, 0
        %v1634 = vsel %vm1066, %v1616, 0
        %v1637 = vsel %vm1066, %v1617, 0
        %v1640 = vsel %vm1066, %v1618, 0
        %v1643 = vsel %vm1066, %v1619, 0
        %v1646 = vsel %vm1066, %v1620, 0
        %1648 = vmatpush.bf16.xpose.msra.mxu0 %v1646
        %1649 = vmatpush.bf16.xpose.msra.mxu0 %v1643
        %1650 = vmatpush.bf16.xpose.msra.mxu0 %v1640
        %1651 = vmatpush.bf16.xpose.msra.mxu0 %v1637
        %1652 = vmatpush.bf16.xpose.msra.mxu0 %v1634
        %1653 = vmatpush.bf16.xpose.msra.mxu0 %v1631
        %1654 = vmatpush.bf16.xpose.msra.mxu0 %v1628
        %1655 = vmatpush.bf16.xpose.msra.mxu0 %v1625
        %1656 = vmatmul.bf16.gmra.mxu0 %v1622
        %v1657 = vpop.f32.mrf.mxu0
        %v1658 = vadd.f32 0.0, %v1657
        %v1659 = vpop.f32.mrf.mxu0
        %1660 = vdwg.mxu0
        %v1661 = vadd.f32 %v1418, %v1498
        %v1662 = vadd.f32 %v1661, %v1578
        %v1663 = vadd.f32 %v1662, %v1658
        %v1664 = vld [vmem:[%s10] sm:$0x1]
        %v1666 = vperm.slane %v1664, 0
        %v1668 = vadd.f32 %v1663, %v1666
        %v1669 = vadd.f32 %v887, %v1668
        %v1670 = vld [vmem:[#allocation9] sm:$0x1]
        %v1671 = vld [vmem:[#allocation10] sm:$0x1]
        %1672 = vadd.xlane.f32.xlu0 %v1669
        %v1673 = vpop.xlane.xlu0 %1672
        %v1674 = vmul.f32 %v1673, %v898
        %v1675 = vsub.f32 %v1669, %v1674
        %v1676 = vmul.f32 %v1675, %v1675
        %1677 = vadd.xlane.f32.xlu0 %v1676
        %v1678 = vpop.xlane.xlu0 %1677
        %v1679 = vmul.f32 %v1678, %v898
        %v1680 = vadd.f32 %v1679, 1e-05
        %v1681 = vrsqrt.pop %v1680
        %v1682 = vmul.f32 %v1681, %v1680
        %v1683 = vmul.f32 %v1682, %v1681
        %v1684 = vmul.f32 0.5, %v1683
        %v1685 = vsub.f32 1.5, %v1684
        %v1686 = vmul.f32 %v1681, %v1685
        %vm1687 = vweird.f32 %v1680
        %vm1688 = vweird.f32 %v1681
        %vm1689 = vmor %vm1687, %vm1688
        %v1690 = vsel %vm1689, %v1681, %v1686
        %v1691 = vmul.f32 %v1675, %v1690
        %v1693 = vperm.slane %v1670, 0
        %v1695 = vmul.f32 %v1691, %v1693
        %v1697 = vperm.slane %v1671, 0
        %v1699 = vadd.f32 %v1695, %v1697
        %v1700 = vpack.c.bf16 %v1699, %v1699
        %v1701 = vld [vmem:[%s13] sm:$0xf]
        %v1702 = vld [vmem:[%s13 + $0x4] sm:$0xf]
        %v1703 = vld [vmem:[%s13 + $0x8] sm:$0xf]
        %v1704 = vld [vmem:[%s13 + $0xc] sm:$0xf]
        %v1705 = vld [vmem:[%s13 + $0x10] sm:$0xf]
        %v1706 = vld [vmem:[%s13 + $0x14] sm:$0xf]
        %v1707 = vld [vmem:[%s13 + $0x18] sm:$0xf]
        %v1708 = vld [vmem:[%s13 + $0x1c] sm:$0xf]
        %v1709 = vld [vmem:[%s13 + $0x20] sm:$0xf]
        %v1710 = vld [vmem:[%s13 + $0x24] sm:$0xf]
        %v1711 = vld [vmem:[%s13 + $0x28] sm:$0xf]
        %v1712 = vld [vmem:[%s13 + $0x2c] sm:$0xf]
        %v1713 = vld [vmem:[%s13 + $0x30] sm:$0xf]
        %v1714 = vld [vmem:[%s13 + $0x34] sm:$0xf]
        %v1715 = vld [vmem:[%s13 + $0x38] sm:$0xf]
        %v1716 = vld [vmem:[%s13 + $0x3c] sm:$0xf]
        %v1717 = vld [vmem:[%s13 + $0x40] sm:$0xf]
        %v1718 = vld [vmem:[%s13 + $0x44] sm:$0xf]
        %v1719 = vld [vmem:[%s13 + $0x48] sm:$0xf]
        %v1720 = vld [vmem:[%s13 + $0x4c] sm:$0xf]
        %v1721 = vld [vmem:[%s13 + $0x50] sm:$0xf]
        %v1722 = vld [vmem:[%s13 + $0x54] sm:$0xf]
        %v1723 = vld [vmem:[%s13 + $0x58] sm:$0xf]
        %v1724 = vld [vmem:[%s13 + $0x5c] sm:$0xf]
        %v1725 = vld [vmem:[%s13 + $0x60] sm:$0xf]
        %v1726 = vld [vmem:[%s13 + $0x64] sm:$0xf]
        %v1727 = vld [vmem:[%s13 + $0x68] sm:$0xf]
        %v1728 = vld [vmem:[%s13 + $0x6c] sm:$0xf]
        %v1729 = vld [vmem:[%s13 + $0x70] sm:$0xf]
        %v1730 = vld [vmem:[%s13 + $0x74] sm:$0xf]
        %v1731 = vld [vmem:[%s13 + $0x78] sm:$0xf]
        %v1732 = vld [vmem:[%s13 + $0x7c] sm:$0xf]
        %v1733 = vld [vmem:[%s13 + $0x80] sm:$0xf]
        %v1734 = vld [vmem:[%s13 + $0x84] sm:$0xf]
        %v1735 = vld [vmem:[%s13 + $0x88] sm:$0xf]
        %v1736 = vld [vmem:[%s13 + $0x8c] sm:$0xf]
        %v1737 = vld [vmem:[%s13 + $0x90] sm:$0xf]
        %v1738 = vld [vmem:[%s13 + $0x94] sm:$0xf]
        %v1739 = vld [vmem:[%s13 + $0x98] sm:$0xf]
        %v1740 = vld [vmem:[%s13 + $0x9c] sm:$0xf]
        %v1741 = vld [vmem:[%s13 + $0xa0] sm:$0xf]
        %v1742 = vld [vmem:[%s13 + $0xa4] sm:$0xf]
        %v1743 = vld [vmem:[%s13 + $0xa8] sm:$0xf]
        %v1744 = vld [vmem:[%s13 + $0xac] sm:$0xf]
        %v1745 = vld [vmem:[%s13 + $0xb0] sm:$0xf]
        %v1746 = vld [vmem:[%s13 + $0xb4] sm:$0xf]
        %v1747 = vld [vmem:[%s13 + $0xb8] sm:$0xf]
        %v1748 = vld [vmem:[%s13 + $0xbc] sm:$0xf]
        %v1749 = vld [vmem:[%s14] sm:$0x7]
        %v1751 = vperm.slane %v1749, 0
        %v1752 = vperm.slane %v1749, 1
        %v1753 = vperm.slane %v1749, 2
        %v1805 = vunpack.c.l.b16 %v1701
        %v1806 = vunpack.c.l.b16 %v1702
        %v1807 = vunpack.c.l.b16 %v1703
        %v1808 = vunpack.c.l.b16 %v1704
        %v1809 = vunpack.c.l.b16 %v1705
        %v1810 = vunpack.c.l.b16 %v1706
        %v1811 = vunpack.c.l.b16 %v1707
        %v1812 = vunpack.c.l.b16 %v1708
        %v1813 = vunpack.c.l.b16 %v1709
        %v1814 = vunpack.c.l.b16 %v1710
        %v1815 = vunpack.c.l.b16 %v1711
        %v1816 = vunpack.c.l.b16 %v1712
        %v1817 = vunpack.c.l.b16 %v1713
        %v1818 = vunpack.c.l.b16 %v1714
        %v1819 = vunpack.c.l.b16 %v1715
        %v1820 = vunpack.c.l.b16 %v1716
        %v1821 = vunpack.c.l.b16 %v1717
        %v1822 = vunpack.c.l.b16 %v1718
        %v1823 = vunpack.c.l.b16 %v1719
        %v1824 = vunpack.c.l.b16 %v1720
        %v1825 = vunpack.c.l.b16 %v1721
        %v1826 = vunpack.c.l.b16 %v1722
        %v1827 = vunpack.c.l.b16 %v1723
        %v1828 = vunpack.c.l.b16 %v1724
        %v1829 = vunpack.c.l.b16 %v1725
        %v1830 = vunpack.c.l.b16 %v1726
        %v1831 = vunpack.c.l.b16 %v1727
        %v1832 = vunpack.c.l.b16 %v1728
        %v1833 = vunpack.c.l.b16 %v1729
        %v1834 = vunpack.c.l.b16 %v1730
        %v1835 = vunpack.c.l.b16 %v1731
        %v1836 = vunpack.c.l.b16 %v1732
        %v1837 = vunpack.c.l.b16 %v1733
        %v1838 = vunpack.c.l.b16 %v1734
        %v1839 = vunpack.c.l.b16 %v1735
        %v1840 = vunpack.c.l.b16 %v1736
        %v1841 = vunpack.c.l.b16 %v1737
        %v1842 = vunpack.c.l.b16 %v1738
        %v1843 = vunpack.c.l.b16 %v1739
        %v1844 = vunpack.c.l.b16 %v1740
        %v1845 = vunpack.c.l.b16 %v1741
        %v1846 = vunpack.c.l.b16 %v1742
        %v1847 = vunpack.c.l.b16 %v1743
        %v1848 = vunpack.c.l.b16 %v1744
        %v1849 = vunpack.c.l.b16 %v1745
        %v1850 = vunpack.c.l.b16 %v1746
        %v1851 = vunpack.c.l.b16 %v1747
        %v1852 = vunpack.c.l.b16 %v1748
        %v1853 = vpack.c.b16 %v1806, %v1805
        %v1854 = vpack.c.b16 %v1808, %v1807
        %v1855 = vpack.c.b16 %v1810, %v1809
        %v1856 = vpack.c.b16 %v1812, %v1811
        %v1857 = vpack.c.b16 %v1814, %v1813
        %v1858 = vpack.c.b16 %v1816, %v1815
        %v1859 = vpack.c.b16 %v1818, %v1817
        %v1860 = vpack.c.b16 %v1820, %v1819
        %v1861 = vpack.c.b16 %v1822, %v1821
        %v1862 = vpack.c.b16 %v1824, %v1823
        %v1863 = vpack.c.b16 %v1826, %v1825
        %v1864 = vpack.c.b16 %v1828, %v1827
        %v1865 = vpack.c.b16 %v1830, %v1829
        %v1866 = vpack.c.b16 %v1832, %v1831
        %v1867 = vpack.c.b16 %v1834, %v1833
        %v1868 = vpack.c.b16 %v1836, %v1835
        %v1869 = vpack.c.b16 %v1838, %v1837
        %v1870 = vpack.c.b16 %v1840, %v1839
        %v1871 = vpack.c.b16 %v1842, %v1841
        %v1872 = vpack.c.b16 %v1844, %v1843
        %v1873 = vpack.c.b16 %v1846, %v1845
        %v1874 = vpack.c.b16 %v1848, %v1847
        %v1875 = vpack.c.b16 %v1850, %v1849
        %v1876 = vpack.c.b16 %v1852, %v1851
        %1901 = vmatpush.bf16.xpose.msra.mxu0 %v1860
        %1902 = vmatpush.bf16.xpose.msra.mxu0 %v1859
        %1903 = vmatpush.bf16.xpose.msra.mxu0 %v1858
        %1904 = vmatpush.bf16.xpose.msra.mxu0 %v1857
        %1905 = vmatpush.bf16.xpose.msra.mxu0 %v1856
        %1906 = vmatpush.bf16.xpose.msra.mxu0 %v1855
        %1907 = vmatpush.bf16.xpose.msra.mxu0 %v1854
        %1908 = vmatpush.bf16.xpose.msra.mxu0 %v1853
        %1909 = vmatmul.bf16.gmra.mxu0 %v1700
        %v1910 = vpop.f32.mrf.mxu0
        %v1911 = vadd.f32 %v1751, %v1910
        %v1912 = vpop.f32.mrf.mxu0
        %1913 = vdwg.mxu0
        %1914 = vmatpush.bf16.xpose.msra.mxu0 %v1868
        %1915 = vmatpush.bf16.xpose.msra.mxu0 %v1867
        %1916 = vmatpush.bf16.xpose.msra.mxu0 %v1866
        %1917 = vmatpush.bf16.xpose.msra.mxu0 %v1865
        %1918 = vmatpush.bf16.xpose.msra.mxu0 %v1864
        %1919 = vmatpush.bf16.xpose.msra.mxu0 %v1863
        %1920 = vmatpush.bf16.xpose.msra.mxu0 %v1862
        %1921 = vmatpush.bf16.xpose.msra.mxu0 %v1861
        %1922 = vmatmul.bf16.gmra.mxu0 %v1700
        %v1923 = vpop.f32.mrf.mxu0
        %v1924 = vadd.f32 %v1752, %v1923
        %v1925 = vpop.f32.mrf.mxu0
        %1926 = vdwg.mxu0
        %1927 = vmatpush.bf16.xpose.msra.mxu0 %v1876
        %1928 = vmatpush.bf16.xpose.msra.mxu0 %v1875
        %1929 = vmatpush.bf16.xpose.msra.mxu0 %v1874
        %1930 = vmatpush.bf16.xpose.msra.mxu0 %v1873
        %1931 = vmatpush.bf16.xpose.msra.mxu0 %v1872
        %1932 = vmatpush.bf16.xpose.msra.mxu0 %v1871
        %1933 = vmatpush.bf16.xpose.msra.mxu0 %v1870
        %1934 = vmatpush.bf16.xpose.msra.mxu0 %v1869
        %1935 = vmatmul.bf16.gmra.mxu0 %v1700
        %v1936 = vpop.f32.mrf.mxu0
        %v1937 = vadd.f32 %v1753, %v1936
        %v1938 = vpop.f32.mrf.mxu0
        %1939 = vdwg.mxu0
        %v1940 = vmul.f32 %v1911, 0.5
        %v1941 = vmul.f32 %v1924, 0.5
        %v1942 = vmul.f32 %v1937, 0.5
        %v1943 = vmul.f32 %v1911, %v1911
        %v1944 = vmul.f32 %v1924, %v1924
        %v1945 = vmul.f32 %v1937, %v1937
        %v1946 = vmul.f32 %v1943, %v1911
        %v1947 = vmul.f32 %v1944, %v1924
        %v1948 = vmul.f32 %v1945, %v1937
        %v1949 = vmul.f32 %v1946, 0.044715
        %v1950 = vmul.f32 %v1947, 0.044715
        %v1951 = vmul.f32 %v1948, 0.044715
        %v1952 = vadd.f32 %v1911, %v1949
        %v1953 = vadd.f32 %v1924, %v1950
        %v1954 = vadd.f32 %v1937, %v1951
        %v1955 = vmul.f32 %v1952, 0.7978846
        %v1956 = vmul.f32 %v1953, 0.7978846
        %v1957 = vmul.f32 %v1954, 0.7978846
        %v1958 = vtanh.pop %v1955
        %v1959 = vtanh.pop %v1956
        %v1960 = vtanh.pop %v1957
        %v1961 = vadd.f32 %v1958, 1.0
        %v1962 = vadd.f32 %v1959, 1.0
        %v1963 = vadd.f32 %v1960, 1.0
        %v1964 = vmul.f32 %v1940, %v1961
        %v1965 = vmul.f32 %v1941, %v1962
        %v1966 = vmul.f32 %v1942, %v1963
        %v1967 = vpack.c.bf16 %v1964, %v1964
        %v1968 = vpack.c.bf16 %v1965, %v1965
        %v1969 = vpack.c.bf16 %v1966, %v1966
        %v1970 = vld [vmem:[#allocation12] sm:$0xff]
        %v1971 = vld [vmem:[#allocation12 + $0x8] sm:$0xf]
        %v1972 = vld [vmem:[#allocation12 + $0xc] sm:$0xff]
        %v1973 = vld [vmem:[#allocation12 + $0x14] sm:$0xf]
        %v1974 = vld [vmem:[#allocation12 + $0x18] sm:$0xff]
        %v1975 = vld [vmem:[#allocation12 + $0x20] sm:$0xf]
        %v1976 = vld [vmem:[#allocation12 + $0x24] sm:$0xff]
        %v1977 = vld [vmem:[#allocation12 + $0x2c] sm:$0xf]
        %v1978 = vld [vmem:[#allocation12 + $0x30] sm:$0xff]
        %v1979 = vld [vmem:[#allocation12 + $0x38] sm:$0xf]
        %v1980 = vld [vmem:[#allocation12 + $0x3c] sm:$0xff]
        %v1981 = vld [vmem:[#allocation12 + $0x44] sm:$0xf]
        %v1982 = vld [vmem:[#allocation12 + $0x48] sm:$0xff]
        %v1983 = vld [vmem:[#allocation12 + $0x50] sm:$0xf]
        %v1984 = vld [vmem:[#allocation12 + $0x54] sm:$0xff]
        %v1985 = vld [vmem:[#allocation12 + $0x5c] sm:$0xf]
        %v1986 = vld [vmem:[#allocation12 + $0x60] sm:$0xff]
        %v1987 = vld [vmem:[#allocation12 + $0x68] sm:$0xf]
        %v1988 = vld [vmem:[#allocation12 + $0x6c] sm:$0xff]
        %v1989 = vld [vmem:[#allocation12 + $0x74] sm:$0xf]
        %v1990 = vld [vmem:[#allocation12 + $0x78] sm:$0xff]
        %v1991 = vld [vmem:[#allocation12 + $0x80] sm:$0xf]
        %v1992 = vld [vmem:[#allocation12 + $0x84] sm:$0xff]
        %v1993 = vld [vmem:[#allocation12 + $0x8c] sm:$0xf]
        %v1994 = vld [vmem:[#allocation12 + $0x90] sm:$0xff]
        %v1995 = vld [vmem:[#allocation12 + $0x98] sm:$0xf]
        %v1996 = vld [vmem:[#allocation12 + $0x9c] sm:$0xff]
        %v1997 = vld [vmem:[#allocation12 + $0xa4] sm:$0xf]
        %v1998 = vld [vmem:[#allocation12 + $0xa8] sm:$0xff]
        %v1999 = vld [vmem:[#allocation12 + $0xb0] sm:$0xf]
        %v2000 = vld [vmem:[#allocation12 + $0xb4] sm:$0xff]
        %v2001 = vld [vmem:[#allocation12 + $0xbc] sm:$0xf]
        %v2002 = vld [vmem:[%s16] sm:$0x1]
        %v2004 = vperm.slane %v2002, 0
        %v2038 = vunpack.c.l.b16 %v1970
        %v2039 = vunpack.c.h.b16 %v1970
        %v2040 = vunpack.c.l.b16 %v1971
        %v2041 = vunpack.c.l.b16 %v1972
        %v2042 = vunpack.c.h.b16 %v1972
        %v2043 = vunpack.c.l.b16 %v1973
        %v2044 = vunpack.c.l.b16 %v1974
        %v2045 = vunpack.c.h.b16 %v1974
        %v2046 = vunpack.c.l.b16 %v1975
        %v2047 = vunpack.c.l.b16 %v1976
        %v2048 = vunpack.c.h.b16 %v1976
        %v2049 = vunpack.c.l.b16 %v1977
        %v2050 = vunpack.c.l.b16 %v1978
        %v2051 = vunpack.c.h.b16 %v1978
        %v2052 = vunpack.c.l.b16 %v1979
        %v2053 = vunpack.c.l.b16 %v1980
        %v2054 = vunpack.c.h.b16 %v1980
        %v2055 = vunpack.c.l.b16 %v1981
        %v2056 = vunpack.c.l.b16 %v1982
        %v2057 = vunpack.c.h.b16 %v1982
        %v2058 = vunpack.c.l.b16 %v1983
        %v2059 = vunpack.c.l.b16 %v1984
        %v2060 = vunpack.c.h.b16 %v1984
        %v2061 = vunpack.c.l.b16 %v1985
        %v2062 = vunpack.c.l.b16 %v1986
        %v2063 = vunpack.c.h.b16 %v1986
        %v2064 = vunpack.c.l.b16 %v1987
        %v2065 = vunpack.c.l.b16 %v1988
        %v2066 = vunpack.c.h.b16 %v1988
        %v2067 = vunpack.c.l.b16 %v1989
        %v2068 = vunpack.c.l.b16 %v1990
        %v2069 = vunpack.c.h.b16 %v1990
        %v2070 = vunpack.c.l.b16 %v1991
        %v2071 = vunpack.c.l.b16 %v1992
        %v2072 = vunpack.c.h.b16 %v1992
        %v2073 = vunpack.c.l.b16 %v1993
        %v2074 = vunpack.c.l.b16 %v1994
        %v2075 = vunpack.c.h.b16 %v1994
        %v2076 = vunpack.c.l.b16 %v1995
        %v2077 = vunpack.c.l.b16 %v1996
        %v2078 = vunpack.c.h.b16 %v1996
        %v2079 = vunpack.c.l.b16 %v1997
        %v2080 = vunpack.c.l.b16 %v1998
        %v2081 = vunpack.c.h.b16 %v1998
        %v2082 = vunpack.c.l.b16 %v1999
        %v2083 = vunpack.c.l.b16 %v2000
        %v2084 = vunpack.c.h.b16 %v2000
        %v2085 = vunpack.c.l.b16 %v2001
        %v2086 = vpack.c.b16 %v2041, %v2038
        %v2087 = vpack.c.b16 %v2042, %v2039
        %v2088 = vpack.c.b16 %v2043, %v2040
        %v2089 = vpack.c.b16 %v2047, %v2044
        %v2090 = vpack.c.b16 %v2048, %v2045
        %v2091 = vpack.c.b16 %v2049, %v2046
        %v2092 = vpack.c.b16 %v2053, %v2050
        %v2093 = vpack.c.b16 %v2054, %v2051
        %v2094 = vpack.c.b16 %v2055, %v2052
        %v2095 = vpack.c.b16 %v2059, %v2056
        %v2096 = vpack.c.b16 %v2060, %v2057
        %v2097 = vpack.c.b16 %v2061, %v2058
        %v2098 = vpack.c.b16 %v2065, %v2062
        %v2099 = vpack.c.b16 %v2066, %v2063
        %v2100 = vpack.c.b16 %v2067, %v2064
        %v2101 = vpack.c.b16 %v2071, %v2068
        %v2102 = vpack.c.b16 %v2072, %v2069
        %v2103 = vpack.c.b16 %v2073, %v2070
        %v2104 = vpack.c.b16 %v2077, %v2074
        %v2105 = vpack.c.b16 %v2078, %v2075
        %v2106 = vpack.c.b16 %v2079, %v2076
        %v2107 = vpack.c.b16 %v2083, %v2080
        %v2108 = vpack.c.b16 %v2084, %v2081
        %v2109 = vpack.c.b16 %v2085, %v2082
        %2134 = vmatpush.bf16.xpose.msra.mxu0 %v2107
        %2135 = vmatpush.bf16.xpose.msra.mxu0 %v2104
        %2136 = vmatpush.bf16.xpose.msra.mxu0 %v2101
        %2137 = vmatpush.bf16.xpose.msra.mxu0 %v2098
        %2138 = vmatpush.bf16.xpose.msra.mxu0 %v2095
        %2139 = vmatpush.bf16.xpose.msra.mxu0 %v2092
        %2140 = vmatpush.bf16.xpose.msra.mxu0 %v2089
        %2141 = vmatpush.bf16.xpose.msra.mxu0 %v2086
        %2142 = vmatmul.bf16.gmra.mxu0 %v1967
        %v2143 = vpop.f32.mrf.mxu0
        %v2144 = vadd.f32 %v2004, %v2143
        %v2145 = vpop.f32.mrf.mxu0
        %2146 = vdwg.mxu0
        %2147 = vmatpush.bf16.xpose.msra.mxu0 %v2108
        %2148 = vmatpush.bf16.xpose.msra.mxu0 %v2105
        %2149 = vmatpush.bf16.xpose.msra.mxu0 %v2102
        %2150 = vmatpush.bf16.xpose.msra.mxu0 %v2099
        %2151 = vmatpush.bf16.xpose.msra.mxu0 %v2096
        %2152 = vmatpush.bf16.xpose.msra.mxu0 %v2093
        %2153 = vmatpush.bf16.xpose.msra.mxu0 %v2090
        %2154 = vmatpush.bf16.xpose.msra.mxu0 %v2087
        %2155 = vmatmul.bf16.gmra.mxu0 %v1968
        %v2156 = vpop.f32.mrf.mxu0
        %v2157 = vadd.f32 %v2144, %v2156
        %v2158 = vpop.f32.mrf.mxu0
        %2159 = vdwg.mxu0
        %2160 = vmatpush.bf16.xpose.msra.mxu0 %v2109
        %2161 = vmatpush.bf16.xpose.msra.mxu0 %v2106
        %2162 = vmatpush.bf16.xpose.msra.mxu0 %v2103
        %2163 = vmatpush.bf16.xpose.msra.mxu0 %v2100
        %2164 = vmatpush.bf16.xpose.msra.mxu0 %v2097
        %2165 = vmatpush.bf16.xpose.msra.mxu0 %v2094
        %2166 = vmatpush.bf16.xpose.msra.mxu0 %v2091
        %2167 = vmatpush.bf16.xpose.msra.mxu0 %v2088
        %2168 = vmatmul.bf16.gmra.mxu0 %v1969
        %v2169 = vpop.f32.mrf.mxu0
        %v2170 = vadd.f32 %v2157, %v2169
        %v2171 = vpop.f32.mrf.mxu0
        %2172 = vdwg.mxu0
        %v2173 = vadd.f32 %v1669, %v2170
        %2174 = vst [vmem:[%s641] sm:$0xff] %v2173
        %s2175 = sand.u32 %s420, 1
        %s2176 = scalar_lea.sflag [#allocation6], %s2175
        %s2177 = sand.u32 %s420, 1
        %s2178 = smul.addr %s2177, 8
        %s2179 = scalar_lea.vmem [#allocation13], %s2178
        // Predicated region
        $region113: #{tpu_custom_call.1} parent=87 // pred_check
          %p2180 = pneg %p430
        $region114: #{tpu_custom_call.1} parent=87 // pred_check_branch
          %2182 = sbr.rel (%p2180) target = $region116
        $region115: #{tpu_custom_call.1} parent=87 // pred_region
          %2184 = vsyncadd %s2176, 0
          %s2185 = sadd.s32 %s41, %s40
          %s2186 = smul.addr %s2185, 8
          %s2187 = scalar_lea.hbm %s17, %s2186
          %s2189 = sshll.u32 %s2179, 4
          %s2190 = int_to_ptr.vmem [resolvable:$true] %s2189
          %s2191 = sshll.u32 %s2187, 4
          %s2192 = int_to_ptr.hbm [resolvable:$true] %s2191
          %2194 = dma.vmem_to_hbm [thread:$0]  %s2190, 128, %s2192, %s2176
        $region116: #{tpu_custom_call.1} parent=87 // pred_fallthru
          _
      $region88: #{tpu_custom_call.1} parent=5 // pred_fallthru
        _
      %p2195 = scmp.le.s32.totalorder 2, %s31
      // Predicated region
      $region117: #{tpu_custom_call.1} parent=5 // pred_check
        %p2196 = pneg %p2195
      $region118: #{tpu_custom_call.1} parent=5 // pred_check_branch
        %2198 = sbr.rel (%p2196) target = $region120
      $region119: #{tpu_custom_call.1} parent=5 // pred_region
        %s2199 = ssub.s32 %s31, 2
        // Predicated region
        $region121: #{tpu_custom_call.1} parent=119 // pred_check
          %p2200 = pneg %p436
        $region122: #{tpu_custom_call.1} parent=119 // pred_check_branch
          %2202 = sbr.rel (%p2200) target = $region124
        $region123: #{tpu_custom_call.1} parent=119 // pred_region
          %s2203 = sand.u32 %s421, 1
          %s2204 = scalar_lea.sflag [#allocation6], %s2203
          %s2205 = sand.u32 %s421, 1
          %s2206 = smul.addr %s2205, 8
          %s2207 = scalar_lea.vmem [#allocation13], %s2206
          %2209 = dma.done %s2204, 128
        $region124: #{tpu_custom_call.1} parent=119 // pred_fallthru
          _
      $region120: #{tpu_custom_call.1} parent=5 // pred_fallthru
        _
    $region6: #{tpu_custom_call.1} parent=1 // loop_footer
      %s35 = sadd.s32 1, %s31
    $region7: #{tpu_custom_call.1} parent=1 // loop_footer_branch
      %30 = sbr.rel target = $region3
    $region8: #{tpu_custom_call.1} parent=1 // loop_exit
      _
    %2210 = vsyncpa [#allocation5], 1
    %s2211 = scalar_lea.sflag [#allocation5], 1
    %2212 = vsyncpa %s2211, 1
    %2213 = vsyncpa [#allocation8], 1
    %2214 = vsyncpa [#allocation11], 1
    %2215 = vsyncpa [#allocation6], 1
    %s2216 = scalar_lea.sflag [#allocation6], 1
    %2217 = vsyncpa %s2216, 1

// kernel: tpu_custom_call.1
$region0: #{tpu_custom_call.1}
  #allocation0 [shape = 'u32[]', space=smem, size = 0x4, offset = 0x4, fixed_abs, tag = 'smem constant byte address 0x4 - core index']
  #allocation1 [shape = 'u32[72,128]{1,0:T(1,128)}', space=vmem, size = 0x9000, scoped, tag = 'internal scratch']
  #allocation2 [shape = 'bf16[4,8,32]{2,1,0:T(8,128)(2,1)}', space=vmem, size = 0x2000, scoped, tag = 'scratch operand']
  #allocation3 [shape = 'bf16[4,8,32]{2,1,0:T(8,128)(2,1)}', space=vmem, size = 0x2000, scoped, tag = 'scratch operand']
  %s0 = inlined_call_operand.hbm [shape: f32[2,8,128], index: 0, kind: input, shape index: {}]
  %s1 = inlined_call_operand.vmem [shape: f32[1,128], index: 1, kind: input, shape index: {}]
  %s2 = inlined_call_operand.vmem [shape: f32[1,128], index: 2, kind: input, shape index: {}]
  %s3 = inlined_call_operand.vmem [shape: bf16[4,32,128], index: 3, kind: input, shape index: {}]
  %s4 = inlined_call_operand.vmem [shape: f32[4,1,32], index: 4, kind: input, shape index: {}]
  %s5 = inlined_call_operand.vmem [shape: bf16[128,128], index: 5, kind: input, shape index: {}]
  %s6 = inlined_call_operand.vmem [shape: f32[1,128], index: 6, kind: input, shape index: {}]
  %s7 = inlined_call_operand.hbm [shape: bf16[128,128], index: 7, kind: input, shape index: {}]
  %s8 = inlined_call_operand.vmem [shape: f32[1,128], index: 8, kind: input, shape index: {}]
  %s9 = inlined_call_operand.vmem [shape: bf16[4,128,32], index: 9, kind: input, shape index: {}]
  %s10 = inlined_call_operand.vmem [shape: f32[1,128], index: 10, kind: input, shape index: {}]
  %s11 = inlined_call_operand.hbm [shape: f32[1,128], index: 11, kind: input, shape index: {}]
  %s12 = inlined_call_operand.hbm [shape: f32[1,128], index: 12, kind: input, shape index: {}]
  %s13 = inlined_call_operand.vmem [shape: bf16[384,128], index: 13, kind: input, shape index: {}]
  %s14 = inlined_call_operand.vmem [shape: f32[1,384], index: 14, kind: input, shape index: {}]
  %s15 = inlined_call_operand.hbm [shape: bf16[128,384], index: 15, kind: input, shape index: {}]
  %s16 = inlined_call_operand.vmem [shape: f32[1,128], index: 16, kind: input, shape index: {}]
  %s17 = inlined_call_operand.hbm [shape: f32[2,8,128], index: 17, kind: output, shape index: {}]
  %s18 = sld [smem:[#allocation0]]
  $region125: #{tpu_custom_call.1} parent=0
    _
  %s20 = ssub.s32 1, %s18
  %s21 = scalar_select 0, %s20, %s18
  $region1: #{tpu_custom_call.1} parent=0
    #allocation4 [shape = 'u8[8192]{0}', space=vmem, size = 0x2000, scoped, tag = 'input window, operand 0']
    #allocation5 [shape = 's32[2]{0}', space=sflag, size = 0x8, scoped, tag = 'scoped memory for tpu_custom_call.1']
    #allocation6 [shape = 's32[2]{0}', space=sflag, size = 0x8, scoped, tag = 'scoped memory for tpu_custom_call.1']
    #allocation7 [shape = 'u8[32768]{0}', space=vmem, size = 0x8000, scoped, tag = 'input window, operand 7, single buffered']
    #allocation8 [shape = 's32[1]{0}', space=sflag, size = 0x4, scoped, tag = 'scoped memory for tpu_custom_call.1']
    #allocation9 [shape = 'u8[512]{0}', space=vmem, size = 0x400, scoped, tag = 'input window, operand 11, single buffered']
    #allocation10 [shape = 'u8[512]{0}', space=vmem, size = 0x400, scoped, tag = 'input window, operand 12, single buffered']
    #allocation11 [shape = 's32[1]{0}', space=sflag, size = 0x4, scoped, tag = 'scoped memory for tpu_custom_call.1']
    #allocation12 [shape = 'u8[98304]{0}', space=vmem, size = 0x18000, scoped, tag = 'input window, operand 15, single buffered']
    #allocation13 [shape = 'u8[8192]{0}', space=vmem, size = 0x2000, scoped, tag = 'output window, operand 0']
    %22 = vsyncpa [#allocation5], 0
    %s23 = scalar_lea.sflag [#allocation5], 1
    %24 = vsyncpa %s23, 0
    %25 = vsyncpa [#allocation8], 0
    %26 = vsyncpa [#allocation11], 0
    %27 = vsyncpa [#allocation6], 0
    %s28 = scalar_lea.sflag [#allocation6], 1
    %29 = vsyncpa %s28, 0
    loop: start=0, step=1, limit=4
    $region2: #{tpu_custom_call.1} parent=1 // loop_pre_header
      _
    $region3: #{tpu_custom_call.1} parent=1 // loop_header
      %s31 = sphi 0, %s35
      %p32 = scmp.ge.s32.totalorder %s31, 4
      %s38 = sphi 0, %s50
      %s39 = sphi 0, %s46
      %s40 = sphi 0, %s38
      %s41 = sphi 0, %s39
      %s42 = sphi 0, %s40
      %s43 = sphi 0, %s41
      %s53 = sphi 0, %s55
      %s56 = sphi 0, %s53
      %s57 = sphi 0, %s56
      %s73 = sphi 0, %s57
      %s77 = sphi 0, %s77
      %s79 = sphi 0, %s77
      %s80 = sphi 0, %s79
      %s94 = sphi 0, %s80
      %s98 = sphi 0, %s98
      %s100 = sphi 0, %s98
      %s101 = sphi 0, %s100
      %s115 = sphi 0, %s101
      %s119 = sphi 0, %s119
      %s121 = sphi 0, %s119
      %s122 = sphi 0, %s121
      %s136 = sphi 0, %s122
      %s140 = sphi 0, %s140
      %s142 = sphi 0, %s140
      %s143 = sphi 0, %s142
      %s157 = sphi 0, %s143
      %s161 = sphi 0, %s161
      %s163 = sphi 0, %s161
      %s164 = sphi 0, %s163
      %s178 = sphi 0, %s164
      %s182 = sphi 0, %s182
      %s184 = sphi 0, %s182
      %s185 = sphi 0, %s184
      %s199 = sphi 0, %s185
      %s203 = sphi 0, %s203
      %s205 = sphi 0, %s203
      %s206 = sphi 0, %s205
      %s220 = sphi 0, %s206
      %s224 = sphi 0, %s224
      %s226 = sphi 0, %s224
      %s227 = sphi 0, %s226
      %s241 = sphi 0, %s227
      %s245 = sphi 0, %s245
      %s247 = sphi 0, %s245
      %s248 = sphi 0, %s247
      %s262 = sphi 0, %s248
      %s266 = sphi 0, %s266
      %s268 = sphi 0, %s266
      %s269 = sphi 0, %s268
      %s283 = sphi 0, %s269
      %s287 = sphi 0, %s287
      %s289 = sphi 0, %s287
      %s290 = sphi 0, %s289
      %s304 = sphi 0, %s290
      %s308 = sphi 0, %s308
      %s310 = sphi 0, %s308
      %s311 = sphi 0, %s310
      %s325 = sphi 0, %s311
      %s329 = sphi 0, %s329
      %s331 = sphi 0, %s329
      %s332 = sphi 0, %s331
      %s346 = sphi 0, %s332
      %s350 = sphi 0, %s350
      %s352 = sphi 0, %s350
      %s353 = sphi 0, %s352
      %s367 = sphi 0, %s353
      %s371 = sphi 0, %s371
      %s373 = sphi 0, %s371
      %s374 = sphi 0, %s373
      %s388 = sphi 0, %s374
      %s392 = sphi 0, %s392
      %s394 = sphi 0, %s392
      %s395 = sphi 0, %s394
      %s409 = sphi 0, %s395
      %s417 = sphi 0, %s419
      %s420 = sphi 0, %s417
      %s421 = sphi 0, %s420
      %s437 = sphi 0, %s421
    $region4: #{tpu_custom_call.1} parent=1 // loop_header_branch
      %34 = sbr.rel (%p32) target = $region8
    $region5: #{tpu_custom_call.1} parent=1 // loop_body
      %s36 = ssub.s32 %s31, 1
      %s37 = ssub.s32 %s31, 2
      %s44 = sadd.s32 1, %s39
      %p45 = scmp.ge.s32.totalorder %s44, 1
      %s46 = scalar_select %p45, 0, %s44
      %s47 = sadd.s32 1, %s38
      %s48 = scalar_select %p45, %s47, %s38
      %p49 = scmp.ge.s32.totalorder %s48, 2
      %s50 = scalar_select %p49, 0, %s48
      %s51 = ssub.s32 %s38, %s50
      %p52 = scmp.eq.s32.totalorder %s51, 0
      %s54 = sadd.s32 %s53, 1
      %s55 = scalar_select %p52, %s53, %s54
      %p58 = pneg %p52
      %p59 = scmp.eq.s32.totalorder %s31, 1
      %p60 = por %p58, %p59
      %p61 = scmp.ne.s32.totalorder %s53, %s56
      %p62 = scmp.eq.s32.totalorder %s31, 0
      %p63 = por %p61, %p62
      %p64 = scmp.ne.s32.totalorder %s53, %s56
      %p65 = scmp.eq.s32.totalorder %s36, 1
      %p66 = por %p64, %p65
      %p67 = scmp.ne.s32.totalorder %s56, %s57
      %p68 = scmp.eq.s32.totalorder %s36, 0
      %p69 = por %p67, %p68
      %p70 = scmp.ne.s32.totalorder %s56, %s57
      %p71 = scmp.eq.s32.totalorder %s37, 1
      %p72 = por %p70, %p71
      %p74 = scmp.ne.s32.totalorder %s57, %s73
      %p75 = scmp.eq.s32.totalorder %s37, 0
      %p76 = por %p74, %p75
      %s78 = sadd.s32 %s77, 1
      %p81 = scmp.eq.s32.totalorder %s31, 1
      %p82 = scmp.ne.s32.totalorder %s77, %s79
      %p83 = scmp.eq.s32.totalorder %s31, 0
      %p84 = por %p82, %p83
      %p85 = scmp.ne.s32.totalorder %s77, %s79
      %p86 = scmp.eq.s32.totalorder %s36, 1
      %p87 = por %p85, %p86
      %p88 = scmp.ne.s32.totalorder %s79, %s80
      %p89 = scmp.eq.s32.totalorder %s36, 0
      %p90 = por %p88, %p89
      %p91 = scmp.ne.s32.totalorder %s79, %s80
      %p92 = scmp.eq.s32.totalorder %s37, 1
      %p93 = por %p91, %p92
      %p95 = scmp.ne.s32.totalorder %s80, %s94
      %p96 = scmp.eq.s32.totalorder %s37, 0
      %p97 = por %p95, %p96
      %s99 = sadd.s32 %s98, 1
      %p102 = scmp.eq.s32.totalorder %s31, 1
      %p103 = scmp.ne.s32.totalorder %s98, %s100
      %p104 = scmp.eq.s32.totalorder %s31, 0
      %p105 = por %p103, %p104
      %p106 = scmp.ne.s32.totalorder %s98, %s100
      %p107 = scmp.eq.s32.totalorder %s36, 1
      %p108 = por %p106, %p107
      %p109 = scmp.ne.s32.totalorder %s100, %s101
      %p110 = scmp.eq.s32.totalorder %s36, 0
      %p111 = por %p109, %p110
      %p112 = scmp.ne.s32.totalorder %s100, %s101
      %p113 = scmp.eq.s32.totalorder %s37, 1
      %p114 = por %p112, %p113
      %p116 = scmp.ne.s32.totalorder %s101, %s115
      %p117 = scmp.eq.s32.totalorder %s37, 0
      %p118 = por %p116, %p117
      %s120 = sadd.s32 %s119, 1
      %p123 = scmp.eq.s32.totalorder %s31, 1
      %p124 = scmp.ne.s32.totalorder %s119, %s121
      %p125 = scmp.eq.s32.totalorder %s31, 0
      %p126 = por %p124, %p125
      %p127 = scmp.ne.s32.totalorder %s119, %s121
      %p128 = scmp.eq.s32.totalorder %s36, 1
      %p129 = por %p127, %p128
      %p130 = scmp.ne.s32.totalorder %s121, %s122
      %p131 = scmp.eq.s32.totalorder %s36, 0
      %p132 = por %p130, %p131
      %p133 = scmp.ne.s32.totalorder %s121, %s122
      %p134 = scmp.eq.s32.totalorder %s37, 1
      %p135 = por %p133, %p134
      %p137 = scmp.ne.s32.totalorder %s122, %s136
      %p138 = scmp.eq.s32.totalorder %s37, 0
      %p139 = por %p137, %p138
      %s141 = sadd.s32 %s140, 1
      %p144 = scmp.eq.s32.totalorder %s31, 1
      %p145 = scmp.ne.s32.totalorder %s140, %s142
      %p146 = scmp.eq.s32.totalorder %s31, 0
      %p147 = por %p145, %p146
      %p148 = scmp.ne.s32.totalorder %s140, %s142
      %p149 = scmp.eq.s32.totalorder %s36, 1
      %p150 = por %p148, %p149
      %p151 = scmp.ne.s32.totalorder %s142, %s143
      %p152 = scmp.eq.s32.totalorder %s36, 0
      %p153 = por %p151, %p152
      %p154 = scmp.ne.s32.totalorder %s142, %s143
      %p155 = scmp.eq.s32.totalorder %s37, 1
      %p156 = por %p154, %p155
      %p158 = scmp.ne.s32.totalorder %s143, %s157
      %p159 = scmp.eq.s32.totalorder %s37, 0
      %p160 = por %p158, %p159
      %s162 = sadd.s32 %s161, 1
      %p165 = scmp.eq.s32.totalorder %s31, 1
      %p166 = scmp.ne.s32.totalorder %s161, %s163
      %p167 = scmp.eq.s32.totalorder %s31, 0
      %p168 = por %p166, %p167
      %p169 = scmp.ne.s32.totalorder %s161, %s163
      %p170 = scmp.eq.s32.totalorder %s36, 1
      %p171 = por %p169, %p170
      %p172 = scmp.ne.s32.totalorder %s163, %s164
      %p173 = scmp.eq.s32.totalorder %s36, 0
      %p174 = por %p172, %p173
      %p175 = scmp.ne.s32.totalorder %s163, %s164
      %p176 = scmp.eq.s32.totalorder %s37, 1
      %p177 = por %p175, %p176
      %p179 = scmp.ne.s32.totalorder %s164, %s178
      %p180 = scmp.eq.s32.totalorder %s37, 0
      %p181 = por %p179, %p180
      %s183 = sadd.s32 %s182, 1
      %p186 = scmp.eq.s32.totalorder %s31, 1
      %p187 = scmp.ne.s32.totalorder %s182, %s184
      %p188 = scmp.eq.s32.totalorder %s31, 0
      %p189 = por %p187, %p188
      %p190 = scmp.ne.s32.totalorder %s182, %s184
      %p191 = scmp.eq.s32.totalorder %s36, 1
      %p192 = por %p190, %p191
      %p193 = scmp.ne.s32.totalorder %s184, %s185
      %p194 = scmp.eq.s32.totalorder %s36, 0
      %p195 = por %p193, %p194
      %p196 = scmp.ne.s32.totalorder %s184, %s185
      %p197 = scmp.eq.s32.totalorder %s37, 1
      %p198 = por %p196, %p197
      %p200 = scmp.ne.s32.totalorder %s185, %s199
      %p201 = scmp.eq.s32.totalorder %s37, 0
      %p202 = por %p200, %p201
      %s204 = sadd.s32 %s203, 1
      %p207 = scmp.eq.s32.totalorder %s31, 1
      %p208 = scmp.ne.s32.totalorder %s203, %s205
      %p209 = scmp.eq.s32.totalorder %s31, 0
      %p210 = por %p208, %p209
      %p211 = scmp.ne.s32.totalorder %s203, %s205
      %p212 = scmp.eq.s32.totalorder %s36, 1
      %p213 = por %p211, %p212
      %p214 = scmp.ne.s32.totalorder %s205, %s206
      %p215 = scmp.eq.s32.totalorder %s36, 0
      %p216 = por %p214, %p215
      %p217 = scmp.ne.s32.totalorder %s205, %s206
      %p218 = scmp.eq.s32.totalorder %s37, 1
      %p219 = por %p217, %p218
      %p221 = scmp.ne.s32.totalorder %s206, %s220
      %p222 = scmp.eq.s32.totalorder %s37, 0
      %p223 = por %p221, %p222
      %s225 = sadd.s32 %s224, 1
      %p228 = scmp.eq.s32.totalorder %s31, 1
      %p229 = scmp.ne.s32.totalorder %s224, %s226
      %p230 = scmp.eq.s32.totalorder %s31, 0
      %p231 = por %p229, %p230
      %p232 = scmp.ne.s32.totalorder %s224, %s226
      %p233 = scmp.eq.s32.totalorder %s36, 1
      %p234 = por %p232, %p233
      %p235 = scmp.ne.s32.totalorder %s226, %s227
      %p236 = scmp.eq.s32.totalorder %s36, 0
      %p237 = por %p235, %p236
      %p238 = scmp.ne.s32.totalorder %s226, %s227
      %p239 = scmp.eq.s32.totalorder %s37, 1
      %p240 = por %p238, %p239
      %p242 = scmp.ne.s32.totalorder %s227, %s241
      %p243 = scmp.eq.s32.totalorder %s37, 0
      %p244 = por %p242, %p243
      %s246 = sadd.s32 %s245, 1
      %p249 = scmp.eq.s32.totalorder %s31, 1
      %p250 = scmp.ne.s32.totalorder %s245, %s247
      %p251 = scmp.eq.s32.totalorder %s31, 0
      %p252 = por %p250, %p251
      %p253 = scmp.ne.s32.totalorder %s245, %s247
      %p254 = scmp.eq.s32.totalorder %s36, 1
      %p255 = por %p253, %p254
      %p256 = scmp.ne.s32.totalorder %s247, %s248
      %p257 = scmp.eq.s32.totalorder %s36, 0
      %p258 = por %p256, %p257
      %p259 = scmp.ne.s32.totalorder %s247, %s248
      %p260 = scmp.eq.s32.totalorder %s37, 1
      %p261 = por %p259, %p260
      %p263 = scmp.ne.s32.totalorder %s248, %s262
      %p264 = scmp.eq.s32.totalorder %s37, 0
      %p265 = por %p263, %p264
      %s267 = sadd.s32 %s266, 1
      %p270 = scmp.eq.s32.totalorder %s31, 1
      %p271 = scmp.ne.s32.totalorder %s266, %s268
      %p272 = scmp.eq.s32.totalorder %s31, 0
      %p273 = por %p271, %p272
      %p274 = scmp.ne.s32.totalorder %s266, %s268
      %p275 = scmp.eq.s32.totalorder %s36, 1
      %p276 = por %p274, %p275
      %p277 = scmp.ne.s32.totalorder %s268, %s269
      %p278 = scmp.eq.s32.totalorder %s36, 0
      %p279 = por %p277, %p278
      %p280 = scmp.ne.s32.totalorder %s268, %s269
      %p281 = scmp.eq.s32.totalorder %s37, 1
      %p282 = por %p280, %p281
      %p284 = scmp.ne.s32.totalorder %s269, %s283
      %p285 = scmp.eq.s32.totalorder %s37, 0
      %p286 = por %p284, %p285
      %s288 = sadd.s32 %s287, 1
      %p291 = scmp.eq.s32.totalorder %s31, 1
      %p292 = scmp.ne.s32.totalorder %s287, %s289
      %p293 = scmp.eq.s32.totalorder %s31, 0
      %p294 = por %p292, %p293
      %p295 = scmp.ne.s32.totalorder %s287, %s289
      %p296 = scmp.eq.s32.totalorder %s36, 1
      %p297 = por %p295, %p296
      %p298 = scmp.ne.s32.totalorder %s289, %s290
      %p299 = scmp.eq.s32.totalorder %s36, 0
      %p300 = por %p298, %p299
      %p301 = scmp.ne.s32.totalorder %s289, %s290
      %p302 = scmp.eq.s32.totalorder %s37, 1
      %p303 = por %p301, %p302
      %p305 = scmp.ne.s32.totalorder %s290, %s304
      %p306 = scmp.eq.s32.totalorder %s37, 0
      %p307 = por %p305, %p306
      %s309 = sadd.s32 %s308, 1
      %p312 = scmp.eq.s32.totalorder %s31, 1
      %p313 = scmp.ne.s32.totalorder %s308, %s310
      %p314 = scmp.eq.s32.totalorder %s31, 0
      %p315 = por %p313, %p314
      %p316 = scmp.ne.s32.totalorder %s308, %s310
      %p317 = scmp.eq.s32.totalorder %s36, 1
      %p318 = por %p316, %p317
      %p319 = scmp.ne.s32.totalorder %s310, %s311
      %p320 = scmp.eq.s32.totalorder %s36, 0
      %p321 = por %p319, %p320
      %p322 = scmp.ne.s32.totalorder %s310, %s311
      %p323 = scmp.eq.s32.totalorder %s37, 1
      %p324 = por %p322, %p323
      %p326 = scmp.ne.s32.totalorder %s311, %s325
      %p327 = scmp.eq.s32.totalorder %s37, 0
      %p328 = por %p326, %p327
      %s330 = sadd.s32 %s329, 1
      %p333 = scmp.eq.s32.totalorder %s31, 1
      %p334 = scmp.ne.s32.totalorder %s329, %s331
      %p335 = scmp.eq.s32.totalorder %s31, 0
      %p336 = por %p334, %p335
      %p337 = scmp.ne.s32.totalorder %s329, %s331
      %p338 = scmp.eq.s32.totalorder %s36, 1
      %p339 = por %p337, %p338
      %p340 = scmp.ne.s32.totalorder %s331, %s332
      %p341 = scmp.eq.s32.totalorder %s36, 0
      %p342 = por %p340, %p341
      %p343 = scmp.ne.s32.totalorder %s331, %s332
      %p344 = scmp.eq.s32.totalorder %s37, 1
      %p345 = por %p343, %p344
      %p347 = scmp.ne.s32.totalorder %s332, %s346
      %p348 = scmp.eq.s32.totalorder %s37, 0
      %p349 = por %p347, %p348
      %s351 = sadd.s32 %s350, 1
      %p354 = scmp.eq.s32.totalorder %s31, 1
      %p355 = scmp.ne.s32.totalorder %s350, %s352
      %p356 = scmp.eq.s32.totalorder %s31, 0
      %p357 = por %p355, %p356
      %p358 = scmp.ne.s32.totalorder %s350, %s352
      %p359 = scmp.eq.s32.totalorder %s36, 1
      %p360 = por %p358, %p359
      %p361 = scmp.ne.s32.totalorder %s352, %s353
      %p362 = scmp.eq.s32.totalorder %s36, 0
      %p363 = por %p361, %p362
      %p364 = scmp.ne.s32.totalorder %s352, %s353
      %p365 = scmp.eq.s32.totalorder %s37, 1
      %p366 = por %p364, %p365
      %p368 = scmp.ne.s32.totalorder %s353, %s367
      %p369 = scmp.eq.s32.totalorder %s37, 0
      %p370 = por %p368, %p369
      %s372 = sadd.s32 %s371, 1
      %p375 = scmp.eq.s32.totalorder %s31, 1
      %p376 = scmp.ne.s32.totalorder %s371, %s373
      %p377 = scmp.eq.s32.totalorder %s31, 0
      %p378 = por %p376, %p377
      %p379 = scmp.ne.s32.totalorder %s371, %s373
      %p380 = scmp.eq.s32.totalorder %s36, 1
      %p381 = por %p379, %p380
      %p382 = scmp.ne.s32.totalorder %s373, %s374
      %p383 = scmp.eq.s32.totalorder %s36, 0
      %p384 = por %p382, %p383
      %p385 = scmp.ne.s32.totalorder %s373, %s374
      %p386 = scmp.eq.s32.totalorder %s37, 1
      %p387 = por %p385, %p386
      %p389 = scmp.ne.s32.totalorder %s374, %s388
      %p390 = scmp.eq.s32.totalorder %s37, 0
      %p391 = por %p389, %p390
      %s393 = sadd.s32 %s392, 1
      %p396 = scmp.eq.s32.totalorder %s31, 1
      %p397 = scmp.ne.s32.totalorder %s392, %s394
      %p398 = scmp.eq.s32.totalorder %s31, 0
      %p399 = por %p397, %p398
      %p400 = scmp.ne.s32.totalorder %s392, %s394
      %p401 = scmp.eq.s32.totalorder %s36, 1
      %p402 = por %p400, %p401
      %p403 = scmp.ne.s32.totalorder %s394, %s395
      %p404 = scmp.eq.s32.totalorder %s36, 0
      %p405 = por %p403, %p404
      %p406 = scmp.ne.s32.totalorder %s394, %s395
      %p407 = scmp.eq.s32.totalorder %s37, 1
      %p408 = por %p406, %p407
      %p410 = scmp.ne.s32.totalorder %s395, %s409
      %p411 = scmp.eq.s32.totalorder %s37, 0
      %p412 = por %p410, %p411
      %s413 = ssub.s32 %s38, %s50
      %s414 = ssub.s32 %s39, %s46
      %s415 = sor.u32 %s413, %s414
      %p416 = scmp.eq.s32.totalorder %s415, 0
      %s418 = sadd.s32 %s417, 1
      %s419 = scalar_select %p416, %s417, %s418
      %p422 = pneg %p416
      %p423 = scmp.eq.s32.totalorder %s31, 1
      %p424 = por %p422, %p423
      %p425 = scmp.ne.s32.totalorder %s417, %s420
      %p426 = scmp.eq.s32.totalorder %s31, 0
      %p427 = por %p425, %p426
      %p428 = scmp.ne.s32.totalorder %s417, %s420
      %p429 = scmp.eq.s32.totalorder %s36, 1
      %p430 = por %p428, %p429
      %p431 = scmp.ne.s32.totalorder %s420, %s421
      %p432 = scmp.eq.s32.totalorder %s36, 0
      %p433 = por %p431, %p432
      %p434 = scmp.ne.s32.totalorder %s420, %s421
      %p435 = scmp.eq.s32.totalorder %s37, 1
      %p436 = por %p434, %p435
      %p438 = scmp.ne.s32.totalorder %s421, %s437
      %p439 = scmp.eq.s32.totalorder %s37, 0
      %p440 = por %p438, %p439
      %p441 = scmp.le.s32.totalorder 1, %s31
      %p442 = scmp.lt.s32.totalorder %s31, 3
      %p443 = pnand %p441, %p442
      %p444 = pneg %p443
      // Predicated region
      $region9: #{tpu_custom_call.1} parent=5 // pred_check
        _
      $region10: #{tpu_custom_call.1} parent=5 // pred_check_branch
        %446 = sbr.rel (%p443) target = $region12
      $region11: #{tpu_custom_call.1} parent=5 // pred_region
        %s447 = ssub.s32 %s31, 1
        // Predicated region
        $region13: #{tpu_custom_call.1} parent=11 // pred_check
          %p448 = pneg %p90
        $region14: #{tpu_custom_call.1} parent=11 // pred_check_branch
          %450 = sbr.rel (%p448) target = $region16
        $region15: #{tpu_custom_call.1} parent=11 // pred_region
          _
        $region16: #{tpu_custom_call.1} parent=11 // pred_fallthru
          _
        // Predicated region
        $region17: #{tpu_custom_call.1} parent=11 // pred_check
          %p451 = pneg %p111
        $region18: #{tpu_custom_call.1} parent=11 // pred_check_branch
          %453 = sbr.rel (%p451) target = $region20
        $region19: #{tpu_custom_call.1} parent=11 // pred_region
          _
        $region20: #{tpu_custom_call.1} parent=11 // pred_fallthru
          _
        // Predicated region
        $region21: #{tpu_custom_call.1} parent=11 // pred_check
          %p454 = pneg %p132
        $region22: #{tpu_custom_call.1} parent=11 // pred_check_branch
          %456 = sbr.rel (%p454) target = $region24
        $region23: #{tpu_custom_call.1} parent=11 // pred_region
          _
        $region24: #{tpu_custom_call.1} parent=11 // pred_fallthru
          _
        // Predicated region
        $region25: #{tpu_custom_call.1} parent=11 // pred_check
          %p457 = pneg %p153
        $region26: #{tpu_custom_call.1} parent=11 // pred_check_branch
          %459 = sbr.rel (%p457) target = $region28
        $region27: #{tpu_custom_call.1} parent=11 // pred_region
          _
        $region28: #{tpu_custom_call.1} parent=11 // pred_fallthru
          _
        // Predicated region
        $region29: #{tpu_custom_call.1} parent=11 // pred_check
          %p460 = pneg %p174
        $region30: #{tpu_custom_call.1} parent=11 // pred_check_branch
          %462 = sbr.rel (%p460) target = $region32
        $region31: #{tpu_custom_call.1} parent=11 // pred_region
          _
        $region32: #{tpu_custom_call.1} parent=11 // pred_fallthru
          _
        // Predicated region
        $region33: #{tpu_custom_call.1} parent=11 // pred_check
          %p463 = pneg %p195
        $region34: #{tpu_custom_call.1} parent=11 // pred_check_branch
          %465 = sbr.rel (%p463) target = $region36
        $region35: #{tpu_custom_call.1} parent=11 // pred_region
          _
        $region36: #{tpu_custom_call.1} parent=11 // pred_fallthru
          _
        // Predicated region
        $region37: #{tpu_custom_call.1} parent=11 // pred_check
          %p466 = pneg %p216
        $region38: #{tpu_custom_call.1} parent=11 // pred_check_branch
          %468 = sbr.rel (%p466) target = $region40
        $region39: #{tpu_custom_call.1} parent=11 // pred_region
          %470 = vsyncadd [#allocation8], 0
          %s471 = sshll.u32 %s7, 4
          %s472 = int_to_ptr.hbm [resolvable:$true] %s471
          %s473 = sshll.u32 [#allocation7], 4
          %s474 = int_to_ptr.vmem [resolvable:$true] %s473
          %479 = dma.hbm_to_vmem [thread:$0]  %s472, 1024, %s474, [#allocation8], 64, 64, 4
        $region40: #{tpu_custom_call.1} parent=11 // pred_fallthru
          _
        // Predicated region
        $region41: #{tpu_custom_call.1} parent=11 // pred_check
          %p480 = pneg %p237
        $region42: #{tpu_custom_call.1} parent=11 // pred_check_branch
          %482 = sbr.rel (%p480) target = $region44
        $region43: #{tpu_custom_call.1} parent=11 // pred_region
          _
        $region44: #{tpu_custom_call.1} parent=11 // pred_fallthru
          _
        // Predicated region
        $region45: #{tpu_custom_call.1} parent=11 // pred_check
          %p483 = pneg %p258
        $region46: #{tpu_custom_call.1} parent=11 // pred_check_branch
          %485 = sbr.rel (%p483) target = $region48
        $region47: #{tpu_custom_call.1} parent=11 // pred_region
          _
        $region48: #{tpu_custom_call.1} parent=11 // pred_fallthru
          _
        // Predicated region
        $region49: #{tpu_custom_call.1} parent=11 // pred_check
          %p486 = pneg %p279
        $region50: #{tpu_custom_call.1} parent=11 // pred_check_branch
          %488 = sbr.rel (%p486) target = $region52
        $region51: #{tpu_custom_call.1} parent=11 // pred_region
          _
        $region52: #{tpu_custom_call.1} parent=11 // pred_fallthru
          _
        // Predicated region
        $region53: #{tpu_custom_call.1} parent=11 // pred_check
          %p489 = pneg %p300
        $region54: #{tpu_custom_call.1} parent=11 // pred_check_branch
          %491 = sbr.rel (%p489) target = $region56
        $region55: #{tpu_custom_call.1} parent=11 // pred_region
          %493 = vsyncadd [#allocation8], 0
          %s495 = sshll.u32 %s11, 4
          %s496 = int_to_ptr.hbm [resolvable:$true] %s495
          %s497 = sshll.u32 [#allocation9], 4
          %s498 = int_to_ptr.vmem [resolvable:$true] %s497
          %500 = dma.hbm_to_vmem [thread:$0]  %s496, 16, %s498, [#allocation8]
        $region56: #{tpu_custom_call.1} parent=11 // pred_fallthru
          _
        // Predicated region
        $region57: #{tpu_custom_call.1} parent=11 // pred_check
          %p501 = pneg %p321
        $region58: #{tpu_custom_call.1} parent=11 // pred_check_branch
          %503 = sbr.rel (%p501) target = $region60
        $region59: #{tpu_custom_call.1} parent=11 // pred_region
          %505 = vsyncadd [#allocation11], 0
          %s507 = sshll.u32 %s12, 4
          %s508 = int_to_ptr.hbm [resolvable:$true] %s507
          %s509 = sshll.u32 [#allocation10], 4
          %s510 = int_to_ptr.vmem [resolvable:$true] %s509
          %512 = dma.hbm_to_vmem [thread:$0]  %s508, 16, %s510, [#allocation11]
        $region60: #{tpu_custom_call.1} parent=11 // pred_fallthru
          _
        // Predicated region
        $region61: #{tpu_custom_call.1} parent=11 // pred_check
          %p513 = pneg %p342
        $region62: #{tpu_custom_call.1} parent=11 // pred_check_branch
          %515 = sbr.rel (%p513) target = $region64
        $region63: #{tpu_custom_call.1} parent=11 // pred_region
          _
        $region64: #{tpu_custom_call.1} parent=11 // pred_fallthru
          _
        // Predicated region
        $region65: #{tpu_custom_call.1} parent=11 // pred_check
          %p516 = pneg %p363
        $region66: #{tpu_custom_call.1} parent=11 // pred_check_branch
          %518 = sbr.rel (%p516) target = $region68
        $region67: #{tpu_custom_call.1} parent=11 // pred_region
          _
        $region68: #{tpu_custom_call.1} parent=11 // pred_fallthru
          _
        // Predicated region
        $region69: #{tpu_custom_call.1} parent=11 // pred_check
          %p519 = pneg %p384
        $region70: #{tpu_custom_call.1} parent=11 // pred_check_branch
          %521 = sbr.rel (%p519) target = $region72
        $region71: #{tpu_custom_call.1} parent=11 // pred_region
          %523 = vsyncadd [#allocation11], 0
          %s524 = sshll.u32 %s15, 4
          %s525 = int_to_ptr.hbm [resolvable:$true] %s524
          %s526 = sshll.u32 [#allocation12], 4
          %s527 = int_to_ptr.vmem [resolvable:$true] %s526
          %532 = dma.hbm_to_vmem [thread:$0]  %s525, 3072, %s527, [#allocation11], 192, 192, 12
        $region72: #{tpu_custom_call.1} parent=11 // pred_fallthru
          _
        // Predicated region
        $region73: #{tpu_custom_call.1} parent=11 // pred_check
          %p533 = pneg %p405
        $region74: #{tpu_custom_call.1} parent=11 // pred_check_branch
          %535 = sbr.rel (%p533) target = $region76
        $region75: #{tpu_custom_call.1} parent=11 // pred_region
          _
        $region76: #{tpu_custom_call.1} parent=11 // pred_fallthru
          _
      $region12: #{tpu_custom_call.1} parent=5 // pred_fallthru
        _
      %p536 = scmp.lt.s32.totalorder %s31, 2
      // Predicated region
      $region77: #{tpu_custom_call.1} parent=5 // pred_check
        %p537 = pneg %p536
      $region78: #{tpu_custom_call.1} parent=5 // pred_check_branch
        %539 = sbr.rel (%p537) target = $region80
      $region79: #{tpu_custom_call.1} parent=5 // pred_region
        // Predicated region
        $region81: #{tpu_custom_call.1} parent=79 // pred_check
          %p540 = pneg %p63
        $region82: #{tpu_custom_call.1} parent=79 // pred_check_branch
          %542 = sbr.rel (%p540) target = $region84
        $region83: #{tpu_custom_call.1} parent=79 // pred_region
          %s543 = sand.u32 %s53, 1
          %s544 = scalar_lea.sflag [#allocation5], %s543
          %s545 = sand.u32 %s53, 1
          %s546 = smul.addr %s545, 8
          %s547 = scalar_lea.vmem [#allocation4], %s546
          %549 = vsyncadd %s544, 0
          %s550 = smul.addr %s38, 8
          %s551 = scalar_lea.hbm %s0, %s550
          %s553 = sshll.u32 %s551, 4
          %s554 = int_to_ptr.hbm [resolvable:$true] %s553
          %s555 = sshll.u32 %s547, 4
          %s556 = int_to_ptr.vmem [resolvable:$true] %s555
          %558 = dma.hbm_to_vmem [thread:$0]  %s554, 128, %s556, %s544
        $region84: #{tpu_custom_call.1} parent=79 // pred_fallthru
          _
      $region80: #{tpu_custom_call.1} parent=5 // pred_fallthru
        _
      %p559 = scmp.le.s32.totalorder 1, %s31
      %p560 = scmp.lt.s32.totalorder %s31, 3
      %p561 = pnand %p559, %p560
      %p562 = pneg %p561
      // Predicated region
      $region85: #{tpu_custom_call.1} parent=5 // pred_check
        _
      $region86: #{tpu_custom_call.1} parent=5 // pred_check_branch
        %564 = sbr.rel (%p561) target = $region88
      $region87: #{tpu_custom_call.1} parent=5 // pred_region
        %s565 = ssub.s32 %s31, 1
        %s566 = sand.u32 %s56, 1
        %s567 = scalar_lea.sflag [#allocation5], %s566
        %s568 = sand.u32 %s56, 1
        %s569 = smul.addr %s568, 8
        %s570 = scalar_lea.vmem [#allocation4], %s569
        // Predicated region
        $region89: #{tpu_custom_call.1} parent=87 // pred_check
          %p571 = pneg %p69
        $region90: #{tpu_custom_call.1} parent=87 // pred_check_branch
          %573 = sbr.rel (%p571) target = $region92
        $region91: #{tpu_custom_call.1} parent=87 // pred_region
          %575 = dma.done %s567, 128
        $region92: #{tpu_custom_call.1} parent=87 // pred_fallthru
          _
        // Predicated region
        $region93: #{tpu_custom_call.1} parent=87 // pred_check
          %p576 = pneg %p216
        $region94: #{tpu_custom_call.1} parent=87 // pred_check_branch
          %578 = sbr.rel (%p576) target = $region96
        $region95: #{tpu_custom_call.1} parent=87 // pred_region
          %580 = dma.done [#allocation8], 1024
        $region96: #{tpu_custom_call.1} parent=87 // pred_fallthru
          _
        // Predicated region
        $region97: #{tpu_custom_call.1} parent=87 // pred_check
          %p581 = pneg %p300
        $region98: #{tpu_custom_call.1} parent=87 // pred_check_branch
          %583 = sbr.rel (%p581) target = $region100
        $region99: #{tpu_custom_call.1} parent=87 // pred_region
          %585 = dma.done [#allocation8], 16
        $region100: #{tpu_custom_call.1} parent=87 // pred_fallthru
          _
        // Predicated region
        $region101: #{tpu_custom_call.1} parent=87 // pred_check
          %p586 = pneg %p321
        $region102: #{tpu_custom_call.1} parent=87 // pred_check_branch
          %588 = sbr.rel (%p586) target = $region104
        $region103: #{tpu_custom_call.1} parent=87 // pred_region
          %590 = dma.done [#allocation11], 16
        $region104: #{tpu_custom_call.1} parent=87 // pred_fallthru
          _
        // Predicated region
        $region105: #{tpu_custom_call.1} parent=87 // pred_check
          %p591 = pneg %p384
        $region106: #{tpu_custom_call.1} parent=87 // pred_check_branch
          %593 = sbr.rel (%p591) target = $region108
        $region107: #{tpu_custom_call.1} parent=87 // pred_region
          %595 = dma.done [#allocation11], 3072
        $region108: #{tpu_custom_call.1} parent=87 // pred_fallthru
          _
        %s596 = sand.u32 %s56, 1
        %s597 = scalar_lea.sflag [#allocation5], %s596
        %s598 = sand.u32 %s56, 1
        %s599 = smul.addr %s598, 8
        %s600 = scalar_lea.vmem [#allocation4], %s599
        %p601 = pneg %p69
        %p602 = pneg %p66
        %p603 = pneg %p90
        %p604 = pneg %p87
        %p605 = pneg %p111
        %p606 = pneg %p108
        %p607 = pneg %p132
        %p608 = pneg %p129
        %p609 = pneg %p153
        %p610 = pneg %p150
        %p611 = pneg %p174
        %p612 = pneg %p171
        %p613 = pneg %p195
        %p614 = pneg %p192
        %p615 = pneg %p216
        %p616 = pneg %p213
        %p617 = pneg %p237
        %p618 = pneg %p234
        %p619 = pneg %p258
        %p620 = pneg %p255
        %p621 = pneg %p279
        %p622 = pneg %p276
        %p623 = pneg %p300
        %p624 = pneg %p297
        %p625 = pneg %p321
        %p626 = pneg %p318
        %p627 = pneg %p342
        %p628 = pneg %p339
        %p629 = pneg %p363
        %p630 = pneg %p360
        %p631 = pneg %p384
        %p632 = pneg %p381
        %p633 = pneg %p405
        %p634 = pneg %p402
        %p635 = pneg %p433
        %p636 = pneg %p430
        %s637 = sand.u32 %s420, 1
        %s638 = scalar_lea.sflag [#allocation6], %s637
        %s639 = sand.u32 %s420, 1
        %s640 = smul.addr %s639, 8
        %s641 = scalar_lea.vmem [#allocation13], %s640
        %p643 = scmp.eq.s32.totalorder %s41, 0
        // Predicated region
        $region109: #{tpu_custom_call.1} parent=87 // pred_check
          %p644 = pneg %p643
        $region110: #{tpu_custom_call.1} parent=87 // pred_check_branch
          %646 = sbr.rel (%p644) target = $region112
        $region111: #{tpu_custom_call.1} parent=87 // pred_region
          %v647 = vld [vmem:[%s570] sm:$0xff]
          %v648 = vld [vmem:[%s1] sm:$0x1]
          %v649 = vld [vmem:[%s2] sm:$0x1]
          %650 = vadd.xlane.f32.xlu0 %v647
          %v651 = vpop.xlane.xlu0 %650
          %v652 = vrcp.pop 128.0
          %v653 = vmul.f32 128.0, %v652
          %v654 = vsub.f32 1.0, %v653
          %v655 = vmul.f32 %v652, %v654
          %v656 = vadd.f32 %v652, %v655
          %vm657 = vweird.f32 %v652
          %v658 = vsel %vm657, %v652, %v656
          %v659 = vmul.f32 %v651, %v658
          %v660 = vsub.f32 %v647, %v659
          %v661 = vmul.f32 %v660, %v660
          %662 = vadd.xlane.f32.xlu0 %v661
          %v663 = vpop.xlane.xlu0 %662
          %v664 = vmul.f32 %v663, %v658
          %v665 = vadd.f32 %v664, 1e-05
          %v666 = vrsqrt.pop %v665
          %v667 = vmul.f32 %v666, %v665
          %v668 = vmul.f32 %v667, %v666
          %v669 = vmul.f32 0.5, %v668
          %v670 = vsub.f32 1.5, %v669
          %v671 = vmul.f32 %v666, %v670
          %vm672 = vweird.f32 %v665
          %vm673 = vweird.f32 %v666
          %vm674 = vmor %vm672, %vm673
          %v675 = vsel %vm674, %v666, %v671
          %v676 = vmul.f32 %v660, %v675
          %v678 = vperm.slane %v648, 0
          %v680 = vmul.f32 %v676, %v678
          %v682 = vperm.slane %v649, 0
          %v684 = vadd.f32 %v680, %v682
          %v685 = vpack.c.bf16 %v684, %v684
          %v686 = vld [vmem:[%s5] sm:$0xf]
          %v687 = vld [vmem:[%s5 + $0x4] sm:$0xf]
          %v688 = vld [vmem:[%s5 + $0x8] sm:$0xf]
          %v689 = vld [vmem:[%s5 + $0xc] sm:$0xf]
          %v690 = vld [vmem:[%s5 + $0x10] sm:$0xf]
          %v691 = vld [vmem:[%s5 + $0x14] sm:$0xf]
          %v692 = vld [vmem:[%s5 + $0x18] sm:$0xf]
          %v693 = vld [vmem:[%s5 + $0x1c] sm:$0xf]
          %v694 = vld [vmem:[%s5 + $0x20] sm:$0xf]
          %v695 = vld [vmem:[%s5 + $0x24] sm:$0xf]
          %v696 = vld [vmem:[%s5 + $0x28] sm:$0xf]
          %v697 = vld [vmem:[%s5 + $0x2c] sm:$0xf]
          %v698 = vld [vmem:[%s5 + $0x30] sm:$0xf]
          %v699 = vld [vmem:[%s5 + $0x34] sm:$0xf]
          %v700 = vld [vmem:[%s5 + $0x38] sm:$0xf]
          %v701 = vld [vmem:[%s5 + $0x3c] sm:$0xf]
          %v702 = vld [vmem:[%s6] sm:$0x1]
          %v704 = vperm.slane %v702, 0
          %v722 = vunpack.c.l.b16 %v686
          %v723 = vunpack.c.l.b16 %v687
          %v724 = vunpack.c.l.b16 %v688
          %v725 = vunpack.c.l.b16 %v689
          %v726 = vunpack.c.l.b16 %v690
          %v727 = vunpack.c.l.b16 %v691
          %v728 = vunpack.c.l.b16 %v692
          %v729 = vunpack.c.l.b16 %v693
          %v730 = vunpack.c.l.b16 %v694
          %v731 = vunpack.c.l.b16 %v695
          %v732 = vunpack.c.l.b16 %v696
          %v733 = vunpack.c.l.b16 %v697
          %v734 = vunpack.c.l.b16 %v698
          %v735 = vunpack.c.l.b16 %v699
          %v736 = vunpack.c.l.b16 %v700
          %v737 = vunpack.c.l.b16 %v701
          %v738 = vpack.c.b16 %v723, %v722
          %v739 = vpack.c.b16 %v725, %v724
          %v740 = vpack.c.b16 %v727, %v726
          %v741 = vpack.c.b16 %v729, %v728
          %v742 = vpack.c.b16 %v731, %v730
          %v743 = vpack.c.b16 %v733, %v732
          %v744 = vpack.c.b16 %v735, %v734
          %v745 = vpack.c.b16 %v737, %v736
          %754 = vmatpush.bf16.xpose.msra.mxu0 %v745
          %755 = vmatpush.bf16.xpose.msra.mxu0 %v744
          %756 = vmatpush.bf16.xpose.msra.mxu0 %v743
          %757 = vmatpush.bf16.xpose.msra.mxu0 %v742
          %758 = vmatpush.bf16.xpose.msra.mxu0 %v741
          %759 = vmatpush.bf16.xpose.msra.mxu0 %v740
          %760 = vmatpush.bf16.xpose.msra.mxu0 %v739
          %761 = vmatpush.bf16.xpose.msra.mxu0 %v738
          %762 = vmatmul.bf16.gmra.mxu0 %v685
          %v763 = vpop.f32.mrf.mxu0
          %v764 = vadd.f32 %v704, %v763
          %v765 = vpop.f32.mrf.mxu0
          %766 = vdwg.mxu0
          %v767 = vld [vmem:[#allocation7] sm:$0xf]
          %v768 = vld [vmem:[#allocation7 + $0x4] sm:$0xf]
          %v769 = vld [vmem:[#allocation7 + $0x8] sm:$0xf]
          %v770 = vld [vmem:[#allocation7 + $0xc] sm:$0xf]
          %v771 = vld [vmem:[#allocation7 + $0x10] sm:$0xf]
          %v772 = vld [vmem:[#allocation7 + $0x14] sm:$0xf]
          %v773 = vld [vmem:[#allocation7 + $0x18] sm:$0xf]
          %v774 = vld [vmem:[#allocation7 + $0x1c] sm:$0xf]
          %v775 = vld [vmem:[#allocation7 + $0x20] sm:$0xf]
          %v776 = vld [vmem:[#allocation7 + $0x24] sm:$0xf]
          %v777 = vld [vmem:[#allocation7 + $0x28] sm:$0xf]
          %v778 = vld [vmem:[#allocation7 + $0x2c] sm:$0xf]
          %v779 = vld [vmem:[#allocation7 + $0x30] sm:$0xf]
          %v780 = vld [vmem:[#allocation7 + $0x34] sm:$0xf]
          %v781 = vld [vmem:[#allocation7 + $0x38] sm:$0xf]
          %v782 = vld [vmem:[#allocation7 + $0x3c] sm:$0xf]
          %v783 = vld [vmem:[%s8] sm:$0x1]
          %v785 = vperm.slane %v783, 0
          %v803 = vunpack.c.l.b16 %v767
          %v804 = vunpack.c.l.b16 %v768
          %v805 = vunpack.c.l.b16 %v769
          %v806 = vunpack.c.l.b16 %v770
          %v807 = vunpack.c.l.b16 %v771
          %v808 = vunpack.c.l.b16 %v772
          %v809 = vunpack.c.l.b16 %v773
          %v810 = vunpack.c.l.b16 %v774
          %v811 = vunpack.c.l.b16 %v775
          %v812 = vunpack.c.l.b16 %v776
          %v813 = vunpack.c.l.b16 %v777
          %v814 = vunpack.c.l.b16 %v778
          %v815 = vunpack.c.l.b16 %v779
          %v816 = vunpack.c.l.b16 %v780
          %v817 = vunpack.c.l.b16 %v781
          %v818 = vunpack.c.l.b16 %v782
          %v819 = vpack.c.b16 %v804, %v803
          %v820 = vpack.c.b16 %v806, %v805
          %v821 = vpack.c.b16 %v808, %v807
          %v822 = vpack.c.b16 %v810, %v809
          %v823 = vpack.c.b16 %v812, %v811
          %v824 = vpack.c.b16 %v814, %v813
          %v825 = vpack.c.b16 %v816, %v815
          %v826 = vpack.c.b16 %v818, %v817
          %835 = vmatpush.bf16.xpose.msra.mxu0 %v826
          %836 = vmatpush.bf16.xpose.msra.mxu0 %v825
          %837 = vmatpush.bf16.xpose.msra.mxu0 %v824
          %838 = vmatpush.bf16.xpose.msra.mxu0 %v823
          %839 = vmatpush.bf16.xpose.msra.mxu0 %v822
          %840 = vmatpush.bf16.xpose.msra.mxu0 %v821
          %841 = vmatpush.bf16.xpose.msra.mxu0 %v820
          %842 = vmatpush.bf16.xpose.msra.mxu0 %v819
          %843 = vmatmul.bf16.gmra.mxu0 %v685
          %v844 = vpop.f32.mrf.mxu0
          %v845 = vadd.f32 %v785, %v844
          %v846 = vpop.f32.mrf.mxu0
          %847 = vdwg.mxu0
          %849 = vrot.lane.b32.xlu0 %v764, 96
          %v850 = vpop.permute.xlu0 %849
          %852 = vrot.lane.b32.xlu0 %v764, 64
          %v853 = vpop.permute.xlu0 %852
          %855 = vrot.lane.b32.xlu0 %v764, 32
          %v856 = vpop.permute.xlu0 %855
          %v858 = vpack.c.bf16 %v764, %v764
          %v859 = vpack.c.bf16 %v850, %v850
          %v860 = vpack.c.bf16 %v853, %v853
          %v861 = vpack.c.bf16 %v856, %v856
          %vm862 = vcmask 257024
          %863 = vst.msk [vmem:[#allocation2] sm:$0xf] %vm862, %v858
          %864 = vst.msk [vmem:[#allocation2 + $0x4] sm:$0xf] %vm862, %v859
          %865 = vst.msk [vmem:[#allocation2 + $0x8] sm:$0xf] %vm862, %v860
          %866 = vst.msk [vmem:[#allocation2 + $0xc] sm:$0xf] %vm862, %v861
          %868 = vrot.lane.b32.xlu0 %v845, 96
          %v869 = vpop.permute.xlu0 %868
          %871 = vrot.lane.b32.xlu0 %v845, 64
          %v872 = vpop.permute.xlu0 %871
          %874 = vrot.lane.b32.xlu0 %v845, 32
          %v875 = vpop.permute.xlu0 %874
          %v877 = vpack.c.bf16 %v845, %v845
          %v878 = vpack.c.bf16 %v869, %v869
          %v879 = vpack.c.bf16 %v872, %v872
          %v880 = vpack.c.bf16 %v875, %v875
          %881 = vst.msk [vmem:[#allocation3] sm:$0xf] %vm862, %v877
          %882 = vst.msk [vmem:[#allocation3 + $0x4] sm:$0xf] %vm862, %v878
          %883 = vst.msk [vmem:[#allocation3 + $0x8] sm:$0xf] %vm862, %v879
          %884 = vst.msk [vmem:[#allocation3 + $0xc] sm:$0xf] %vm862, %v880
        $region112: #{tpu_custom_call.1} parent=87 // pred_fallthru
          _
        %s885 = smul.u32 %s41, 8
        %s886 = scalar_lea.vmem %s570, %s885 [#allocation4]
        %v887 = vld [vmem:[%s886] sm:$0xff]
        %v888 = vld [vmem:[%s1] sm:$0x1]
        %v889 = vld [vmem:[%s2] sm:$0x1]
        %890 = vadd.xlane.f32.xlu0 %v887
        %v891 = vpop.xlane.xlu0 %890
        %v892 = vrcp.pop 128.0
        %v893 = vmul.f32 128.0, %v892
        %v894 = vsub.f32 1.0, %v893
        %v895 = vmul.f32 %v892, %v894
        %v896 = vadd.f32 %v892, %v895
        %vm897 = vweird.f32 %v892
        %v898 = vsel %vm897, %v892, %v896
        %v899 = vmul.f32 %v891, %v898
        %v900 = vsub.f32 %v887, %v899
        %v901 = vmul.f32 %v900, %v900
        %902 = vadd.xlane.f32.xlu0 %v901
        %v903 = vpop.xlane.xlu0 %902
        %v904 = vmul.f32 %v903, %v898
        %v905 = vadd.f32 %v904, 1e-05
        %v906 = vrsqrt.pop %v905
        %v907 = vmul.f32 %v906, %v905
        %v908 = vmul.f32 %v907, %v906
        %v909 = vmul.f32 0.5, %v908
        %v910 = vsub.f32 1.5, %v909
        %v911 = vmul.f32 %v906, %v910
        %vm912 = vweird.f32 %v905
        %vm913 = vweird.f32 %v906
        %vm914 = vmor %vm912, %vm913
        %v915 = vsel %vm914, %v906, %v911
        %v916 = vmul.f32 %v900, %v915
        %v918 = vperm.slane %v888, 0
        %v920 = vmul.f32 %v916, %v918
        %v922 = vperm.slane %v889, 0
        %v924 = vadd.f32 %v920, %v922
        %v925 = vpack.c.bf16 %v924, %v924
        %v926 = vld [vmem:[%s3] sm:$0xf]
        %v927 = vld [vmem:[%s3 + $0x4] sm:$0xf]
        %v928 = vld [vmem:[%s3 + $0x8] sm:$0xf]
        %v929 = vld [vmem:[%s3 + $0xc] sm:$0xf]
        %v930 = vld [vmem:[%s3 + $0x10] sm:$0xf]
        %v931 = vld [vmem:[%s3 + $0x14] sm:$0xf]
        %v932 = vld [vmem:[%s3 + $0x18] sm:$0xf]
        %v933 = vld [vmem:[%s3 + $0x1c] sm:$0xf]
        %v934 = vld [vmem:[%s3 + $0x20] sm:$0xf]
        %v935 = vld [vmem:[%s3 + $0x24] sm:$0xf]
        %v936 = vld [vmem:[%s3 + $0x28] sm:$0xf]
        %v937 = vld [vmem:[%s3 + $0x2c] sm:$0xf]
        %v938 = vld [vmem:[%s3 + $0x30] sm:$0xf]
        %v939 = vld [vmem:[%s3 + $0x34] sm:$0xf]
        %v940 = vld [vmem:[%s3 + $0x38] sm:$0xf]
        %v941 = vld [vmem:[%s3 + $0x3c] sm:$0xf]
        %v942 = vld [vmem:[%s4] sm:$0x1]
        %v943 = vld [vmem:[%s4 + $0x1] sm:$0x1]
        %v944 = vld [vmem:[%s4 + $0x2] sm:$0x1]
        %v945 = vld [vmem:[%s4 + $0x3] sm:$0x1]
        %v950 = vperm.slane %v942, 0
        %v951 = vperm.slane %v943, 0
        %v952 = vperm.slane %v944, 0
        %v953 = vperm.slane %v945, 0
        %v962 = vunpack.c.l.b16 %v926
        %v963 = vunpack.c.l.b16 %v927
        %v964 = vunpack.c.l.b16 %v928
        %v965 = vunpack.c.l.b16 %v929
        %v966 = vpack.c.b16 %v963, %v962
        %v967 = vpack.c.b16 %v965, %v964
        %970 = vmatpush.bf16.xpose.msra.mxu0 0
        %971 = vmatpush.bf16.xpose.msra.mxu0 0
        %972 = vmatpush.bf16.xpose.msra.mxu0 0
        %973 = vmatpush.bf16.xpose.msra.mxu0 0
        %974 = vmatpush.bf16.xpose.msra.mxu0 0
        %975 = vmatpush.bf16.xpose.msra.mxu0 0
        %976 = vmatpush.bf16.xpose.msra.mxu0 %v967
        %977 = vmatpush.bf16.xpose.msra.mxu0 %v966
        %978 = vmatmul.bf16.gmra.mxu0 %v925
        %v979 = vpop.f32.mrf.mxu0
        %v980 = vadd.f32 %v950, %v979
        %v981 = vpop.f32.mrf.mxu0
        %982 = vdwg.mxu0
        %v987 = vunpack.c.l.b16 %v930
        %v988 = vunpack.c.l.b16 %v931
        %v989 = vunpack.c.l.b16 %v932
        %v990 = vunpack.c.l.b16 %v933
        %v991 = vpack.c.b16 %v988, %v987
        %v992 = vpack.c.b16 %v990, %v989
        %995 = vmatpush.bf16.xpose.msra.mxu0 0
        %996 = vmatpush.bf16.xpose.msra.mxu0 0
        %997 = vmatpush.bf16.xpose.msra.mxu0 0
        %998 = vmatpush.bf16.xpose.msra.mxu0 0
        %999 = vmatpush.bf16.xpose.msra.mxu0 0
        %1000 = vmatpush.bf16.xpose.msra.mxu0 0
        %1001 = vmatpush.bf16.xpose.msra.mxu0 %v992
        %1002 = vmatpush.bf16.xpose.msra.mxu0 %v991
        %1003 = vmatmul.bf16.gmra.mxu0 %v925
        %v1004 = vpop.f32.mrf.mxu0
        %v1005 = vadd.f32 %v951, %v1004
        %v1006 = vpop.f32.mrf.mxu0
        %1007 = vdwg.mxu0
        %v1012 = vunpack.c.l.b16 %v934
        %v1013 = vunpack.c.l.b16 %v935
        %v1014 = vunpack.c.l.b16 %v936
        %v1015 = vunpack.c.l.b16 %v937
        %v1016 = vpack.c.b16 %v1013, %v1012
        %v1017 = vpack.c.b16 %v1015, %v1014
        %1020 = vmatpush.bf16.xpose.msra.mxu0 0
        %1021 = vmatpush.bf16.xpose.msra.mxu0 0
        %1022 = vmatpush.bf16.xpose.msra.mxu0 0
        %1023 = vmatpush.bf16.xpose.msra.mxu0 0
        %1024 = vmatpush.bf16.xpose.msra.mxu0 0
        %1025 = vmatpush.bf16.xpose.msra.mxu0 0
        %1026 = vmatpush.bf16.xpose.msra.mxu0 %v1017
        %1027 = vmatpush.bf16.xpose.msra.mxu0 %v1016
        %1028 = vmatmul.bf16.gmra.mxu0 %v925
        %v1029 = vpop.f32.mrf.mxu0
        %v1030 = vadd.f32 %v952, %v1029
        %v1031 = vpop.f32.mrf.mxu0
        %1032 = vdwg.mxu0
        %v1037 = vunpack.c.l.b16 %v938
        %v1038 = vunpack.c.l.b16 %v939
        %v1039 = vunpack.c.l.b16 %v940
        %v1040 = vunpack.c.l.b16 %v941
        %v1041 = vpack.c.b16 %v1038, %v1037
        %v1042 = vpack.c.b16 %v1040, %v1039
        %1045 = vmatpush.bf16.xpose.msra.mxu0 0
        %1046 = vmatpush.bf16.xpose.msra.mxu0 0
        %1047 = vmatpush.bf16.xpose.msra.mxu0 0
        %1048 = vmatpush.bf16.xpose.msra.mxu0 0
        %1049 = vmatpush.bf16.xpose.msra.mxu0 0
        %1050 = vmatpush.bf16.xpose.msra.mxu0 0
        %1051 = vmatpush.bf16.xpose.msra.mxu0 %v1042
        %1052 = vmatpush.bf16.xpose.msra.mxu0 %v1041
        %1053 = vmatmul.bf16.gmra.mxu0 %v925
        %v1054 = vpop.f32.mrf.mxu0
        %v1055 = vadd.f32 %v953, %v1054
        %v1056 = vpop.f32.mrf.mxu0
        %1057 = vdwg.mxu0
        %v1058 = vpack.c.bf16 %v980, %v980
        %v1059 = vpack.c.bf16 %v1005, %v1005
        %v1060 = vpack.c.bf16 %v1030, %v1030
        %v1061 = vpack.c.bf16 %v1055, %v1055
        %v1062 = vld [vmem:[#allocation2] sm:$0xf]
        %v1063 = vld [vmem:[#allocation2 + $0x4] sm:$0xf]
        %v1064 = vld [vmem:[#allocation2 + $0x8] sm:$0xf]
        %v1065 = vld [vmem:[#allocation2 + $0xc] sm:$0xf]
        %vm1066 = vcmask 261120
        %v1068 = vsel %vm1066, %v1058, 0
        %v1071 = vsel %vm1066, %v1062, 0
        %1073 = vmatpush.bf16.xpose.msra.mxu0 0
        %1074 = vmatpush.bf16.xpose.msra.mxu0 0
        %1075 = vmatpush.bf16.xpose.msra.mxu0 0
        %1076 = vmatpush.bf16.xpose.msra.mxu0 0
        %1077 = vmatpush.bf16.xpose.msra.mxu0 0
        %1078 = vmatpush.bf16.xpose.msra.mxu0 0
        %1079 = vmatpush.bf16.xpose.msra.mxu0 0
        %1080 = vmatpush.bf16.xpose.msra.mxu0 %v1071
        %1081 = vmatmul.bf16.gmra.mxu0 %v1068
        %v1082 = vpop.f32.mrf.mxu0
        %v1083 = vadd.f32 0.0, %v1082
        %v1084 = vpop.f32.mrf.mxu0
        %1085 = vdwg.mxu0
        %v1087 = vsel %vm1066, %v1059, 0
        %v1090 = vsel %vm1066, %v1063, 0
        %1092 = vmatpush.bf16.xpose.msra.mxu0 0
        %1093 = vmatpush.bf16.xpose.msra.mxu0 0
        %1094 = vmatpush.bf16.xpose.msra.mxu0 0
        %1095 = vmatpush.bf16.xpose.msra.mxu0 0
        %1096 = vmatpush.bf16.xpose.msra.mxu0 0
        %1097 = vmatpush.bf16.xpose.msra.mxu0 0
        %1098 = vmatpush.bf16.xpose.msra.mxu0 0
        %1099 = vmatpush.bf16.xpose.msra.mxu0 %v1090
        %1100 = vmatmul.bf16.gmra.mxu0 %v1087
        %v1101 = vpop.f32.mrf.mxu0
        %v1102 = vadd.f32 0.0, %v1101
        %v1103 = vpop.f32.mrf.mxu0
        %1104 = vdwg.mxu0
        %v1106 = vsel %vm1066, %v1060, 0
        %v1109 = vsel %vm1066, %v1064, 0
        %1111 = vmatpush.bf16.xpose.msra.mxu0 0
        %1112 = vmatpush.bf16.xpose.msra.mxu0 0
        %1113 = vmatpush.bf16.xpose.msra.mxu0 0
        %1114 = vmatpush.bf16.xpose.msra.mxu0 0
        %1115 = vmatpush.bf16.xpose.msra.mxu0 0
        %1116 = vmatpush.bf16.xpose.msra.mxu0 0
        %1117 = vmatpush.bf16.xpose.msra.mxu0 0
        %1118 = vmatpush.bf16.xpose.msra.mxu0 %v1109
        %1119 = vmatmul.bf16.gmra.mxu0 %v1106
        %v1120 = vpop.f32.mrf.mxu0
        %v1121 = vadd.f32 0.0, %v1120
        %v1122 = vpop.f32.mrf.mxu0
        %1123 = vdwg.mxu0
        %v1125 = vsel %vm1066, %v1061, 0
        %v1128 = vsel %vm1066, %v1065, 0
        %1130 = vmatpush.bf16.xpose.msra.mxu0 0
        %1131 = vmatpush.bf16.xpose.msra.mxu0 0
        %1132 = vmatpush.bf16.xpose.msra.mxu0 0
        %1133 = vmatpush.bf16.xpose.msra.mxu0 0
        %1134 = vmatpush.bf16.xpose.msra.mxu0 0
        %1135 = vmatpush.bf16.xpose.msra.mxu0 0
        %1136 = vmatpush.bf16.xpose.msra.mxu0 0
        %1137 = vmatpush.bf16.xpose.msra.mxu0 %v1128
        %1138 = vmatmul.bf16.gmra.mxu0 %v1125
        %v1139 = vpop.f32.mrf.mxu0
        %v1140 = vadd.f32 0.0, %v1139
        %v1141 = vpop.f32.mrf.mxu0
        %1142 = vdwg.mxu0
        %vm1143 = vcmask 64512
        %v1144 = vsel %vm1143, %v1083, -inf
        %1145 = vmax.xlane.f32.xlu0 %v1144
        %v1146 = vpop.xlane.xlu0 %1145
        %v1147 = vsel %vm1143, %v1102, -inf
        %1148 = vmax.xlane.f32.xlu0 %v1147
        %v1149 = vpop.xlane.xlu0 %1148
        %v1150 = vsel %vm1143, %v1121, -inf
        %1151 = vmax.xlane.f32.xlu0 %v1150
        %v1152 = vpop.xlane.xlu0 %1151
        %v1153 = vsel %vm1143, %v1140, -inf
        %1154 = vmax.xlane.f32.xlu0 %v1153
        %v1155 = vpop.xlane.xlu0 %1154
        %v1156 = vsub.f32 %v1083, %v1146
        %v1157 = vsub.f32 %v1102, %v1149
        %v1158 = vsub.f32 %v1121, %v1152
        %v1159 = vsub.f32 %v1140, %v1155
        %v1160 = vmul.f32 %v1156, 1.442695
        %v1161 = vpow.pop %v1160
        %v1162 = vmul.f32 %v1157, 1.442695
        %v1163 = vpow.pop %v1162
        %v1164 = vmul.f32 %v1158, 1.442695
        %v1165 = vpow.pop %v1164
        %v1166 = vmul.f32 %v1159, 1.442695
        %v1167 = vpow.pop %v1166
        %v1168 = vsel %vm1143, %v1161, 0.0
        %1169 = vadd.xlane.f32.xlu0 %v1168
        %v1170 = vpop.xlane.xlu0 %1169
        %v1171 = vsel %vm1143, %v1163, 0.0
        %1172 = vadd.xlane.f32.xlu0 %v1171
        %v1173 = vpop.xlane.xlu0 %1172
        %v1174 = vsel %vm1143, %v1165, 0.0
        %1175 = vadd.xlane.f32.xlu0 %v1174
        %v1176 = vpop.xlane.xlu0 %1175
        %v1177 = vsel %vm1143, %v1167, 0.0
        %1178 = vadd.xlane.f32.xlu0 %v1177
        %v1179 = vpop.xlane.xlu0 %1178
        %v1180 = vpack.c.bf16 %v1161, %v1161
        %v1181 = vpack.c.bf16 %v1163, %v1163
        %v1182 = vpack.c.bf16 %v1165, %v1165
        %v1183 = vpack.c.bf16 %v1167, %v1167
        %v1184 = vld [vmem:[#allocation3] sm:$0xf]
        %v1185 = vld [vmem:[#allocation3 + $0x4] sm:$0xf]
        %v1186 = vld [vmem:[#allocation3 + $0x8] sm:$0xf]
        %v1187 = vld [vmem:[#allocation3 + $0xc] sm:$0xf]
        %v1189 = vsel %vm1143, %v1180, 0
        %vm1191 = vcmask 1043456
        %v1193 = vsel %vm1191, %v1184, 0
        %1195 = vmatpush.bf16.msra.mxu0 0
        %1196 = vmatpush.bf16.msra.mxu0 0
        %1197 = vmatpush.bf16.msra.mxu0 0
        %1198 = vmatpush.bf16.msra.mxu0 0
        %1199 = vmatpush.bf16.msra.mxu0 0
        %1200 = vmatpush.bf16.msra.mxu0 0
        %1201 = vmatpush.bf16.msra.mxu0 0
        %1202 = vmatpush.bf16.msra.mxu0 %v1193
        %1203 = vmatmul.bf16.gmra.mxu0 %v1189
        %v1204 = vpop.f32.mrf.mxu0
        %v1205 = vadd.f32 0.0, %v1204
        %v1206 = vpop.f32.mrf.mxu0
        %1207 = vdwg.mxu0
        %v1209 = vsel %vm1143, %v1181, 0
        %v1212 = vsel %vm1191, %v1185, 0
        %1214 = vmatpush.bf16.msra.mxu0 0
        %1215 = vmatpush.bf16.msra.mxu0 0
        %1216 = vmatpush.bf16.msra.mxu0 0
        %1217 = vmatpush.bf16.msra.mxu0 0
        %1218 = vmatpush.bf16.msra.mxu0 0
        %1219 = vmatpush.bf16.msra.mxu0 0
        %1220 = vmatpush.bf16.msra.mxu0 0
        %1221 = vmatpush.bf16.msra.mxu0 %v1212
        %1222 = vmatmul.bf16.gmra.mxu0 %v1209
        %v1223 = vpop.f32.mrf.mxu0
        %v1224 = vadd.f32 0.0, %v1223
        %v1225 = vpop.f32.mrf.mxu0
        %1226 = vdwg.mxu0
        %v1228 = vsel %vm1143, %v1182, 0
        %v1231 = vsel %vm1191, %v1186, 0
        %1233 = vmatpush.bf16.msra.mxu0 0
        %1234 = vmatpush.bf16.msra.mxu0 0
        %1235 = vmatpush.bf16.msra.mxu0 0
        %1236 = vmatpush.bf16.msra.mxu0 0
        %1237 = vmatpush.bf16.msra.mxu0 0
        %1238 = vmatpush.bf16.msra.mxu0 0
        %1239 = vmatpush.bf16.msra.mxu0 0
        %1240 = vmatpush.bf16.msra.mxu0 %v1231
        %1241 = vmatmul.bf16.gmra.mxu0 %v1228
        %v1242 = vpop.f32.mrf.mxu0
        %v1243 = vadd.f32 0.0, %v1242
        %v1244 = vpop.f32.mrf.mxu0
        %1245 = vdwg.mxu0
        %v1247 = vsel %vm1143, %v1183, 0
        %v1250 = vsel %vm1191, %v1187, 0
        %1252 = vmatpush.bf16.msra.mxu0 0
        %1253 = vmatpush.bf16.msra.mxu0 0
        %1254 = vmatpush.bf16.msra.mxu0 0
        %1255 = vmatpush.bf16.msra.mxu0 0
        %1256 = vmatpush.bf16.msra.mxu0 0
        %1257 = vmatpush.bf16.msra.mxu0 0
        %1258 = vmatpush.bf16.msra.mxu0 0
        %1259 = vmatpush.bf16.msra.mxu0 %v1250
        %1260 = vmatmul.bf16.gmra.mxu0 %v1247
        %v1261 = vpop.f32.mrf.mxu0
        %v1262 = vadd.f32 0.0, %v1261
        %v1263 = vpop.f32.mrf.mxu0
        %1264 = vdwg.mxu0
        %v1265 = vrcp.pop %v1170
        %v1266 = vrcp.pop %v1173
        %v1267 = vrcp.pop %v1176
        %v1268 = vrcp.pop %v1179
        %v1269 = vmul.f32 %v1205, %v1265
        %v1270 = vmul.f32 %v1224, %v1266
        %v1271 = vmul.f32 %v1243, %v1267
        %v1272 = vmul.f32 %v1262, %v1268
        %v1273 = vpack.c.bf16 %v1269, %v1269
        %v1274 = vpack.c.bf16 %v1270, %v1270
        %v1275 = vpack.c.bf16 %v1271, %v1271
        %v1276 = vpack.c.bf16 %v1272, %v1272
        %v1277 = vld [vmem:[%s9] sm:$0xf]
        %v1278 = vld [vmem:[%s9 + $0x4] sm:$0xf]
        %v1279 = vld [vmem:[%s9 + $0x8] sm:$0xf]
        %v1280 = vld [vmem:[%s9 + $0xc] sm:$0xf]
        %v1281 = vld [vmem:[%s9 + $0x10] sm:$0xf]
        %v1282 = vld [vmem:[%s9 + $0x14] sm:$0xf]
        %v1283 = vld [vmem:[%s9 + $0x18] sm:$0xf]
        %v1284 = vld [vmem:[%s9 + $0x1c] sm:$0xf]
        %v1285 = vld [vmem:[%s9 + $0x20] sm:$0xf]
        %v1286 = vld [vmem:[%s9 + $0x24] sm:$0xf]
        %v1287 = vld [vmem:[%s9 + $0x28] sm:$0xf]
        %v1288 = vld [vmem:[%s9 + $0x2c] sm:$0xf]
        %v1289 = vld [vmem:[%s9 + $0x30] sm:$0xf]
        %v1290 = vld [vmem:[%s9 + $0x34] sm:$0xf]
        %v1291 = vld [vmem:[%s9 + $0x38] sm:$0xf]
        %v1292 = vld [vmem:[%s9 + $0x3c] sm:$0xf]
        %v1293 = vld [vmem:[%s9 + $0x40] sm:$0xf]
        %v1294 = vld [vmem:[%s9 + $0x44] sm:$0xf]
        %v1295 = vld [vmem:[%s9 + $0x48] sm:$0xf]
        %v1296 = vld [vmem:[%s9 + $0x4c] sm:$0xf]
        %v1297 = vld [vmem:[%s9 + $0x50] sm:$0xf]
        %v1298 = vld [vmem:[%s9 + $0x54] sm:$0xf]
        %v1299 = vld [vmem:[%s9 + $0x58] sm:$0xf]
        %v1300 = vld [vmem:[%s9 + $0x5c] sm:$0xf]
        %v1301 = vld [vmem:[%s9 + $0x60] sm:$0xf]
        %v1302 = vld [vmem:[%s9 + $0x64] sm:$0xf]
        %v1303 = vld [vmem:[%s9 + $0x68] sm:$0xf]
        %v1304 = vld [vmem:[%s9 + $0x6c] sm:$0xf]
        %v1305 = vld [vmem:[%s9 + $0x70] sm:$0xf]
        %v1306 = vld [vmem:[%s9 + $0x74] sm:$0xf]
        %v1307 = vld [vmem:[%s9 + $0x78] sm:$0xf]
        %v1308 = vld [vmem:[%s9 + $0x7c] sm:$0xf]
        %v1309 = vld [vmem:[%s9 + $0x80] sm:$0xf]
        %v1310 = vld [vmem:[%s9 + $0x84] sm:$0xf]
        %v1311 = vld [vmem:[%s9 + $0x88] sm:$0xf]
        %v1312 = vld [vmem:[%s9 + $0x8c] sm:$0xf]
        %v1313 = vld [vmem:[%s9 + $0x90] sm:$0xf]
        %v1314 = vld [vmem:[%s9 + $0x94] sm:$0xf]
        %v1315 = vld [vmem:[%s9 + $0x98] sm:$0xf]
        %v1316 = vld [vmem:[%s9 + $0x9c] sm:$0xf]
        %v1317 = vld [vmem:[%s9 + $0xa0] sm:$0xf]
        %v1318 = vld [vmem:[%s9 + $0xa4] sm:$0xf]
        %v1319 = vld [vmem:[%s9 + $0xa8] sm:$0xf]
        %v1320 = vld [vmem:[%s9 + $0xac] sm:$0xf]
        %v1321 = vld [vmem:[%s9 + $0xb0] sm:$0xf]
        %v1322 = vld [vmem:[%s9 + $0xb4] sm:$0xf]
        %v1323 = vld [vmem:[%s9 + $0xb8] sm:$0xf]
        %v1324 = vld [vmem:[%s9 + $0xbc] sm:$0xf]
        %v1325 = vld [vmem:[%s9 + $0xc0] sm:$0xf]
        %v1326 = vld [vmem:[%s9 + $0xc4] sm:$0xf]
        %v1327 = vld [vmem:[%s9 + $0xc8] sm:$0xf]
        %v1328 = vld [vmem:[%s9 + $0xcc] sm:$0xf]
        %v1329 = vld [vmem:[%s9 + $0xd0] sm:$0xf]
        %v1330 = vld [vmem:[%s9 + $0xd4] sm:$0xf]
        %v1331 = vld [vmem:[%s9 + $0xd8] sm:$0xf]
        %v1332 = vld [vmem:[%s9 + $0xdc] sm:$0xf]
        %v1333 = vld [vmem:[%s9 + $0xe0] sm:$0xf]
        %v1334 = vld [vmem:[%s9 + $0xe4] sm:$0xf]
        %v1335 = vld [vmem:[%s9 + $0xe8] sm:$0xf]
        %v1336 = vld [vmem:[%s9 + $0xec] sm:$0xf]
        %v1337 = vld [vmem:[%s9 + $0xf0] sm:$0xf]
        %v1338 = vld [vmem:[%s9 + $0xf4] sm:$0xf]
        %v1339 = vld [vmem:[%s9 + $0xf8] sm:$0xf]
        %v1340 = vld [vmem:[%s9 + $0xfc] sm:$0xf]
        %v1357 = vunpack.c.l.b16 %v1277
        %v1358 = vunpack.c.l.b16 %v1278
        %v1359 = vunpack.c.l.b16 %v1279
        %v1360 = vunpack.c.l.b16 %v1280
        %v1361 = vunpack.c.l.b16 %v1281
        %v1362 = vunpack.c.l.b16 %v1282
        %v1363 = vunpack.c.l.b16 %v1283
        %v1364 = vunpack.c.l.b16 %v1284
        %v1365 = vunpack.c.l.b16 %v1285
        %v1366 = vunpack.c.l.b16 %v1286
        %v1367 = vunpack.c.l.b16 %v1287
        %v1368 = vunpack.c.l.b16 %v1288
        %v1369 = vunpack.c.l.b16 %v1289
        %v1370 = vunpack.c.l.b16 %v1290
        %v1371 = vunpack.c.l.b16 %v1291
        %v1372 = vunpack.c.l.b16 %v1292
        %v1373 = vpack.c.b16 %v1358, %v1357
        %v1374 = vpack.c.b16 %v1360, %v1359
        %v1375 = vpack.c.b16 %v1362, %v1361
        %v1376 = vpack.c.b16 %v1364, %v1363
        %v1377 = vpack.c.b16 %v1366, %v1365
        %v1378 = vpack.c.b16 %v1368, %v1367
        %v1379 = vpack.c.b16 %v1370, %v1369
        %v1380 = vpack.c.b16 %v1372, %v1371
        %v1382 = vsel %vm1066, %v1273, 0
        %v1385 = vsel %vm1066, %v1373, 0
        %v1388 = vsel %vm1066, %v1374, 0
        %v1391 = vsel %vm1066, %v1375, 0
        %v1394 = vsel %vm1066, %v1376, 0
        %v1397 = vsel %vm1066, %v1377, 0
        %v1400 = vsel %vm1066, %v1378, 0
        %v1403 = vsel %vm1066, %v1379, 0
        %v1406 = vsel %vm1066, %v1380, 0
        %1408 = vmatpush.bf16.xpose.msra.mxu0 %v1406
        %1409 = vmatpush.bf16.xpose.msra.mxu0 %v1403
        %1410 = vmatpush.bf16.xpose.msra.mxu0 %v1400
        %1411 = vmatpush.bf16.xpose.msra.mxu0 %v1397
        %1412 = vmatpush.bf16.xpose.msra.mxu0 %v1394
        %1413 = vmatpush.bf16.xpose.msra.mxu0 %v1391
        %1414 = vmatpush.bf16.xpose.msra.mxu0 %v1388
        %1415 = vmatpush.bf16.xpose.msra.mxu0 %v1385
        %1416 = vmatmul.bf16.gmra.mxu0 %v1382
        %v1417 = vpop.f32.mrf.mxu0
        %v1418 = vadd.f32 0.0, %v1417
        %v1419 = vpop.f32.mrf.mxu0
        %1420 = vdwg.mxu0
        %v1437 = vunpack.c.l.b16 %v1293
        %v1438 = vunpack.c.l.b16 %v1294
        %v1439 = vunpack.c.l.b16 %v1295
        %v1440 = vunpack.c.l.b16 %v1296
        %v1441 = vunpack.c.l.b16 %v1297
        %v1442 = vunpack.c.l.b16 %v1298
        %v1443 = vunpack.c.l.b16 %v1299
        %v1444 = vunpack.c.l.b16 %v1300
        %v1445 = vunpack.c.l.b16 %v1301
        %v1446 = vunpack.c.l.b16 %v1302
        %v1447 = vunpack.c.l.b16 %v1303
        %v1448 = vunpack.c.l.b16 %v1304
        %v1449 = vunpack.c.l.b16 %v1305
        %v1450 = vunpack.c.l.b16 %v1306
        %v1451 = vunpack.c.l.b16 %v1307
        %v1452 = vunpack.c.l.b16 %v1308
        %v1453 = vpack.c.b16 %v1438, %v1437
        %v1454 = vpack.c.b16 %v1440, %v1439
        %v1455 = vpack.c.b16 %v1442, %v1441
        %v1456 = vpack.c.b16 %v1444, %v1443
        %v1457 = vpack.c.b16 %v1446, %v1445
        %v1458 = vpack.c.b16 %v1448, %v1447
        %v1459 = vpack.c.b16 %v1450, %v1449
        %v1460 = vpack.c.b16 %v1452, %v1451
        %v1462 = vsel %vm1066, %v1274, 0
        %v1465 = vsel %vm1066, %v1453, 0
        %v1468 = vsel %vm1066, %v1454, 0
        %v1471 = vsel %vm1066, %v1455, 0
        %v1474 = vsel %vm1066, %v1456, 0
        %v1477 = vsel %vm1066, %v1457, 0
        %v1480 = vsel %vm1066, %v1458, 0
        %v1483 = vsel %vm1066, %v1459, 0
        %v1486 = vsel %vm1066, %v1460, 0
        %1488 = vmatpush.bf16.xpose.msra.mxu0 %v1486
        %1489 = vmatpush.bf16.xpose.msra.mxu0 %v1483
        %1490 = vmatpush.bf16.xpose.msra.mxu0 %v1480
        %1491 = vmatpush.bf16.xpose.msra.mxu0 %v1477
        %1492 = vmatpush.bf16.xpose.msra.mxu0 %v1474
        %1493 = vmatpush.bf16.xpose.msra.mxu0 %v1471
        %1494 = vmatpush.bf16.xpose.msra.mxu0 %v1468
        %1495 = vmatpush.bf16.xpose.msra.mxu0 %v1465
        %1496 = vmatmul.bf16.gmra.mxu0 %v1462
        %v1497 = vpop.f32.mrf.mxu0
        %v1498 = vadd.f32 0.0, %v1497
        %v1499 = vpop.f32.mrf.mxu0
        %1500 = vdwg.mxu0
        %v1517 = vunpack.c.l.b16 %v1309
        %v1518 = vunpack.c.l.b16 %v1310
        %v1519 = vunpack.c.l.b16 %v1311
        %v1520 = vunpack.c.l.b16 %v1312
        %v1521 = vunpack.c.l.b16 %v1313
        %v1522 = vunpack.c.l.b16 %v1314
        %v1523 = vunpack.c.l.b16 %v1315
        %v1524 = vunpack.c.l.b16 %v1316
        %v1525 = vunpack.c.l.b16 %v1317
        %v1526 = vunpack.c.l.b16 %v1318
        %v1527 = vunpack.c.l.b16 %v1319
        %v1528 = vunpack.c.l.b16 %v1320
        %v1529 = vunpack.c.l.b16 %v1321
        %v1530 = vunpack.c.l.b16 %v1322
        %v1531 = vunpack.c.l.b16 %v1323
        %v1532 = vunpack.c.l.b16 %v1324
        %v1533 = vpack.c.b16 %v1518, %v1517
        %v1534 = vpack.c.b16 %v1520, %v1519
        %v1535 = vpack.c.b16 %v1522, %v1521
        %v1536 = vpack.c.b16 %v1524, %v1523
        %v1537 = vpack.c.b16 %v1526, %v1525
        %v1538 = vpack.c.b16 %v1528, %v1527
        %v1539 = vpack.c.b16 %v1530, %v1529
        %v1540 = vpack.c.b16 %v1532, %v1531
        %v1542 = vsel %vm1066, %v1275, 0
        %v1545 = vsel %vm1066, %v1533, 0
        %v1548 = vsel %vm1066, %v1534, 0
        %v1551 = vsel %vm1066, %v1535, 0
        %v1554 = vsel %vm1066, %v1536, 0
        %v1557 = vsel %vm1066, %v1537, 0
        %v1560 = vsel %vm1066, %v1538, 0
        %v1563 = vsel %vm1066, %v1539, 0
        %v1566 = vsel %vm1066, %v1540, 0
        %1568 = vmatpush.bf16.xpose.msra.mxu0 %v1566
        %1569 = vmatpush.bf16.xpose.msra.mxu0 %v1563
        %1570 = vmatpush.bf16.xpose.msra.mxu0 %v1560
        %1571 = vmatpush.bf16.xpose.msra.mxu0 %v1557
        %1572 = vmatpush.bf16.xpose.msra.mxu0 %v1554
        %1573 = vmatpush.bf16.xpose.msra.mxu0 %v1551
        %1574 = vmatpush.bf16.xpose.msra.mxu0 %v1548
        %1575 = vmatpush.bf16.xpose.msra.mxu0 %v1545
        %1576 = vmatmul.bf16.gmra.mxu0 %v1542
        %v1577 = vpop.f32.mrf.mxu0
        %v1578 = vadd.f32 0.0, %v1577
        %v1579 = vpop.f32.mrf.mxu0
        %1580 = vdwg.mxu0
        %v1597 = vunpack.c.l.b16 %v1325
        %v1598 = vunpack.c.l.b16 %v1326
        %v1599 = vunpack.c.l.b16 %v1327
        %v1600 = vunpack.c.l.b16 %v1328
        %v1601 = vunpack.c.l.b16 %v1329
        %v1602 = vunpack.c.l.b16 %v1330
        %v1603 = vunpack.c.l.b16 %v1331
        %v1604 = vunpack.c.l.b16 %v1332
        %v1605 = vunpack.c.l.b16 %v1333
        %v1606 = vunpack.c.l.b16 %v1334
        %v1607 = vunpack.c.l.b16 %v1335
        %v1608 = vunpack.c.l.b16 %v1336
        %v1609 = vunpack.c.l.b16 %v1337
        %v1610 = vunpack.c.l.b16 %v1338
        %v1611 = vunpack.c.l.b16 %v1339
        %v1612 = vunpack.c.l.b16 %v1340
        %v1613 = vpack.c.b16 %v1598, %v1597
        %v1614 = vpack.c.b16 %v1600, %v1599
        %v1615 = vpack.c.b16 %v1602, %v1601
        %v1616 = vpack.c.b16 %v1604, %v1603
        %v1617 = vpack.c.b16 %v1606, %v1605
        %v1618 = vpack.c.b16 %v1608, %v1607
        %v1619 = vpack.c.b16 %v1610, %v1609
        %v1620 = vpack.c.b16 %v1612, %v1611
        %v1622 = vsel %vm1066, %v1276, 0
        %v1625 = vsel %vm1066, %v1613, 0
        %v1628 = vsel %vm1066, %v1614, 0
        %v1631 = vsel %vm1066, %v1615, 0
        %v1634 = vsel %vm1066, %v1616, 0
        %v1637 = vsel %vm1066, %v1617, 0
        %v1640 = vsel %vm1066, %v1618, 0
        %v1643 = vsel %vm1066, %v1619, 0
        %v1646 = vsel %vm1066, %v1620, 0
        %1648 = vmatpush.bf16.xpose.msra.mxu0 %v1646
        %1649 = vmatpush.bf16.xpose.msra.mxu0 %v1643
        %1650 = vmatpush.bf16.xpose.msra.mxu0 %v1640
        %1651 = vmatpush.bf16.xpose.msra.mxu0 %v1637
        %1652 = vmatpush.bf16.xpose.msra.mxu0 %v1634
        %1653 = vmatpush.bf16.xpose.msra.mxu0 %v1631
        %1654 = vmatpush.bf16.xpose.msra.mxu0 %v1628
        %1655 = vmatpush.bf16.xpose.msra.mxu0 %v1625
        %1656 = vmatmul.bf16.gmra.mxu0 %v1622
        %v1657 = vpop.f32.mrf.mxu0
        %v1658 = vadd.f32 0.0, %v1657
        %v1659 = vpop.f32.mrf.mxu0
        %1660 = vdwg.mxu0
        %v1661 = vadd.f32 %v1418, %v1498
        %v1662 = vadd.f32 %v1661, %v1578
        %v1663 = vadd.f32 %v1662, %v1658
        %v1664 = vld [vmem:[%s10] sm:$0x1]
        %v1666 = vperm.slane %v1664, 0
        %v1668 = vadd.f32 %v1663, %v1666
        %v1669 = vadd.f32 %v887, %v1668
        %v1670 = vld [vmem:[#allocation9] sm:$0x1]
        %v1671 = vld [vmem:[#allocation10] sm:$0x1]
        %1672 = vadd.xlane.f32.xlu0 %v1669
        %v1673 = vpop.xlane.xlu0 %1672
        %v1674 = vmul.f32 %v1673, %v898
        %v1675 = vsub.f32 %v1669, %v1674
        %v1676 = vmul.f32 %v1675, %v1675
        %1677 = vadd.xlane.f32.xlu0 %v1676
        %v1678 = vpop.xlane.xlu0 %1677
        %v1679 = vmul.f32 %v1678, %v898
        %v1680 = vadd.f32 %v1679, 1e-05
        %v1681 = vrsqrt.pop %v1680
        %v1682 = vmul.f32 %v1681, %v1680
        %v1683 = vmul.f32 %v1682, %v1681
        %v1684 = vmul.f32 0.5, %v1683
        %v1685 = vsub.f32 1.5, %v1684
        %v1686 = vmul.f32 %v1681, %v1685
        %vm1687 = vweird.f32 %v1680
        %vm1688 = vweird.f32 %v1681
        %vm1689 = vmor %vm1687, %vm1688
        %v1690 = vsel %vm1689, %v1681, %v1686
        %v1691 = vmul.f32 %v1675, %v1690
        %v1693 = vperm.slane %v1670, 0
        %v1695 = vmul.f32 %v1691, %v1693
        %v1697 = vperm.slane %v1671, 0
        %v1699 = vadd.f32 %v1695, %v1697
        %v1700 = vpack.c.bf16 %v1699, %v1699
        %v1701 = vld [vmem:[%s13] sm:$0xf]
        %v1702 = vld [vmem:[%s13 + $0x4] sm:$0xf]
        %v1703 = vld [vmem:[%s13 + $0x8] sm:$0xf]
        %v1704 = vld [vmem:[%s13 + $0xc] sm:$0xf]
        %v1705 = vld [vmem:[%s13 + $0x10] sm:$0xf]
        %v1706 = vld [vmem:[%s13 + $0x14] sm:$0xf]
        %v1707 = vld [vmem:[%s13 + $0x18] sm:$0xf]
        %v1708 = vld [vmem:[%s13 + $0x1c] sm:$0xf]
        %v1709 = vld [vmem:[%s13 + $0x20] sm:$0xf]
        %v1710 = vld [vmem:[%s13 + $0x24] sm:$0xf]
        %v1711 = vld [vmem:[%s13 + $0x28] sm:$0xf]
        %v1712 = vld [vmem:[%s13 + $0x2c] sm:$0xf]
        %v1713 = vld [vmem:[%s13 + $0x30] sm:$0xf]
        %v1714 = vld [vmem:[%s13 + $0x34] sm:$0xf]
        %v1715 = vld [vmem:[%s13 + $0x38] sm:$0xf]
        %v1716 = vld [vmem:[%s13 + $0x3c] sm:$0xf]
        %v1717 = vld [vmem:[%s13 + $0x40] sm:$0xf]
        %v1718 = vld [vmem:[%s13 + $0x44] sm:$0xf]
        %v1719 = vld [vmem:[%s13 + $0x48] sm:$0xf]
        %v1720 = vld [vmem:[%s13 + $0x4c] sm:$0xf]
        %v1721 = vld [vmem:[%s13 + $0x50] sm:$0xf]
        %v1722 = vld [vmem:[%s13 + $0x54] sm:$0xf]
        %v1723 = vld [vmem:[%s13 + $0x58] sm:$0xf]
        %v1724 = vld [vmem:[%s13 + $0x5c] sm:$0xf]
        %v1725 = vld [vmem:[%s13 + $0x60] sm:$0xf]
        %v1726 = vld [vmem:[%s13 + $0x64] sm:$0xf]
        %v1727 = vld [vmem:[%s13 + $0x68] sm:$0xf]
        %v1728 = vld [vmem:[%s13 + $0x6c] sm:$0xf]
        %v1729 = vld [vmem:[%s13 + $0x70] sm:$0xf]
        %v1730 = vld [vmem:[%s13 + $0x74] sm:$0xf]
        %v1731 = vld [vmem:[%s13 + $0x78] sm:$0xf]
        %v1732 = vld [vmem:[%s13 + $0x7c] sm:$0xf]
        %v1733 = vld [vmem:[%s13 + $0x80] sm:$0xf]
        %v1734 = vld [vmem:[%s13 + $0x84] sm:$0xf]
        %v1735 = vld [vmem:[%s13 + $0x88] sm:$0xf]
        %v1736 = vld [vmem:[%s13 + $0x8c] sm:$0xf]
        %v1737 = vld [vmem:[%s13 + $0x90] sm:$0xf]
        %v1738 = vld [vmem:[%s13 + $0x94] sm:$0xf]
        %v1739 = vld [vmem:[%s13 + $0x98] sm:$0xf]
        %v1740 = vld [vmem:[%s13 + $0x9c] sm:$0xf]
        %v1741 = vld [vmem:[%s13 + $0xa0] sm:$0xf]
        %v1742 = vld [vmem:[%s13 + $0xa4] sm:$0xf]
        %v1743 = vld [vmem:[%s13 + $0xa8] sm:$0xf]
        %v1744 = vld [vmem:[%s13 + $0xac] sm:$0xf]
        %v1745 = vld [vmem:[%s13 + $0xb0] sm:$0xf]
        %v1746 = vld [vmem:[%s13 + $0xb4] sm:$0xf]
        %v1747 = vld [vmem:[%s13 + $0xb8] sm:$0xf]
        %v1748 = vld [vmem:[%s13 + $0xbc] sm:$0xf]
        %v1749 = vld [vmem:[%s14] sm:$0x7]
        %v1751 = vperm.slane %v1749, 0
        %v1752 = vperm.slane %v1749, 1
        %v1753 = vperm.slane %v1749, 2
        %v1805 = vunpack.c.l.b16 %v1701
        %v1806 = vunpack.c.l.b16 %v1702
        %v1807 = vunpack.c.l.b16 %v1703
        %v1808 = vunpack.c.l.b16 %v1704
        %v1809 = vunpack.c.l.b16 %v1705
        %v1810 = vunpack.c.l.b16 %v1706
        %v1811 = vunpack.c.l.b16 %v1707
        %v1812 = vunpack.c.l.b16 %v1708
        %v1813 = vunpack.c.l.b16 %v1709
        %v1814 = vunpack.c.l.b16 %v1710
        %v1815 = vunpack.c.l.b16 %v1711
        %v1816 = vunpack.c.l.b16 %v1712
        %v1817 = vunpack.c.l.b16 %v1713
        %v1818 = vunpack.c.l.b16 %v1714
        %v1819 = vunpack.c.l.b16 %v1715
        %v1820 = vunpack.c.l.b16 %v1716
        %v1821 = vunpack.c.l.b16 %v1717
        %v1822 = vunpack.c.l.b16 %v1718
        %v1823 = vunpack.c.l.b16 %v1719
        %v1824 = vunpack.c.l.b16 %v1720
        %v1825 = vunpack.c.l.b16 %v1721
        %v1826 = vunpack.c.l.b16 %v1722
        %v1827 = vunpack.c.l.b16 %v1723
        %v1828 = vunpack.c.l.b16 %v1724
        %v1829 = vunpack.c.l.b16 %v1725
        %v1830 = vunpack.c.l.b16 %v1726
        %v1831 = vunpack.c.l.b16 %v1727
        %v1832 = vunpack.c.l.b16 %v1728
        %v1833 = vunpack.c.l.b16 %v1729
        %v1834 = vunpack.c.l.b16 %v1730
        %v1835 = vunpack.c.l.b16 %v1731
        %v1836 = vunpack.c.l.b16 %v1732
        %v1837 = vunpack.c.l.b16 %v1733
        %v1838 = vunpack.c.l.b16 %v1734
        %v1839 = vunpack.c.l.b16 %v1735
        %v1840 = vunpack.c.l.b16 %v1736
        %v1841 = vunpack.c.l.b16 %v1737
        %v1842 = vunpack.c.l.b16 %v1738
        %v1843 = vunpack.c.l.b16 %v1739
        %v1844 = vunpack.c.l.b16 %v1740
        %v1845 = vunpack.c.l.b16 %v1741
        %v1846 = vunpack.c.l.b16 %v1742
        %v1847 = vunpack.c.l.b16 %v1743
        %v1848 = vunpack.c.l.b16 %v1744
        %v1849 = vunpack.c.l.b16 %v1745
        %v1850 = vunpack.c.l.b16 %v1746
        %v1851 = vunpack.c.l.b16 %v1747
        %v1852 = vunpack.c.l.b16 %v1748
        %v1853 = vpack.c.b16 %v1806, %v1805
        %v1854 = vpack.c.b16 %v1808, %v1807
        %v1855 = vpack.c.b16 %v1810, %v1809
        %v1856 = vpack.c.b16 %v1812, %v1811
        %v1857 = vpack.c.b16 %v1814, %v1813
        %v1858 = vpack.c.b16 %v1816, %v1815
        %v1859 = vpack.c.b16 %v1818, %v1817
        %v1860 = vpack.c.b16 %v1820, %v1819
        %v1861 = vpack.c.b16 %v1822, %v1821
        %v1862 = vpack.c.b16 %v1824, %v1823
        %v1863 = vpack.c.b16 %v1826, %v1825
        %v1864 = vpack.c.b16 %v1828, %v1827
        %v1865 = vpack.c.b16 %v1830, %v1829
        %v1866 = vpack.c.b16 %v1832, %v1831
        %v1867 = vpack.c.b16 %v1834, %v1833
        %v1868 = vpack.c.b16 %v1836, %v1835
        %v1869 = vpack.c.b16 %v1838, %v1837
        %v1870 = vpack.c.b16 %v1840, %v1839
        %v1871 = vpack.c.b16 %v1842, %v1841
        %v1872 = vpack.c.b16 %v1844, %v1843
        %v1873 = vpack.c.b16 %v1846, %v1845
        %v1874 = vpack.c.b16 %v1848, %v1847
        %v1875 = vpack.c.b16 %v1850, %v1849
        %v1876 = vpack.c.b16 %v1852, %v1851
        %1901 = vmatpush.bf16.xpose.msra.mxu0 %v1860
        %1902 = vmatpush.bf16.xpose.msra.mxu0 %v1859
        %1903 = vmatpush.bf16.xpose.msra.mxu0 %v1858
        %1904 = vmatpush.bf16.xpose.msra.mxu0 %v1857
        %1905 = vmatpush.bf16.xpose.msra.mxu0 %v1856
        %1906 = vmatpush.bf16.xpose.msra.mxu0 %v1855
        %1907 = vmatpush.bf16.xpose.msra.mxu0 %v1854
        %1908 = vmatpush.bf16.xpose.msra.mxu0 %v1853
        %1909 = vmatmul.bf16.gmra.mxu0 %v1700
        %v1910 = vpop.f32.mrf.mxu0
        %v1911 = vadd.f32 %v1751, %v1910
        %v1912 = vpop.f32.mrf.mxu0
        %1913 = vdwg.mxu0
        %1914 = vmatpush.bf16.xpose.msra.mxu0 %v1868
        %1915 = vmatpush.bf16.xpose.msra.mxu0 %v1867
        %1916 = vmatpush.bf16.xpose.msra.mxu0 %v1866
        %1917 = vmatpush.bf16.xpose.msra.mxu0 %v1865
        %1918 = vmatpush.bf16.xpose.msra.mxu0 %v1864
        %1919 = vmatpush.bf16.xpose.msra.mxu0 %v1863
        %1920 = vmatpush.bf16.xpose.msra.mxu0 %v1862
        %1921 = vmatpush.bf16.xpose.msra.mxu0 %v1861
        %1922 = vmatmul.bf16.gmra.mxu0 %v1700
        %v1923 = vpop.f32.mrf.mxu0
        %v1924 = vadd.f32 %v1752, %v1923
        %v1925 = vpop.f32.mrf.mxu0
        %1926 = vdwg.mxu0
        %1927 = vmatpush.bf16.xpose.msra.mxu0 %v1876
        %1928 = vmatpush.bf16.xpose.msra.mxu0 %v1875
        %1929 = vmatpush.bf16.xpose.msra.mxu0 %v1874
        %1930 = vmatpush.bf16.xpose.msra.mxu0 %v1873
        %1931 = vmatpush.bf16.xpose.msra.mxu0 %v1872
        %1932 = vmatpush.bf16.xpose.msra.mxu0 %v1871
        %1933 = vmatpush.bf16.xpose.msra.mxu0 %v1870
        %1934 = vmatpush.bf16.xpose.msra.mxu0 %v1869
        %1935 = vmatmul.bf16.gmra.mxu0 %v1700
        %v1936 = vpop.f32.mrf.mxu0
        %v1937 = vadd.f32 %v1753, %v1936
        %v1938 = vpop.f32.mrf.mxu0
        %1939 = vdwg.mxu0
        %v1940 = vmul.f32 %v1911, 0.5
        %v1941 = vmul.f32 %v1924, 0.5
        %v1942 = vmul.f32 %v1937, 0.5
        %v1943 = vmul.f32 %v1911, %v1911
        %v1944 = vmul.f32 %v1924, %v1924
        %v1945 = vmul.f32 %v1937, %v1937
        %v1946 = vmul.f32 %v1943, %v1911
        %v1947 = vmul.f32 %v1944, %v1924
        %v1948 = vmul.f32 %v1945, %v1937
        %v1949 = vmul.f32 %v1946, 0.044715
        %v1950 = vmul.f32 %v1947, 0.044715
        %v1951 = vmul.f32 %v1948, 0.044715
        %v1952 = vadd.f32 %v1911, %v1949
        %v1953 = vadd.f32 %v1924, %v1950
        %v1954 = vadd.f32 %v1937, %v1951
        %v1955 = vmul.f32 %v1952, 0.7978846
        %v1956 = vmul.f32 %v1953, 0.7978846
        %v1957 = vmul.f32 %v1954, 0.7978846
        %v1958 = vtanh.pop %v1955
        %v1959 = vtanh.pop %v1956
        %v1960 = vtanh.pop %v1957
        %v1961 = vadd.f32 %v1958, 1.0
        %v1962 = vadd.f32 %v1959, 1.0
        %v1963 = vadd.f32 %v1960, 1.0
        %v1964 = vmul.f32 %v1940, %v1961
        %v1965 = vmul.f32 %v1941, %v1962
        %v1966 = vmul.f32 %v1942, %v1963
        %v1967 = vpack.c.bf16 %v1964, %v1964
        %v1968 = vpack.c.bf16 %v1965, %v1965
        %v1969 = vpack.c.bf16 %v1966, %v1966
        %v1970 = vld [vmem:[#allocation12] sm:$0xff]
        %v1971 = vld [vmem:[#allocation12 + $0x8] sm:$0xf]
        %v1972 = vld [vmem:[#allocation12 + $0xc] sm:$0xff]
        %v1973 = vld [vmem:[#allocation12 + $0x14] sm:$0xf]
        %v1974 = vld [vmem:[#allocation12 + $0x18] sm:$0xff]
        %v1975 = vld [vmem:[#allocation12 + $0x20] sm:$0xf]
        %v1976 = vld [vmem:[#allocation12 + $0x24] sm:$0xff]
        %v1977 = vld [vmem:[#allocation12 + $0x2c] sm:$0xf]
        %v1978 = vld [vmem:[#allocation12 + $0x30] sm:$0xff]
        %v1979 = vld [vmem:[#allocation12 + $0x38] sm:$0xf]
        %v1980 = vld [vmem:[#allocation12 + $0x3c] sm:$0xff]
        %v1981 = vld [vmem:[#allocation12 + $0x44] sm:$0xf]
        %v1982 = vld [vmem:[#allocation12 + $0x48] sm:$0xff]
        %v1983 = vld [vmem:[#allocation12 + $0x50] sm:$0xf]
        %v1984 = vld [vmem:[#allocation12 + $0x54] sm:$0xff]
        %v1985 = vld [vmem:[#allocation12 + $0x5c] sm:$0xf]
        %v1986 = vld [vmem:[#allocation12 + $0x60] sm:$0xff]
        %v1987 = vld [vmem:[#allocation12 + $0x68] sm:$0xf]
        %v1988 = vld [vmem:[#allocation12 + $0x6c] sm:$0xff]
        %v1989 = vld [vmem:[#allocation12 + $0x74] sm:$0xf]
        %v1990 = vld [vmem:[#allocation12 + $0x78] sm:$0xff]
        %v1991 = vld [vmem:[#allocation12 + $0x80] sm:$0xf]
        %v1992 = vld [vmem:[#allocation12 + $0x84] sm:$0xff]
        %v1993 = vld [vmem:[#allocation12 + $0x8c] sm:$0xf]
        %v1994 = vld [vmem:[#allocation12 + $0x90] sm:$0xff]
        %v1995 = vld [vmem:[#allocation12 + $0x98] sm:$0xf]
        %v1996 = vld [vmem:[#allocation12 + $0x9c] sm:$0xff]
        %v1997 = vld [vmem:[#allocation12 + $0xa4] sm:$0xf]
        %v1998 = vld [vmem:[#allocation12 + $0xa8] sm:$0xff]
        %v1999 = vld [vmem:[#allocation12 + $0xb0] sm:$0xf]
        %v2000 = vld [vmem:[#allocation12 + $0xb4] sm:$0xff]
        %v2001 = vld [vmem:[#allocation12 + $0xbc] sm:$0xf]
        %v2002 = vld [vmem:[%s16] sm:$0x1]
        %v2004 = vperm.slane %v2002, 0
        %v2038 = vunpack.c.l.b16 %v1970
        %v2039 = vunpack.c.h.b16 %v1970
        %v2040 = vunpack.c.l.b16 %v1971
        %v2041 = vunpack.c.l.b16 %v1972
        %v2042 = vunpack.c.h.b16 %v1972
        %v2043 = vunpack.c.l.b16 %v1973
        %v2044 = vunpack.c.l.b16 %v1974
        %v2045 = vunpack.c.h.b16 %v1974
        %v2046 = vunpack.c.l.b16 %v1975
        %v2047 = vunpack.c.l.b16 %v1976
        %v2048 = vunpack.c.h.b16 %v1976
        %v2049 = vunpack.c.l.b16 %v1977
        %v2050 = vunpack.c.l.b16 %v1978
        %v2051 = vunpack.c.h.b16 %v1978
        %v2052 = vunpack.c.l.b16 %v1979
        %v2053 = vunpack.c.l.b16 %v1980
        %v2054 = vunpack.c.h.b16 %v1980
        %v2055 = vunpack.c.l.b16 %v1981
        %v2056 = vunpack.c.l.b16 %v1982
        %v2057 = vunpack.c.h.b16 %v1982
        %v2058 = vunpack.c.l.b16 %v1983
        %v2059 = vunpack.c.l.b16 %v1984
        %v2060 = vunpack.c.h.b16 %v1984
        %v2061 = vunpack.c.l.b16 %v1985
        %v2062 = vunpack.c.l.b16 %v1986
        %v2063 = vunpack.c.h.b16 %v1986
        %v2064 = vunpack.c.l.b16 %v1987
        %v2065 = vunpack.c.l.b16 %v1988
        %v2066 = vunpack.c.h.b16 %v1988
        %v2067 = vunpack.c.l.b16 %v1989
        %v2068 = vunpack.c.l.b16 %v1990
        %v2069 = vunpack.c.h.b16 %v1990
        %v2070 = vunpack.c.l.b16 %v1991
        %v2071 = vunpack.c.l.b16 %v1992
        %v2072 = vunpack.c.h.b16 %v1992
        %v2073 = vunpack.c.l.b16 %v1993
        %v2074 = vunpack.c.l.b16 %v1994
        %v2075 = vunpack.c.h.b16 %v1994
        %v2076 = vunpack.c.l.b16 %v1995
        %v2077 = vunpack.c.l.b16 %v1996
        %v2078 = vunpack.c.h.b16 %v1996
        %v2079 = vunpack.c.l.b16 %v1997
        %v2080 = vunpack.c.l.b16 %v1998
        %v2081 = vunpack.c.h.b16 %v1998
        %v2082 = vunpack.c.l.b16 %v1999
        %v2083 = vunpack.c.l.b16 %v2000
        %v2084 = vunpack.c.h.b16 %v2000
        %v2085 = vunpack.c.l.b16 %v2001
        %v2086 = vpack.c.b16 %v2041, %v2038
        %v2087 = vpack.c.b16 %v2042, %v2039
        %v2088 = vpack.c.b16 %v2043, %v2040
        %v2089 = vpack.c.b16 %v2047, %v2044
        %v2090 = vpack.c.b16 %v2048, %v2045
        %v2091 = vpack.c.b16 %v2049, %v2046
        %v2092 = vpack.c.b16 %v2053, %v2050
        %v2093 = vpack.c.b16 %v2054, %v2051
        %v2094 = vpack.c.b16 %v2055, %v2052
        %v2095 = vpack.c.b16 %v2059, %v2056
        %v2096 = vpack.c.b16 %v2060, %v2057
        %v2097 = vpack.c.b16 %v2061, %v2058
        %v2098 = vpack.c.b16 %v2065, %v2062
        %v2099 = vpack.c.b16 %v2066, %v2063
        %v2100 = vpack.c.b16 %v2067, %v2064
        %v2101 = vpack.c.b16 %v2071, %v2068
        %v2102 = vpack.c.b16 %v2072, %v2069
        %v2103 = vpack.c.b16 %v2073, %v2070
        %v2104 = vpack.c.b16 %v2077, %v2074
        %v2105 = vpack.c.b16 %v2078, %v2075
        %v2106 = vpack.c.b16 %v2079, %v2076
        %v2107 = vpack.c.b16 %v2083, %v2080
        %v2108 = vpack.c.b16 %v2084, %v2081
        %v2109 = vpack.c.b16 %v2085, %v2082
        %2134 = vmatpush.bf16.xpose.msra.mxu0 %v2107
        %2135 = vmatpush.bf16.xpose.msra.mxu0 %v2104
        %2136 = vmatpush.bf16.xpose.msra.mxu0 %v2101
        %2137 = vmatpush.bf16.xpose.msra.mxu0 %v2098
        %2138 = vmatpush.bf16.xpose.msra.mxu0 %v2095
        %2139 = vmatpush.bf16.xpose.msra.mxu0 %v2092
        %2140 = vmatpush.bf16.xpose.msra.mxu0 %v2089
        %2141 = vmatpush.bf16.xpose.msra.mxu0 %v2086
        %2142 = vmatmul.bf16.gmra.mxu0 %v1967
        %v2143 = vpop.f32.mrf.mxu0
        %v2144 = vadd.f32 %v2004, %v2143
        %v2145 = vpop.f32.mrf.mxu0
        %2146 = vdwg.mxu0
        %2147 = vmatpush.bf16.xpose.msra.mxu0 %v2108
        %2148 = vmatpush.bf16.xpose.msra.mxu0 %v2105
        %2149 = vmatpush.bf16.xpose.msra.mxu0 %v2102
        %2150 = vmatpush.bf16.xpose.msra.mxu0 %v2099
        %2151 = vmatpush.bf16.xpose.msra.mxu0 %v2096
        %2152 = vmatpush.bf16.xpose.msra.mxu0 %v2093
        %2153 = vmatpush.bf16.xpose.msra.mxu0 %v2090
        %2154 = vmatpush.bf16.xpose.msra.mxu0 %v2087
        %2155 = vmatmul.bf16.gmra.mxu0 %v1968
        %v2156 = vpop.f32.mrf.mxu0
        %v2157 = vadd.f32 %v2144, %v2156
        %v2158 = vpop.f32.mrf.mxu0
        %2159 = vdwg.mxu0
        %2160 = vmatpush.bf16.xpose.msra.mxu0 %v2109
        %2161 = vmatpush.bf16.xpose.msra.mxu0 %v2106
        %2162 = vmatpush.bf16.xpose.msra.mxu0 %v2103
        %2163 = vmatpush.bf16.xpose.msra.mxu0 %v2100
        %2164 = vmatpush.bf16.xpose.msra.mxu0 %v2097
        %2165 = vmatpush.bf16.xpose.msra.mxu0 %v2094
        %2166 = vmatpush.bf16.xpose.msra.mxu0 %v2091
        %2167 = vmatpush.bf16.xpose.msra.mxu0 %v2088
        %2168 = vmatmul.bf16.gmra.mxu0 %v1969
        %v2169 = vpop.f32.mrf.mxu0
        %v2170 = vadd.f32 %v2157, %v2169
        %v2171 = vpop.f32.mrf.mxu0
        %2172 = vdwg.mxu0
        %v2173 = vadd.f32 %v1669, %v2170
        %2174 = vst [vmem:[%s641] sm:$0xff] %v2173
        %s2175 = sand.u32 %s420, 1
        %s2176 = scalar_lea.sflag [#allocation6], %s2175
        %s2177 = sand.u32 %s420, 1
        %s2178 = smul.addr %s2177, 8
        %s2179 = scalar_lea.vmem [#allocation13], %s2178
        // Predicated region
        $region113: #{tpu_custom_call.1} parent=87 // pred_check
          %p2180 = pneg %p430
        $region114: #{tpu_custom_call.1} parent=87 // pred_check_branch
          %2182 = sbr.rel (%p2180) target = $region116
        $region115: #{tpu_custom_call.1} parent=87 // pred_region
          %2184 = vsyncadd %s2176, 0
          %s2185 = sadd.s32 %s41, %s40
          %s2186 = smul.addr %s2185, 8
          %s2187 = scalar_lea.hbm %s17, %s2186
          %s2189 = sshll.u32 %s2179, 4
          %s2190 = int_to_ptr.vmem [resolvable:$true] %s2189
          %s2191 = sshll.u32 %s2187, 4
          %s2192 = int_to_ptr.hbm [resolvable:$true] %s2191
          %2194 = dma.vmem_to_hbm [thread:$0]  %s2190, 128, %s2192, %s2176
        $region116: #{tpu_custom_call.1} parent=87 // pred_fallthru
          _
      $region88: #{tpu_custom_call.1} parent=5 // pred_fallthru
        _
      %p2195 = scmp.le.s32.totalorder 2, %s31
      // Predicated region
      $region117: #{tpu_custom_call.1} parent=5 // pred_check
        %p2196 = pneg %p2195
      $region118: #{tpu_custom_call.1} parent=5 // pred_check_branch
        %2198 = sbr.rel (%p2196) target = $region120
      $region119: #{tpu_custom_call.1} parent=5 // pred_region
        %s2199 = ssub.s32 %s31, 2
        // Predicated region
        $region121: #{tpu_custom_call.1} parent=119 // pred_check
          %p2200 = pneg %p436
        $region122: #{tpu_custom_call.1} parent=119 // pred_check_branch
          %2202 = sbr.rel (%p2200) target = $region124
        $region123: #{tpu_custom_call.1} parent=119 // pred_region
          %s2203 = sand.u32 %s421, 1
          %s2204 = scalar_lea.sflag [#allocation6], %s2203
          %s2205 = sand.u32 %s421, 1
          %s2206 = smul.addr %s2205, 8
          %s2207 = scalar_lea.vmem [#allocation13], %s2206
          %2209 = dma.done %s2204, 128
        $region124: #{tpu_custom_call.1} parent=119 // pred_fallthru
          _
      $region120: #{tpu_custom_call.1} parent=5 // pred_fallthru
        _
    $region6: #{tpu_custom_call.1} parent=1 // loop_footer
      %s35 = sadd.s32 1, %s31
    $region7: #{tpu_custom_call.1} parent=1 // loop_footer_branch
      %30 = sbr.rel target = $region3
    $region8: #{tpu_custom_call.1} parent=1 // loop_exit
      _
    %2210 = vsyncpa [#allocation5], 1
    %s2211 = scalar_lea.sflag [#allocation5], 1
    %2212 = vsyncpa %s2211, 1
    %2213 = vsyncpa [#allocation8], 1
    %2214 = vsyncpa [#allocation11], 1
    %2215 = vsyncpa [#allocation6], 1
    %s2216 = scalar_lea.sflag [#allocation6], 1
    %2217 = vsyncpa %s2216, 1

</llo_original>
